<compile_context>
chip_gen: v7x
topology: tpu7x:2x2x1
jax: 0.10.0
libtpu: 0.0.40
codegen_flags: <defaults>
</compile_context>

<pallas_src>
import jax
import jax.numpy as jnp
from jax.experimental import pallas as pl
from jax.experimental.pallas import tpu as pltpu

# ---------------- config (small shapes consistent with MetaCas.__init__) -------------
BATCH = 2
SEQ = 9                      # raw cascade length; forward slices [:, :-1] -> L = 8
L = SEQ - 1
HIDDEN = 32                  # opt.d_word_vec
POS_DIM = 8                  # self.pos_dim
N_NODE = 64                  # opt.user_size
INPUT_DIM = 16               # opt.initialFeatureSize
GNN_META_DIM = 8 + 8         # opt.m_struc_size + opt.m_pref_size
TIME_DIM = 8                 # opt.m_time_size
LSTM_M_DIM = GNN_META_DIM + TIME_DIM          # 24
H = HIDDEN + POS_DIM                          # LSTM input/hidden size = 40
XM_DIM = H + LSTM_M_DIM                       # packed [x | meta] width = 64
HP = 128                                      # hidden padded to one lane tile
NP = 128                                      # logits padded to one lane tile
LB = L * BATCH
STDV = 1.0 / (HIDDEN ** 0.5)


# ------------------------------- fused Pallas kernel ---------------------------------
def metacas_fused_kernel(ids_ref, node_ref, wg_ref, meta_ref, wgm_ref,
                         pos_ref, time_ref,
                         wxm_ref, bxm_ref, whh_ref, w2_ref, b2_ref,
                         out_ref):
    f32 = jnp.float32
    bf16 = jnp.bfloat16
    B = BATCH

    # --- MetaGNN stand-in: g_hidden = tanh(node_emb @ Wg + meta_s @ Wm) --------------
    # TODO(synk): real MetaGNN definition not provided; deterministic matmul stand-in.
    g_hidden = jnp.tanh(
        jnp.dot(node_ref[...].astype(bf16), wg_ref[...].astype(bf16),
                preferred_element_type=f32)
        + jnp.dot(meta_ref[...].astype(bf16), wgm_ref[...].astype(bf16),
                  preferred_element_type=f32))                       # (N_NODE, HIDDEN)

    # --- embedding lookups as one-hot matmuls (gather-free, MXU) --------------------
    ids = ids_ref[...]                                               # (LB, 1) int32, row = t*B + b
    user_iota = jax.lax.broadcasted_iota(jnp.int32, (LB, N_NODE), 1)
    onehot = jnp.where(user_iota == ids, 1.0, 0.0).astype(bf16)      # (LB, N_NODE)
    emb = jnp.dot(onehot, g_hidden.astype(bf16),
                  preferred_element_type=f32)                        # (LB, HIDDEN)
    meta_seq = jnp.dot(onehot, meta_ref[...].astype(bf16),
                       preferred_element_type=f32)                   # (LB, GNN_META_DIM)

    # --- hoisted input/meta gate pre-activations for ALL timesteps ------------------
    # xm = [node-emb | pos | meta_seq | time-enc]  matches packed rows of W_xm.
    xm = jnp.concatenate([emb, pos_ref[...], meta_seq, time_ref[...]], axis=-1)  # (LB, 64)
    gates_x = (jnp.dot(xm.astype(bf16), wxm_ref[...],
                       preferred_element_type=f32)
               + bxm_ref[...])                                       # (LB, 4*HP)

    # --- fully unrolled meta-LSTM recurrence; h / c / seen stay in vregs ------------
    # TODO(synk): real MetaLSTM definition not provided; meta-conditioned LSTM cell.
    h = jnp.zeros((B, HP), f32)
    c = jnp.zeros((B, HP), f32)
    seen = jnp.zeros((B, NP), jnp.bool_)
    lane_np = jax.lax.broadcasted_iota(jnp.int32, (B, NP), 1)
    pad_user = lane_np == 0                      # PAD user id 0 is always masked
    b2_row = b2_ref[...]                         # (1, NP), hoisted

    for t in range(L):
        gx = gates_x[t * B:(t + 1) * B, :]                            # (B, 4*HP) static slice
        gates = gx + jnp.dot(h.astype(bf16), whh_ref[...],
                             preferred_element_type=f32)              # (B, 4*HP)
        # gate slices are 128-lane aligned (gate-padded weight layout)
        i_g = 1.0 / (1.0 + jnp.exp(-gates[:, 0 * HP:1 * HP]))
        f_g = 1.0 / (1.0 + jnp.exp(-gates[:, 1 * HP:2 * HP]))
        g_g = jnp.tanh(gates[:, 2 * HP:3 * HP])
        o_g = 1.0 / (1.0 + jnp.exp(-gates[:, 3 * HP:4 * HP]))
        c = f_g * c + i_g * g_g
        h = o_g * jnp.tanh(c)

        # previous-user mask: -inf at PAD id 0 and every user seen at steps <= t
        ids_t = ids[t * B:(t + 1) * B, :]                             # (B, 1)
        seen = jnp.logical_or(seen, lane_np == ids_t)
        mask_t = jnp.where(jnp.logical_or(seen, pad_user), -jnp.inf, 0.0)

        logits_t = (jnp.dot(h.astype(bf16), w2_ref[...],
                            preferred_element_type=f32)
                    + b2_row + mask_t)                                # (B, NP)

        # output row ordering matches PyTorch view(-1, user_size): row = b*L + t
        for b in range(B):
            out_ref[pl.ds(b * L + t, 1), :] = logits_t[b:b + 1, :]


def _fused_call(ids_tm, time_tm, meta_s, p):
    args = (ids_tm,
            p["node_emb"], p["w_gnn"], meta_s, p["w_gnn_meta"],
            p["pos_tm"], time_tm,
            p["w_xm"], p["b_xm"], p["w_hh"], p["w2"], p["b2"])
    in_specs = [pl.BlockSpec(a.shape, lambda i: (0, 0)) for a in args]
    return pl.pallas_call(
        metacas_fused_kernel,
        out_shape=jax.ShapeDtypeStruct((BATCH * L, NP), jnp.float32),
        grid=(1,),
        in_specs=in_specs,
        out_specs=pl.BlockSpec((BATCH * L, NP), lambda i: (0, 0)),
        compiler_params=pltpu.CompilerParams(dimension_semantics=("arbitrary",)),
    )(*args)


# ------------------------------- params & packing ------------------------------------
def init_params(key):
    def u(k, shape):
        return jax.random.uniform(k, shape, jnp.float32, -STDV, STDV)
    ks = jax.random.split(key, 12)
    return dict(
        pos_embedding=u(ks[0], (500, POS_DIM)),
        node_emb=u(ks[1], (N_NODE, INPUT_DIM)),       # MetaGNN stand-in node features
        w_gnn=u(ks[2], (INPUT_DIM, HIDDEN)),
        w_gnn_meta=u(ks[3], (GNN_META_DIM, HIDDEN)),
        w_ih=u(ks[4], (H, 4 * H)),
        w_hh=u(ks[5], (H, 4 * H)),
        w_mh=u(ks[6], (LSTM_M_DIM, 4 * H)),
        b_lstm=u(ks[7], (1, 4 * H)),
        w2=u(ks[8], (H, N_NODE)),
        b2=u(ks[9], (1, N_NODE)),
        basis_freq=u(ks[10], (TIME_DIM,)),
        phase=u(ks[11], (TIME_DIM,)),
    )


def _pack_gate_cols(w):
    """(rows, 4*H) -> (rows, 4*HP): each gate gets its own 128-lane slot, zero padded."""
    rows = w.shape[0]
    out = jnp.zeros((rows, 4 * HP), jnp.float32)
    for g in range(4):
        out = out.at[:, g * HP:g * HP + H].set(w[:, g * H:(g + 1) * H])
    return out


def prepare_params(params):
    """One-time packing (outside the per-call forward path)."""
    w_xm = jnp.concatenate([_pack_gate_cols(params["w_ih"]),
                            _pack_gate_cols(params["w_mh"])], axis=0)       # (64, 512)
    w_hh = jnp.zeros((HP, 4 * HP), jnp.float32).at[:H].set(
        _pack_gate_cols(params["w_hh"]))                                    # (128, 512)
    b_xm = _pack_gate_cols(params["b_lstm"])                                # (1, 512)
    w2 = jnp.zeros((HP, NP), jnp.float32).at[:H, :N_NODE].set(params["w2"])
    b2 = jnp.zeros((1, NP), jnp.float32).at[:, :N_NODE].set(params["b2"])
    pos_tm = jnp.repeat(params["pos_embedding"][:L], BATCH, axis=0)         # (L*B, 8), row=t*B+b
    return dict(
        node_emb=params["node_emb"],
        w_gnn=params["w_gnn"],
        w_gnn_meta=params["w_gnn_meta"],
        pos_tm=pos_tm,
        basis_freq=params["basis_freq"].reshape(1, TIME_DIM),
        phase=params["phase"].reshape(1, TIME_DIM),
        w_xm=w_xm.astype(jnp.bfloat16),
        w_hh=w_hh.astype(jnp.bfloat16),
        b_xm=b_xm,
        w2=w2.astype(jnp.bfloat16),
        b2=b2,
    )


# ------------------------------- forward ---------------------------------------------
@jax.jit
def metacas_forward(prepped, input_ids, input_timestamp, meta_s):
    # input = input[:, :-1]; input_timestamp = input_timestamp[:, :-1]
    inp = input_ids[:, :-1].astype(jnp.int32)            # (B, L)
    ts = input_timestamp[:, :-1].astype(jnp.float32)     # (B, L)

    # time-major flattening (row = t*B + b) so per-step slices are contiguous in-kernel
    ids_tm = jnp.transpose(inp).reshape(LB, 1)
    d_tm = jnp.transpose(ts[:, 0:1] - ts).reshape(LB, 1)
    # TimeEncode: cos((ts[:,0]-ts) * freq + phase)   (layer_norm unused, as in PyTorch)
    time_tm = jnp.cos(d_tm * prepped["basis_freq"] + prepped["phase"])      # (LB, 8)

    out_pad = _fused_call(ids_tm, time_tm, meta_s, prepped)                 # (B*L, 128)
    return out_pad[:, :N_NODE]                                              # (B*L, N_NODE)


if __name__ == "__main__":
    key = jax.random.PRNGKey(0)
    k_par, k_inp, k_ts, k_meta = jax.random.split(key, 4)

    params = init_params(k_par)
    prepped = prepare_params(params)

    # cascade of user ids (avoid PAD id 0), monotone timestamps, meta feature table
    input_ids = jax.random.randint(k_inp, (BATCH, SEQ), 1, N_NODE, dtype=jnp.int32)
    input_timestamp = jnp.cumsum(
        jax.random.uniform(k_ts, (BATCH, SEQ), jnp.float32, 0.0, 1.0), axis=1)
    meta_s = jax.random.uniform(k_meta, (N_NODE, GNN_META_DIM), jnp.float32,
                                -STDV, STDV)

    out = metacas_forward(prepped, input_ids, input_timestamp, meta_s)
    out = jax.block_until_ready(out)
    assert out.shape == (BATCH * L, N_NODE), out.shape
    print("KERNEL_OK")
</pallas_src>

<mosaic_0001>
module attributes {stable_mosaic.version = 11 : i64} {
  func.func @metacas_fused_kernel(%arg0: i32, %arg1: memref<16x1xi32, #tpu.memory_space<vmem>>, %arg2: memref<64x16xf32, #tpu.memory_space<vmem>>, %arg3: memref<16x32xf32, #tpu.memory_space<vmem>>, %arg4: memref<64x16xf32, #tpu.memory_space<vmem>>, %arg5: memref<16x32xf32, #tpu.memory_space<vmem>>, %arg6: memref<16x8xf32, #tpu.memory_space<vmem>>, %arg7: memref<16x8xf32, #tpu.memory_space<vmem>>, %arg8: memref<64x512xbf16, #tpu.memory_space<vmem>>, %arg9: memref<1x512xf32, #tpu.memory_space<vmem>>, %arg10: memref<128x512xbf16, #tpu.memory_space<vmem>>, %arg11: memref<128x128xbf16, #tpu.memory_space<vmem>>, %arg12: memref<1x128xf32, #tpu.memory_space<vmem>>, %arg13: memref<16x128xf32, #tpu.memory_space<vmem>>) attributes {dimension_semantics = [#tpu.dimension_semantics<arbitrary>], iteration_bounds = array<i64: 1>, scalar_prefetch = 0 : i64, scratch_operands = 0 : i64, tpu.core_type = #tpu.core_type<tc>, window_params = [{pipeline_mode = #tpu.pipeline_mode<synchronous>, transform_indices = @transform_0, window_bounds = array<i64: 16, 1>}, {pipeline_mode = #tpu.pipeline_mode<synchronous>, transform_indices = @transform_1, window_bounds = array<i64: 64, 16>}, {pipeline_mode = #tpu.pipeline_mode<synchronous>, transform_indices = @transform_2, window_bounds = array<i64: 16, 32>}, {pipeline_mode = #tpu.pipeline_mode<synchronous>, transform_indices = @transform_3, window_bounds = array<i64: 64, 16>}, {pipeline_mode = #tpu.pipeline_mode<synchronous>, transform_indices = @transform_4, window_bounds = array<i64: 16, 32>}, {pipeline_mode = #tpu.pipeline_mode<synchronous>, transform_indices = @transform_5, window_bounds = array<i64: 16, 8>}, {pipeline_mode = #tpu.pipeline_mode<synchronous>, transform_indices = @transform_6, window_bounds = array<i64: 16, 8>}, {pipeline_mode = #tpu.pipeline_mode<synchronous>, transform_indices = @transform_7, window_bounds = array<i64: 64, 512>}, {pipeline_mode = #tpu.pipeline_mode<synchronous>, transform_indices = @transform_8, window_bounds = array<i64: 1, 512>}, {pipeline_mode = #tpu.pipeline_mode<synchronous>, transform_indices = @transform_9, window_bounds = array<i64: 128, 512>}, {pipeline_mode = #tpu.pipeline_mode<synchronous>, transform_indices = @transform_10, window_bounds = array<i64: 128, 128>}, {pipeline_mode = #tpu.pipeline_mode<synchronous>, transform_indices = @transform_11, window_bounds = array<i64: 1, 128>}, {pipeline_mode = #tpu.pipeline_mode<synchronous>, transform_indices = @transform_12, window_bounds = array<i64: 16, 128>}]} {
    %c0 = arith.constant 0 : index
    %c0_0 = arith.constant 0 : index
    %0 = vector.load %arg2[%c0, %c0_0] : memref<64x16xf32, #tpu.memory_space<vmem>>, vector<64x16xf32>
    %1 = arith.truncf %0 : vector<64x16xf32> to vector<64x16xbf16>
    %c0_1 = arith.constant 0 : index
    %c0_2 = arith.constant 0 : index
    %2 = vector.load %arg3[%c0_1, %c0_2] : memref<16x32xf32, #tpu.memory_space<vmem>>, vector<16x32xf32>
    %3 = arith.truncf %2 : vector<16x32xf32> to vector<16x32xbf16>
    %cst = arith.constant dense<0.000000e+00> : vector<64x32xf32>
    %4 = tpu.matmul %1, %3, %cst {dimension_numbers = #tpu.dot_dimension_numbers<[1], [0], [0], [1], [0, 0, 1, 1], [], []>} : vector<64x16xbf16>, vector<16x32xbf16>, vector<64x32xf32> -> vector<64x32xf32>
    %c0_3 = arith.constant 0 : index
    %c0_4 = arith.constant 0 : index
    %5 = vector.load %arg4[%c0_3, %c0_4] : memref<64x16xf32, #tpu.memory_space<vmem>>, vector<64x16xf32>
    %6 = arith.truncf %5 : vector<64x16xf32> to vector<64x16xbf16>
    %c0_5 = arith.constant 0 : index
    %c0_6 = arith.constant 0 : index
    %7 = vector.load %arg5[%c0_5, %c0_6] : memref<16x32xf32, #tpu.memory_space<vmem>>, vector<16x32xf32>
    %8 = arith.truncf %7 : vector<16x32xf32> to vector<16x32xbf16>
    %cst_7 = arith.constant dense<0.000000e+00> : vector<64x32xf32>
    %9 = tpu.matmul %6, %8, %cst_7 {dimension_numbers = #tpu.dot_dimension_numbers<[1], [0], [0], [1], [0, 0, 1, 1], [], []>} : vector<64x16xbf16>, vector<16x32xbf16>, vector<64x32xf32> -> vector<64x32xf32>
    %10 = arith.addf %4, %9 : vector<64x32xf32>
    %11 = math.tanh %10 : vector<64x32xf32>
    %c0_8 = arith.constant 0 : index
    %c0_9 = arith.constant 0 : index
    %12 = vector.load %arg1[%c0_8, %c0_9] : memref<16x1xi32, #tpu.memory_space<vmem>>, vector<16x1xi32>
    %13 = tpu.iota {dimensions = array<i32: 1>} : vector<16x64xi32>
    %14 = vector.broadcast %12 : vector<16x1xi32> to vector<16x64xi32>
    %15 = arith.cmpi eq, %13, %14 : vector<16x64xi32>
    %cst_10 = arith.constant 1.000000e+00 : f32
    %cst_11 = arith.constant 0.000000e+00 : f32
    %16 = vector.broadcast %cst_10 : f32 to vector<16x64xf32>
    %17 = vector.broadcast %cst_11 : f32 to vector<16x64xf32>
    %18 = arith.select %15, %16, %17 : vector<16x64xi1>, vector<16x64xf32>
    %19 = arith.truncf %18 : vector<16x64xf32> to vector<16x64xbf16>
    %20 = arith.truncf %11 : vector<64x32xf32> to vector<64x32xbf16>
    %cst_12 = arith.constant dense<0.000000e+00> : vector<16x32xf32>
    %21 = tpu.matmul %19, %20, %cst_12 {dimension_numbers = #tpu.dot_dimension_numbers<[1], [0], [0], [1], [0, 0, 1, 1], [], []>} : vector<16x64xbf16>, vector<64x32xbf16>, vector<16x32xf32> -> vector<16x32xf32>
    %c0_13 = arith.constant 0 : index
    %c0_14 = arith.constant 0 : index
    %22 = vector.load %arg4[%c0_13, %c0_14] : memref<64x16xf32, #tpu.memory_space<vmem>>, vector<64x16xf32>
    %23 = arith.truncf %22 : vector<64x16xf32> to vector<64x16xbf16>
    %cst_15 = arith.constant dense<0.000000e+00> : vector<16x16xf32>
    %24 = tpu.matmul %19, %23, %cst_15 {dimension_numbers = #tpu.dot_dimension_numbers<[1], [0], [0], [1], [0, 0, 1, 1], [], []>} : vector<16x64xbf16>, vector<64x16xbf16>, vector<16x16xf32> -> vector<16x16xf32>
    %c0_16 = arith.constant 0 : index
    %c0_17 = arith.constant 0 : index
    %25 = vector.load %arg6[%c0_16, %c0_17] : memref<16x8xf32, #tpu.memory_space<vmem>>, vector<16x8xf32>
    %c0_18 = arith.constant 0 : index
    %c0_19 = arith.constant 0 : index
    %26 = vector.load %arg7[%c0_18, %c0_19] : memref<16x8xf32, #tpu.memory_space<vmem>>, vector<16x8xf32>
    %27 = tpu.concatenate %21, %25, %24, %26 in 1 : vector<16x32xf32>, vector<16x8xf32>, vector<16x16xf32>, vector<16x8xf32> -> vector<16x64xf32>
    %28 = arith.truncf %27 : vector<16x64xf32> to vector<16x64xbf16>
    %c0_20 = arith.constant 0 : index
    %c0_21 = arith.constant 0 : index
    %29 = vector.load %arg8[%c0_20, %c0_21] : memref<64x512xbf16, #tpu.memory_space<vmem>>, vector<64x512xbf16>
    %cst_22 = arith.constant dense<0.000000e+00> : vector<16x512xf32>
    %30 = tpu.matmul %28, %29, %cst_22 {dimension_numbers = #tpu.dot_dimension_numbers<[1], [0], [0], [1], [0, 0, 1, 1], [], []>} : vector<16x64xbf16>, vector<64x512xbf16>, vector<16x512xf32> -> vector<16x512xf32>
    %c0_23 = arith.constant 0 : index
    %c0_24 = arith.constant 0 : index
    %31 = vector.load %arg9[%c0_23, %c0_24] : memref<1x512xf32, #tpu.memory_space<vmem>>, vector<1x512xf32>
    %32 = vector.broadcast %31 : vector<1x512xf32> to vector<16x512xf32>
    %33 = arith.addf %30, %32 : vector<16x512xf32>
    %cst_25 = arith.constant 0.000000e+00 : f32
    %34 = vector.broadcast %cst_25 : f32 to vector<2x128xf32>
    %cst_26 = arith.constant 0.000000e+00 : f32
    %35 = vector.broadcast %cst_26 : f32 to vector<2x128xf32>
    %false = arith.constant false
    %36 = vector.broadcast %false : i1 to vector<2x128xi1>
    %37 = tpu.iota {dimensions = array<i32: 1>} : vector<2x128xi32>
    %c0_i32 = arith.constant 0 : i32
    %38 = vector.broadcast %c0_i32 : i32 to vector<2x128xi32>
    %39 = arith.cmpi eq, %37, %38 : vector<2x128xi32>
    %c0_27 = arith.constant 0 : index
    %c0_28 = arith.constant 0 : index
    %40 = vector.load %arg12[%c0_27, %c0_28] : memref<1x128xf32, #tpu.memory_space<vmem>>, vector<1x128xf32>
    %41 = vector.extract_strided_slice %33 {offsets = [0, 0], sizes = [2, 512], strides = [1, 1]} : vector<16x512xf32> to vector<2x512xf32>
    %42 = arith.truncf %34 : vector<2x128xf32> to vector<2x128xbf16>
    %c0_29 = arith.constant 0 : index
    %c0_30 = arith.constant 0 : index
    %43 = vector.load %arg10[%c0_29, %c0_30] : memref<128x512xbf16, #tpu.memory_space<vmem>>, vector<128x512xbf16>
    %cst_31 = arith.constant dense<0.000000e+00> : vector<2x512xf32>
    %44 = tpu.matmul %42, %43, %cst_31 {dimension_numbers = #tpu.dot_dimension_numbers<[1], [0], [0], [1], [0, 0, 1, 1], [], []>} : vector<2x128xbf16>, vector<128x512xbf16>, vector<2x512xf32> -> vector<2x512xf32>
    %45 = arith.addf %41, %44 : vector<2x512xf32>
    %46 = vector.extract_strided_slice %45 {offsets = [0, 0], sizes = [2, 128], strides = [1, 1]} : vector<2x512xf32> to vector<2x128xf32>
    %cst_32 = arith.constant 0.000000e+00 : f32
    %47 = vector.broadcast %cst_32 : f32 to vector<2x128xf32>
    %48 = arith.subf %47, %46 : vector<2x128xf32>
    %49 = math.exp %48 : vector<2x128xf32>
    %cst_33 = arith.constant 1.000000e+00 : f32
    %50 = vector.broadcast %cst_33 : f32 to vector<2x128xf32>
    %51 = arith.addf %50, %49 : vector<2x128xf32>
    %cst_34 = arith.constant 1.000000e+00 : f32
    %52 = vector.broadcast %cst_34 : f32 to vector<2x128xf32>
    %53 = arith.divf %52, %51 : vector<2x128xf32>
    %54 = vector.extract_strided_slice %45 {offsets = [0, 128], sizes = [2, 128], strides = [1, 1]} : vector<2x512xf32> to vector<2x128xf32>
    %cst_35 = arith.constant 0.000000e+00 : f32
    %55 = vector.broadcast %cst_35 : f32 to vector<2x128xf32>
    %56 = arith.subf %55, %54 : vector<2x128xf32>
    %57 = math.exp %56 : vector<2x128xf32>
    %cst_36 = arith.constant 1.000000e+00 : f32
    %58 = vector.broadcast %cst_36 : f32 to vector<2x128xf32>
    %59 = arith.addf %58, %57 : vector<2x128xf32>
    %cst_37 = arith.constant 1.000000e+00 : f32
    %60 = vector.broadcast %cst_37 : f32 to vector<2x128xf32>
    %61 = arith.divf %60, %59 : vector<2x128xf32>
    %62 = vector.extract_strided_slice %45 {offsets = [0, 256], sizes = [2, 128], strides = [1, 1]} : vector<2x512xf32> to vector<2x128xf32>
    %63 = math.tanh %62 : vector<2x128xf32>
    %64 = vector.extract_strided_slice %45 {offsets = [0, 384], sizes = [2, 128], strides = [1, 1]} : vector<2x512xf32> to vector<2x128xf32>
    %cst_38 = arith.constant 0.000000e+00 : f32
    %65 = vector.broadcast %cst_38 : f32 to vector<2x128xf32>
    %66 = arith.subf %65, %64 : vector<2x128xf32>
    %67 = math.exp %66 : vector<2x128xf32>
    %cst_39 = arith.constant 1.000000e+00 : f32
    %68 = vector.broadcast %cst_39 : f32 to vector<2x128xf32>
    %69 = arith.addf %68, %67 : vector<2x128xf32>
    %cst_40 = arith.constant 1.000000e+00 : f32
    %70 = vector.broadcast %cst_40 : f32 to vector<2x128xf32>
    %71 = arith.divf %70, %69 : vector<2x128xf32>
    %72 = arith.mulf %61, %35 : vector<2x128xf32>
    %73 = arith.mulf %53, %63 : vector<2x128xf32>
    %74 = arith.addf %72, %73 : vector<2x128xf32>
    %75 = math.tanh %74 : vector<2x128xf32>
    %76 = arith.mulf %71, %75 : vector<2x128xf32>
    %77 = vector.extract_strided_slice %12 {offsets = [0, 0], sizes = [2, 1], strides = [1, 1]} : vector<16x1xi32> to vector<2x1xi32>
    %78 = vector.broadcast %77 : vector<2x1xi32> to vector<2x128xi32>
    %79 = arith.cmpi eq, %37, %78 : vector<2x128xi32>
    %80 = arith.ori %36, %79 : vector<2x128xi1>
    %81 = arith.ori %80, %39 : vector<2x128xi1>
    %cst_41 = arith.constant 0xFF800000 : f32
    %cst_42 = arith.constant 0.000000e+00 : f32
    %82 = vector.broadcast %cst_41 : f32 to vector<2x128xf32>
    %83 = vector.broadcast %cst_42 : f32 to vector<2x128xf32>
    %84 = arith.select %81, %82, %83 : vector<2x128xi1>, vector<2x128xf32>
    %85 = arith.truncf %76 : vector<2x128xf32> to vector<2x128xbf16>
    %c0_43 = arith.constant 0 : index
    %c0_44 = arith.constant 0 : index
    %86 = vector.load %arg11[%c0_43, %c0_44] : memref<128x128xbf16, #tpu.memory_space<vmem>>, vector<128x128xbf16>
    %cst_45 = arith.constant dense<0.000000e+00> : vector<2x128xf32>
    %87 = tpu.matmul %85, %86, %cst_45 {dimension_numbers = #tpu.dot_dimension_numbers<[1], [0], [0], [1], [0, 0, 1, 1], [], []>} : vector<2x128xbf16>, vector<128x128xbf16>, vector<2x128xf32> -> vector<2x128xf32>
    %88 = vector.broadcast %40 : vector<1x128xf32> to vector<2x128xf32>
    %89 = arith.addf %87, %88 : vector<2x128xf32>
    %90 = arith.addf %89, %84 : vector<2x128xf32>
    %91 = vector.extract_strided_slice %90 {offsets = [0, 0], sizes = [1, 128], strides = [1, 1]} : vector<2x128xf32> to vector<1x128xf32>
    %c0_46 = arith.constant 0 : index
    %c0_47 = arith.constant 0 : index
    %92 = vector.load %arg13[%c0_46, %c0_47] : memref<16x128xf32, #tpu.memory_space<vmem>>, vector<1x128xf32>
    tpu.vector_store %arg13[%c0_46, %c0_47], %91 {strides = array<i32>} : memref<16x128xf32, #tpu.memory_space<vmem>>, vector<1x128xf32>,
    %93 = vector.extract_strided_slice %90 {offsets = [1, 0], sizes = [1, 128], strides = [1, 1]} : vector<2x128xf32> to vector<1x128xf32>
    %c8 = arith.constant 8 : index
    %c0_48 = arith.constant 0 : index
    %94 = vector.load %arg13[%c8, %c0_48] : memref<16x128xf32, #tpu.memory_space<vmem>>, vector<1x128xf32>
    tpu.vector_store %arg13[%c8, %c0_48], %93 {strides = array<i32>} : memref<16x128xf32, #tpu.memory_space<vmem>>, vector<1x128xf32>,
    %95 = vector.extract_strided_slice %33 {offsets = [2, 0], sizes = [2, 512], strides = [1, 1]} : vector<16x512xf32> to vector<2x512xf32>
    %96 = arith.truncf %76 : vector<2x128xf32> to vector<2x128xbf16>
    %c0_49 = arith.constant 0 : index
    %c0_50 = arith.constant 0 : index
    %97 = vector.load %arg10[%c0_49, %c0_50] : memref<128x512xbf16, #tpu.memory_space<vmem>>, vector<128x512xbf16>
    %cst_51 = arith.constant dense<0.000000e+00> : vector<2x512xf32>
    %98 = tpu.matmul %96, %97, %cst_51 {dimension_numbers = #tpu.dot_dimension_numbers<[1], [0], [0], [1], [0, 0, 1, 1], [], []>} : vector<2x128xbf16>, vector<128x512xbf16>, vector<2x512xf32> -> vector<2x512xf32>
    %99 = arith.addf %95, %98 : vector<2x512xf32>
    %100 = vector.extract_strided_slice %99 {offsets = [0, 0], sizes = [2, 128], strides = [1, 1]} : vector<2x512xf32> to vector<2x128xf32>
    %cst_52 = arith.constant 0.000000e+00 : f32
    %101 = vector.broadcast %cst_52 : f32 to vector<2x128xf32>
    %102 = arith.subf %101, %100 : vector<2x128xf32>
    %103 = math.exp %102 : vector<2x128xf32>
    %cst_53 = arith.constant 1.000000e+00 : f32
    %104 = vector.broadcast %cst_53 : f32 to vector<2x128xf32>
    %105 = arith.addf %104, %103 : vector<2x128xf32>
    %cst_54 = arith.constant 1.000000e+00 : f32
    %106 = vector.broadcast %cst_54 : f32 to vector<2x128xf32>
    %107 = arith.divf %106, %105 : vector<2x128xf32>
    %108 = vector.extract_strided_slice %99 {offsets = [0, 128], sizes = [2, 128], strides = [1, 1]} : vector<2x512xf32> to vector<2x128xf32>
    %cst_55 = arith.constant 0.000000e+00 : f32
    %109 = vector.broadcast %cst_55 : f32 to vector<2x128xf32>
    %110 = arith.subf %109, %108 : vector<2x128xf32>
    %111 = math.exp %110 : vector<2x128xf32>
    %cst_56 = arith.constant 1.000000e+00 : f32
    %112 = vector.broadcast %cst_56 : f32 to vector<2x128xf32>
    %113 = arith.addf %112, %111 : vector<2x128xf32>
    %cst_57 = arith.constant 1.000000e+00 : f32
    %114 = vector.broadcast %cst_57 : f32 to vector<2x128xf32>
    %115 = arith.divf %114, %113 : vector<2x128xf32>
    %116 = vector.extract_strided_slice %99 {offsets = [0, 256], sizes = [2, 128], strides = [1, 1]} : vector<2x512xf32> to vector<2x128xf32>
    %117 = math.tanh %116 : vector<2x128xf32>
    %118 = vector.extract_strided_slice %99 {offsets = [0, 384], sizes = [2, 128], strides = [1, 1]} : vector<2x512xf32> to vector<2x128xf32>
    %cst_58 = arith.constant 0.000000e+00 : f32
    %119 = vector.broadcast %cst_58 : f32 to vector<2x128xf32>
    %120 = arith.subf %119, %118 : vector<2x128xf32>
    %121 = math.exp %120 : vector<2x128xf32>
    %cst_59 = arith.constant 1.000000e+00 : f32
    %122 = vector.broadcast %cst_59 : f32 to vector<2x128xf32>
    %123 = arith.addf %122, %121 : vector<2x128xf32>
    %cst_60 = arith.constant 1.000000e+00 : f32
    %124 = vector.broadcast %cst_60 : f32 to vector<2x128xf32>
    %125 = arith.divf %124, %123 : vector<2x128xf32>
    %126 = arith.mulf %115, %74 : vector<2x128xf32>
    %127 = arith.mulf %107, %117 : vector<2x128xf32>
    %128 = arith.addf %126, %127 : vector<2x128xf32>
    %129 = math.tanh %128 : vector<2x128xf32>
    %130 = arith.mulf %125, %129 : vector<2x128xf32>
    %131 = vector.extract_strided_slice %12 {offsets = [2, 0], sizes = [2, 1], strides = [1, 1]} : vector<16x1xi32> to vector<2x1xi32>
    %132 = vector.broadcast %131 : vector<2x1xi32> to vector<2x128xi32>
    %133 = arith.cmpi eq, %37, %132 : vector<2x128xi32>
    %134 = arith.ori %80, %133 : vector<2x128xi1>
    %135 = arith.ori %134, %39 : vector<2x128xi1>
    %cst_61 = arith.constant 0xFF800000 : f32
    %cst_62 = arith.constant 0.000000e+00 : f32
    %136 = vector.broadcast %cst_61 : f32 to vector<2x128xf32>
    %137 = vector.broadcast %cst_62 : f32 to vector<2x128xf32>
    %138 = arith.select %135, %136, %137 : vector<2x128xi1>, vector<2x128xf32>
    %139 = arith.truncf %130 : vector<2x128xf32> to vector<2x128xbf16>
    %c0_63 = arith.constant 0 : index
    %c0_64 = arith.constant 0 : index
    %140 = vector.load %arg11[%c0_63, %c0_64] : memref<128x128xbf16, #tpu.memory_space<vmem>>, vector<128x128xbf16>
    %cst_65 = arith.constant dense<0.000000e+00> : vector<2x128xf32>
    %141 = tpu.matmul %139, %140, %cst_65 {dimension_numbers = #tpu.dot_dimension_numbers<[1], [0], [0], [1], [0, 0, 1, 1], [], []>} : vector<2x128xbf16>, vector<128x128xbf16>, vector<2x128xf32> -> vector<2x128xf32>
    %142 = vector.broadcast %40 : vector<1x128xf32> to vector<2x128xf32>
    %143 = arith.addf %141, %142 : vector<2x128xf32>
    %144 = arith.addf %143, %138 : vector<2x128xf32>
    %145 = vector.extract_strided_slice %144 {offsets = [0, 0], sizes = [1, 128], strides = [1, 1]} : vector<2x128xf32> to vector<1x128xf32>
    %c1 = arith.constant 1 : index
    %c0_66 = arith.constant 0 : index
    %146 = vector.load %arg13[%c1, %c0_66] : memref<16x128xf32, #tpu.memory_space<vmem>>, vector<1x128xf32>
    tpu.vector_store %arg13[%c1, %c0_66], %145 {strides = array<i32>} : memref<16x128xf32, #tpu.memory_space<vmem>>, vector<1x128xf32>,
    %147 = vector.extract_strided_slice %144 {offsets = [1, 0], sizes = [1, 128], strides = [1, 1]} : vector<2x128xf32> to vector<1x128xf32>
    %c9 = arith.constant 9 : index
    %c0_67 = arith.constant 0 : index
    %148 = vector.load %arg13[%c9, %c0_67] : memref<16x128xf32, #tpu.memory_space<vmem>>, vector<1x128xf32>
    tpu.vector_store %arg13[%c9, %c0_67], %147 {strides = array<i32>} : memref<16x128xf32, #tpu.memory_space<vmem>>, vector<1x128xf32>,
    %149 = vector.extract_strided_slice %33 {offsets = [4, 0], sizes = [2, 512], strides = [1, 1]} : vector<16x512xf32> to vector<2x512xf32>
    %150 = arith.truncf %130 : vector<2x128xf32> to vector<2x128xbf16>
    %c0_68 = arith.constant 0 : index
    %c0_69 = arith.constant 0 : index
    %151 = vector.load %arg10[%c0_68, %c0_69] : memref<128x512xbf16, #tpu.memory_space<vmem>>, vector<128x512xbf16>
    %cst_70 = arith.constant dense<0.000000e+00> : vector<2x512xf32>
    %152 = tpu.matmul %150, %151, %cst_70 {dimension_numbers = #tpu.dot_dimension_numbers<[1], [0], [0], [1], [0, 0, 1, 1], [], []>} : vector<2x128xbf16>, vector<128x512xbf16>, vector<2x512xf32> -> vector<2x512xf32>
    %153 = arith.addf %149, %152 : vector<2x512xf32>
    %154 = vector.extract_strided_slice %153 {offsets = [0, 0], sizes = [2, 128], strides = [1, 1]} : vector<2x512xf32> to vector<2x128xf32>
    %cst_71 = arith.constant 0.000000e+00 : f32
    %155 = vector.broadcast %cst_71 : f32 to vector<2x128xf32>
    %156 = arith.subf %155, %154 : vector<2x128xf32>
    %157 = math.exp %156 : vector<2x128xf32>
    %cst_72 = arith.constant 1.000000e+00 : f32
    %158 = vector.broadcast %cst_72 : f32 to vector<2x128xf32>
    %159 = arith.addf %158, %157 : vector<2x128xf32>
    %cst_73 = arith.constant 1.000000e+00 : f32
    %160 = vector.broadcast %cst_73 : f32 to vector<2x128xf32>
    %161 = arith.divf %160, %159 : vector<2x128xf32>
    %162 = vector.extract_strided_slice %153 {offsets = [0, 128], sizes = [2, 128], strides = [1, 1]} : vector<2x512xf32> to vector<2x128xf32>
    %cst_74 = arith.constant 0.000000e+00 : f32
    %163 = vector.broadcast %cst_74 : f32 to vector<2x128xf32>
    %164 = arith.subf %163, %162 : vector<2x128xf32>
    %165 = math.exp %164 : vector<2x128xf32>
    %cst_75 = arith.constant 1.000000e+00 : f32
    %166 = vector.broadcast %cst_75 : f32 to vector<2x128xf32>
    %167 = arith.addf %166, %165 : vector<2x128xf32>
    %cst_76 = arith.constant 1.000000e+00 : f32
    %168 = vector.broadcast %cst_76 : f32 to vector<2x128xf32>
    %169 = arith.divf %168, %167 : vector<2x128xf32>
    %170 = vector.extract_strided_slice %153 {offsets = [0, 256], sizes = [2, 128], strides = [1, 1]} : vector<2x512xf32> to vector<2x128xf32>
    %171 = math.tanh %170 : vector<2x128xf32>
    %172 = vector.extract_strided_slice %153 {offsets = [0, 384], sizes = [2, 128], strides = [1, 1]} : vector<2x512xf32> to vector<2x128xf32>
    %cst_77 = arith.constant 0.000000e+00 : f32
    %173 = vector.broadcast %cst_77 : f32 to vector<2x128xf32>
    %174 = arith.subf %173, %172 : vector<2x128xf32>
    %175 = math.exp %174 : vector<2x128xf32>
    %cst_78 = arith.constant 1.000000e+00 : f32
    %176 = vector.broadcast %cst_78 : f32 to vector<2x128xf32>
    %177 = arith.addf %176, %175 : vector<2x128xf32>
    %cst_79 = arith.constant 1.000000e+00 : f32
    %178 = vector.broadcast %cst_79 : f32 to vector<2x128xf32>
    %179 = arith.divf %178, %177 : vector<2x128xf32>
    %180 = arith.mulf %169, %128 : vector<2x128xf32>
    %181 = arith.mulf %161, %171 : vector<2x128xf32>
    %182 = arith.addf %180, %181 : vector<2x128xf32>
    %183 = math.tanh %182 : vector<2x128xf32>
    %184 = arith.mulf %179, %183 : vector<2x128xf32>
    %185 = vector.extract_strided_slice %12 {offsets = [4, 0], sizes = [2, 1], strides = [1, 1]} : vector<16x1xi32> to vector<2x1xi32>
    %186 = vector.broadcast %185 : vector<2x1xi32> to vector<2x128xi32>
    %187 = arith.cmpi eq, %37, %186 : vector<2x128xi32>
    %188 = arith.ori %134, %187 : vector<2x128xi1>
    %189 = arith.ori %188, %39 : vector<2x128xi1>
    %cst_80 = arith.constant 0xFF800000 : f32
    %cst_81 = arith.constant 0.000000e+00 : f32
    %190 = vector.broadcast %cst_80 : f32 to vector<2x128xf32>
    %191 = vector.broadcast %cst_81 : f32 to vector<2x128xf32>
    %192 = arith.select %189, %190, %191 : vector<2x128xi1>, vector<2x128xf32>
    %193 = arith.truncf %184 : vector<2x128xf32> to vector<2x128xbf16>
    %c0_82 = arith.constant 0 : index
    %c0_83 = arith.constant 0 : index
    %194 = vector.load %arg11[%c0_82, %c0_83] : memref<128x128xbf16, #tpu.memory_space<vmem>>, vector<128x128xbf16>
    %cst_84 = arith.constant dense<0.000000e+00> : vector<2x128xf32>
    %195 = tpu.matmul %193, %194, %cst_84 {dimension_numbers = #tpu.dot_dimension_numbers<[1], [0], [0], [1], [0, 0, 1, 1], [], []>} : vector<2x128xbf16>, vector<128x128xbf16>, vector<2x128xf32> -> vector<2x128xf32>
    %196 = vector.broadcast %40 : vector<1x128xf32> to vector<2x128xf32>
    %197 = arith.addf %195, %196 : vector<2x128xf32>
    %198 = arith.addf %197, %192 : vector<2x128xf32>
    %199 = vector.extract_strided_slice %198 {offsets = [0, 0], sizes = [1, 128], strides = [1, 1]} : vector<2x128xf32> to vector<1x128xf32>
    %c2 = arith.constant 2 : index
    %c0_85 = arith.constant 0 : index
    %200 = vector.load %arg13[%c2, %c0_85] : memref<16x128xf32, #tpu.memory_space<vmem>>, vector<1x128xf32>
    tpu.vector_store %arg13[%c2, %c0_85], %199 {strides = array<i32>} : memref<16x128xf32, #tpu.memory_space<vmem>>, vector<1x128xf32>,
    %201 = vector.extract_strided_slice %198 {offsets = [1, 0], sizes = [1, 128], strides = [1, 1]} : vector<2x128xf32> to vector<1x128xf32>
    %c10 = arith.constant 10 : index
    %c0_86 = arith.constant 0 : index
    %202 = vector.load %arg13[%c10, %c0_86] : memref<16x128xf32, #tpu.memory_space<vmem>>, vector<1x128xf32>
    tpu.vector_store %arg13[%c10, %c0_86], %201 {strides = array<i32>} : memref<16x128xf32, #tpu.memory_space<vmem>>, vector<1x128xf32>,
    %203 = vector.extract_strided_slice %33 {offsets = [6, 0], sizes = [2, 512], strides = [1, 1]} : vector<16x512xf32> to vector<2x512xf32>
    %204 = arith.truncf %184 : vector<2x128xf32> to vector<2x128xbf16>
    %c0_87 = arith.constant 0 : index
    %c0_88 = arith.constant 0 : index
    %205 = vector.load %arg10[%c0_87, %c0_88] : memref<128x512xbf16, #tpu.memory_space<vmem>>, vector<128x512xbf16>
    %cst_89 = arith.constant dense<0.000000e+00> : vector<2x512xf32>
    %206 = tpu.matmul %204, %205, %cst_89 {dimension_numbers = #tpu.dot_dimension_numbers<[1], [0], [0], [1], [0, 0, 1, 1], [], []>} : vector<2x128xbf16>, vector<128x512xbf16>, vector<2x512xf32> -> vector<2x512xf32>
    %207 = arith.addf %203, %206 : vector<2x512xf32>
    %208 = vector.extract_strided_slice %207 {offsets = [0, 0], sizes = [2, 128], strides = [1, 1]} : vector<2x512xf32> to vector<2x128xf32>
    %cst_90 = arith.constant 0.000000e+00 : f32
    %209 = vector.broadcast %cst_90 : f32 to vector<2x128xf32>
    %210 = arith.subf %209, %208 : vector<2x128xf32>
    %211 = math.exp %210 : vector<2x128xf32>
    %cst_91 = arith.constant 1.000000e+00 : f32
    %212 = vector.broadcast %cst_91 : f32 to vector<2x128xf32>
    %213 = arith.addf %212, %211 : vector<2x128xf32>
    %cst_92 = arith.constant 1.000000e+00 : f32
    %214 = vector.broadcast %cst_92 : f32 to vector<2x128xf32>
    %215 = arith.divf %214, %213 : vector<2x128xf32>
    %216 = vector.extract_strided_slice %207 {offsets = [0, 128], sizes = [2, 128], strides = [1, 1]} : vector<2x512xf32> to vector<2x128xf32>
    %cst_93 = arith.constant 0.000000e+00 : f32
    %217 = vector.broadcast %cst_93 : f32 to vector<2x128xf32>
    %218 = arith.subf %217, %216 : vector<2x128xf32>
    %219 = math.exp %218 : vector<2x128xf32>
    %cst_94 = arith.constant 1.000000e+00 : f32
    %220 = vector.broadcast %cst_94 : f32 to vector<2x128xf32>
    %221 = arith.addf %220, %219 : vector<2x128xf32>
    %cst_95 = arith.constant 1.000000e+00 : f32
    %222 = vector.broadcast %cst_95 : f32 to vector<2x128xf32>
    %223 = arith.divf %222, %221 : vector<2x128xf32>
    %224 = vector.extract_strided_slice %207 {offsets = [0, 256], sizes = [2, 128], strides = [1, 1]} : vector<2x512xf32> to vector<2x128xf32>
    %225 = math.tanh %224 : vector<2x128xf32>
    %226 = vector.extract_strided_slice %207 {offsets = [0, 384], sizes = [2, 128], strides = [1, 1]} : vector<2x512xf32> to vector<2x128xf32>
    %cst_96 = arith.constant 0.000000e+00 : f32
    %227 = vector.broadcast %cst_96 : f32 to vector<2x128xf32>
    %228 = arith.subf %227, %226 : vector<2x128xf32>
    %229 = math.exp %228 : vector<2x128xf32>
    %cst_97 = arith.constant 1.000000e+00 : f32
    %230 = vector.broadcast %cst_97 : f32 to vector<2x128xf32>
    %231 = arith.addf %230, %229 : vector<2x128xf32>
    %cst_98 = arith.constant 1.000000e+00 : f32
    %232 = vector.broadcast %cst_98 : f32 to vector<2x128xf32>
    %233 = arith.divf %232, %231 : vector<2x128xf32>
    %234 = arith.mulf %223, %182 : vector<2x128xf32>
    %235 = arith.mulf %215, %225 : vector<2x128xf32>
    %236 = arith.addf %234, %235 : vector<2x128xf32>
    %237 = math.tanh %236 : vector<2x128xf32>
    %238 = arith.mulf %233, %237 : vector<2x128xf32>
    %239 = vector.extract_strided_slice %12 {offsets = [6, 0], sizes = [2, 1], strides = [1, 1]} : vector<16x1xi32> to vector<2x1xi32>
    %240 = vector.broadcast %239 : vector<2x1xi32> to vector<2x128xi32>
    %241 = arith.cmpi eq, %37, %240 : vector<2x128xi32>
    %242 = arith.ori %188, %241 : vector<2x128xi1>
    %243 = arith.ori %242, %39 : vector<2x128xi1>
    %cst_99 = arith.constant 0xFF800000 : f32
    %cst_100 = arith.constant 0.000000e+00 : f32
    %244 = vector.broadcast %cst_99 : f32 to vector<2x128xf32>
    %245 = vector.broadcast %cst_100 : f32 to vector<2x128xf32>
    %246 = arith.select %243, %244, %245 : vector<2x128xi1>, vector<2x128xf32>
    %247 = arith.truncf %238 : vector<2x128xf32> to vector<2x128xbf16>
    %c0_101 = arith.constant 0 : index
    %c0_102 = arith.constant 0 : index
    %248 = vector.load %arg11[%c0_101, %c0_102] : memref<128x128xbf16, #tpu.memory_space<vmem>>, vector<128x128xbf16>
    %cst_103 = arith.constant dense<0.000000e+00> : vector<2x128xf32>
    %249 = tpu.matmul %247, %248, %cst_103 {dimension_numbers = #tpu.dot_dimension_numbers<[1], [0], [0], [1], [0, 0, 1, 1], [], []>} : vector<2x128xbf16>, vector<128x128xbf16>, vector<2x128xf32> -> vector<2x128xf32>
    %250 = vector.broadcast %40 : vector<1x128xf32> to vector<2x128xf32>
    %251 = arith.addf %249, %250 : vector<2x128xf32>
    %252 = arith.addf %251, %246 : vector<2x128xf32>
    %253 = vector.extract_strided_slice %252 {offsets = [0, 0], sizes = [1, 128], strides = [1, 1]} : vector<2x128xf32> to vector<1x128xf32>
    %c3 = arith.constant 3 : index
    %c0_104 = arith.constant 0 : index
    %254 = vector.load %arg13[%c3, %c0_104] : memref<16x128xf32, #tpu.memory_space<vmem>>, vector<1x128xf32>
    tpu.vector_store %arg13[%c3, %c0_104], %253 {strides = array<i32>} : memref<16x128xf32, #tpu.memory_space<vmem>>, vector<1x128xf32>,
    %255 = vector.extract_strided_slice %252 {offsets = [1, 0], sizes = [1, 128], strides = [1, 1]} : vector<2x128xf32> to vector<1x128xf32>
    %c11 = arith.constant 11 : index
    %c0_105 = arith.constant 0 : index
    %256 = vector.load %arg13[%c11, %c0_105] : memref<16x128xf32, #tpu.memory_space<vmem>>, vector<1x128xf32>
    tpu.vector_store %arg13[%c11, %c0_105], %255 {strides = array<i32>} : memref<16x128xf32, #tpu.memory_space<vmem>>, vector<1x128xf32>,
    %257 = vector.extract_strided_slice %33 {offsets = [8, 0], sizes = [2, 512], strides = [1, 1]} : vector<16x512xf32> to vector<2x512xf32>
    %258 = arith.truncf %238 : vector<2x128xf32> to vector<2x128xbf16>
    %c0_106 = arith.constant 0 : index
    %c0_107 = arith.constant 0 : index
    %259 = vector.load %arg10[%c0_106, %c0_107] : memref<128x512xbf16, #tpu.memory_space<vmem>>, vector<128x512xbf16>
    %cst_108 = arith.constant dense<0.000000e+00> : vector<2x512xf32>
    %260 = tpu.matmul %258, %259, %cst_108 {dimension_numbers = #tpu.dot_dimension_numbers<[1], [0], [0], [1], [0, 0, 1, 1], [], []>} : vector<2x128xbf16>, vector<128x512xbf16>, vector<2x512xf32> -> vector<2x512xf32>
    %261 = arith.addf %257, %260 : vector<2x512xf32>
    %262 = vector.extract_strided_slice %261 {offsets = [0, 0], sizes = [2, 128], strides = [1, 1]} : vector<2x512xf32> to vector<2x128xf32>
    %cst_109 = arith.constant 0.000000e+00 : f32
    %263 = vector.broadcast %cst_109 : f32 to vector<2x128xf32>
    %264 = arith.subf %263, %262 : vector<2x128xf32>
    %265 = math.exp %264 : vector<2x128xf32>
    %cst_110 = arith.constant 1.000000e+00 : f32
    %266 = vector.broadcast %cst_110 : f32 to vector<2x128xf32>
    %267 = arith.addf %266, %265 : vector<2x128xf32>
    %cst_111 = arith.constant 1.000000e+00 : f32
    %268 = vector.broadcast %cst_111 : f32 to vector<2x128xf32>
    %269 = arith.divf %268, %267 : vector<2x128xf32>
    %270 = vector.extract_strided_slice %261 {offsets = [0, 128], sizes = [2, 128], strides = [1, 1]} : vector<2x512xf32> to vector<2x128xf32>
    %cst_112 = arith.constant 0.000000e+00 : f32
    %271 = vector.broadcast %cst_112 : f32 to vector<2x128xf32>
    %272 = arith.subf %271, %270 : vector<2x128xf32>
    %273 = math.exp %272 : vector<2x128xf32>
    %cst_113 = arith.constant 1.000000e+00 : f32
    %274 = vector.broadcast %cst_113 : f32 to vector<2x128xf32>
    %275 = arith.addf %274, %273 : vector<2x128xf32>
    %cst_114 = arith.constant 1.000000e+00 : f32
    %276 = vector.broadcast %cst_114 : f32 to vector<2x128xf32>
    %277 = arith.divf %276, %275 : vector<2x128xf32>
    %278 = vector.extract_strided_slice %261 {offsets = [0, 256], sizes = [2, 128], strides = [1, 1]} : vector<2x512xf32> to vector<2x128xf32>
    %279 = math.tanh %278 : vector<2x128xf32>
    %280 = vector.extract_strided_slice %261 {offsets = [0, 384], sizes = [2, 128], strides = [1, 1]} : vector<2x512xf32> to vector<2x128xf32>
    %cst_115 = arith.constant 0.000000e+00 : f32
    %281 = vector.broadcast %cst_115 : f32 to vector<2x128xf32>
    %282 = arith.subf %281, %280 : vector<2x128xf32>
    %283 = math.exp %282 : vector<2x128xf32>
    %cst_116 = arith.constant 1.000000e+00 : f32
    %284 = vector.broadcast %cst_116 : f32 to vector<2x128xf32>
    %285 = arith.addf %284, %283 : vector<2x128xf32>
    %cst_117 = arith.constant 1.000000e+00 : f32
    %286 = vector.broadcast %cst_117 : f32 to vector<2x128xf32>
    %287 = arith.divf %286, %285 : vector<2x128xf32>
    %288 = arith.mulf %277, %236 : vector<2x128xf32>
    %289 = arith.mulf %269, %279 : vector<2x128xf32>
    %290 = arith.addf %288, %289 : vector<2x128xf32>
    %291 = math.tanh %290 : vector<2x128xf32>
    %292 = arith.mulf %287, %291 : vector<2x128xf32>
    %293 = vector.extract_strided_slice %12 {offsets = [8, 0], sizes = [2, 1], strides = [1, 1]} : vector<16x1xi32> to vector<2x1xi32>
    %294 = vector.broadcast %293 : vector<2x1xi32> to vector<2x128xi32>
    %295 = arith.cmpi eq, %37, %294 : vector<2x128xi32>
    %296 = arith.ori %242, %295 : vector<2x128xi1>
    %297 = arith.ori %296, %39 : vector<2x128xi1>
    %cst_118 = arith.constant 0xFF800000 : f32
    %cst_119 = arith.constant 0.000000e+00 : f32
    %298 = vector.broadcast %cst_118 : f32 to vector<2x128xf32>
    %299 = vector.broadcast %cst_119 : f32 to vector<2x128xf32>
    %300 = arith.select %297, %298, %299 : vector<2x128xi1>, vector<2x128xf32>
    %301 = arith.truncf %292 : vector<2x128xf32> to vector<2x128xbf16>
    %c0_120 = arith.constant 0 : index
    %c0_121 = arith.constant 0 : index
    %302 = vector.load %arg11[%c0_120, %c0_121] : memref<128x128xbf16, #tpu.memory_space<vmem>>, vector<128x128xbf16>
    %cst_122 = arith.constant dense<0.000000e+00> : vector<2x128xf32>
    %303 = tpu.matmul %301, %302, %cst_122 {dimension_numbers = #tpu.dot_dimension_numbers<[1], [0], [0], [1], [0, 0, 1, 1], [], []>} : vector<2x128xbf16>, vector<128x128xbf16>, vector<2x128xf32> -> vector<2x128xf32>
    %304 = vector.broadcast %40 : vector<1x128xf32> to vector<2x128xf32>
    %305 = arith.addf %303, %304 : vector<2x128xf32>
    %306 = arith.addf %305, %300 : vector<2x128xf32>
    %307 = vector.extract_strided_slice %306 {offsets = [0, 0], sizes = [1, 128], strides = [1, 1]} : vector<2x128xf32> to vector<1x128xf32>
    %c4 = arith.constant 4 : index
    %c0_123 = arith.constant 0 : index
    %308 = vector.load %arg13[%c4, %c0_123] : memref<16x128xf32, #tpu.memory_space<vmem>>, vector<1x128xf32>
    tpu.vector_store %arg13[%c4, %c0_123], %307 {strides = array<i32>} : memref<16x128xf32, #tpu.memory_space<vmem>>, vector<1x128xf32>,
    %309 = vector.extract_strided_slice %306 {offsets = [1, 0], sizes = [1, 128], strides = [1, 1]} : vector<2x128xf32> to vector<1x128xf32>
    %c12 = arith.constant 12 : index
    %c0_124 = arith.constant 0 : index
    %310 = vector.load %arg13[%c12, %c0_124] : memref<16x128xf32, #tpu.memory_space<vmem>>, vector<1x128xf32>
    tpu.vector_store %arg13[%c12, %c0_124], %309 {strides = array<i32>} : memref<16x128xf32, #tpu.memory_space<vmem>>, vector<1x128xf32>,
    %311 = vector.extract_strided_slice %33 {offsets = [10, 0], sizes = [2, 512], strides = [1, 1]} : vector<16x512xf32> to vector<2x512xf32>
    %312 = arith.truncf %292 : vector<2x128xf32> to vector<2x128xbf16>
    %c0_125 = arith.constant 0 : index
    %c0_126 = arith.constant 0 : index
    %313 = vector.load %arg10[%c0_125, %c0_126] : memref<128x512xbf16, #tpu.memory_space<vmem>>, vector<128x512xbf16>
    %cst_127 = arith.constant dense<0.000000e+00> : vector<2x512xf32>
    %314 = tpu.matmul %312, %313, %cst_127 {dimension_numbers = #tpu.dot_dimension_numbers<[1], [0], [0], [1], [0, 0, 1, 1], [], []>} : vector<2x128xbf16>, vector<128x512xbf16>, vector<2x512xf32> -> vector<2x512xf32>
    %315 = arith.addf %311, %314 : vector<2x512xf32>
    %316 = vector.extract_strided_slice %315 {offsets = [0, 0], sizes = [2, 128], strides = [1, 1]} : vector<2x512xf32> to vector<2x128xf32>
    %cst_128 = arith.constant 0.000000e+00 : f32
    %317 = vector.broadcast %cst_128 : f32 to vector<2x128xf32>
    %318 = arith.subf %317, %316 : vector<2x128xf32>
    %319 = math.exp %318 : vector<2x128xf32>
    %cst_129 = arith.constant 1.000000e+00 : f32
    %320 = vector.broadcast %cst_129 : f32 to vector<2x128xf32>
    %321 = arith.addf %320, %319 : vector<2x128xf32>
    %cst_130 = arith.constant 1.000000e+00 : f32
    %322 = vector.broadcast %cst_130 : f32 to vector<2x128xf32>
    %323 = arith.divf %322, %321 : vector<2x128xf32>
    %324 = vector.extract_strided_slice %315 {offsets = [0, 128], sizes = [2, 128], strides = [1, 1]} : vector<2x512xf32> to vector<2x128xf32>
    %cst_131 = arith.constant 0.000000e+00 : f32
    %325 = vector.broadcast %cst_131 : f32 to vector<2x128xf32>
    %326 = arith.subf %325, %324 : vector<2x128xf32>
    %327 = math.exp %326 : vector<2x128xf32>
    %cst_132 = arith.constant 1.000000e+00 : f32
    %328 = vector.broadcast %cst_132 : f32 to vector<2x128xf32>
    %329 = arith.addf %328, %327 : vector<2x128xf32>
    %cst_133 = arith.constant 1.000000e+00 : f32
    %330 = vector.broadcast %cst_133 : f32 to vector<2x128xf32>
    %331 = arith.divf %330, %329 : vector<2x128xf32>
    %332 = vector.extract_strided_slice %315 {offsets = [0, 256], sizes = [2, 128], strides = [1, 1]} : vector<2x512xf32> to vector<2x128xf32>
    %333 = math.tanh %332 : vector<2x128xf32>
    %334 = vector.extract_strided_slice %315 {offsets = [0, 384], sizes = [2, 128], strides = [1, 1]} : vector<2x512xf32> to vector<2x128xf32>
    %cst_134 = arith.constant 0.000000e+00 : f32
    %335 = vector.broadcast %cst_134 : f32 to vector<2x128xf32>
    %336 = arith.subf %335, %334 : vector<2x128xf32>
    %337 = math.exp %336 : vector<2x128xf32>
    %cst_135 = arith.constant 1.000000e+00 : f32
    %338 = vector.broadcast %cst_135 : f32 to vector<2x128xf32>
    %339 = arith.addf %338, %337 : vector<2x128xf32>
    %cst_136 = arith.constant 1.000000e+00 : f32
    %340 = vector.broadcast %cst_136 : f32 to vector<2x128xf32>
    %341 = arith.divf %340, %339 : vector<2x128xf32>
    %342 = arith.mulf %331, %290 : vector<2x128xf32>
    %343 = arith.mulf %323, %333 : vector<2x128xf32>
    %344 = arith.addf %342, %343 : vector<2x128xf32>
    %345 = math.tanh %344 : vector<2x128xf32>
    %346 = arith.mulf %341, %345 : vector<2x128xf32>
    %347 = vector.extract_strided_slice %12 {offsets = [10, 0], sizes = [2, 1], strides = [1, 1]} : vector<16x1xi32> to vector<2x1xi32>
    %348 = vector.broadcast %347 : vector<2x1xi32> to vector<2x128xi32>
    %349 = arith.cmpi eq, %37, %348 : vector<2x128xi32>
    %350 = arith.ori %296, %349 : vector<2x128xi1>
    %351 = arith.ori %350, %39 : vector<2x128xi1>
    %cst_137 = arith.constant 0xFF800000 : f32
    %cst_138 = arith.constant 0.000000e+00 : f32
    %352 = vector.broadcast %cst_137 : f32 to vector<2x128xf32>
    %353 = vector.broadcast %cst_138 : f32 to vector<2x128xf32>
    %354 = arith.select %351, %352, %353 : vector<2x128xi1>, vector<2x128xf32>
    %355 = arith.truncf %346 : vector<2x128xf32> to vector<2x128xbf16>
    %c0_139 = arith.constant 0 : index
    %c0_140 = arith.constant 0 : index
    %356 = vector.load %arg11[%c0_139, %c0_140] : memref<128x128xbf16, #tpu.memory_space<vmem>>, vector<128x128xbf16>
    %cst_141 = arith.constant dense<0.000000e+00> : vector<2x128xf32>
    %357 = tpu.matmul %355, %356, %cst_141 {dimension_numbers = #tpu.dot_dimension_numbers<[1], [0], [0], [1], [0, 0, 1, 1], [], []>} : vector<2x128xbf16>, vector<128x128xbf16>, vector<2x128xf32> -> vector<2x128xf32>
    %358 = vector.broadcast %40 : vector<1x128xf32> to vector<2x128xf32>
    %359 = arith.addf %357, %358 : vector<2x128xf32>
    %360 = arith.addf %359, %354 : vector<2x128xf32>
    %361 = vector.extract_strided_slice %360 {offsets = [0, 0], sizes = [1, 128], strides = [1, 1]} : vector<2x128xf32> to vector<1x128xf32>
    %c5 = arith.constant 5 : index
    %c0_142 = arith.constant 0 : index
    %362 = vector.load %arg13[%c5, %c0_142] : memref<16x128xf32, #tpu.memory_space<vmem>>, vector<1x128xf32>
    tpu.vector_store %arg13[%c5, %c0_142], %361 {strides = array<i32>} : memref<16x128xf32, #tpu.memory_space<vmem>>, vector<1x128xf32>,
    %363 = vector.extract_strided_slice %360 {offsets = [1, 0], sizes = [1, 128], strides = [1, 1]} : vector<2x128xf32> to vector<1x128xf32>
    %c13 = arith.constant 13 : index
    %c0_143 = arith.constant 0 : index
    %364 = vector.load %arg13[%c13, %c0_143] : memref<16x128xf32, #tpu.memory_space<vmem>>, vector<1x128xf32>
    tpu.vector_store %arg13[%c13, %c0_143], %363 {strides = array<i32>} : memref<16x128xf32, #tpu.memory_space<vmem>>, vector<1x128xf32>,
    %365 = vector.extract_strided_slice %33 {offsets = [12, 0], sizes = [2, 512], strides = [1, 1]} : vector<16x512xf32> to vector<2x512xf32>
    %366 = arith.truncf %346 : vector<2x128xf32> to vector<2x128xbf16>
    %c0_144 = arith.constant 0 : index
    %c0_145 = arith.constant 0 : index
    %367 = vector.load %arg10[%c0_144, %c0_145] : memref<128x512xbf16, #tpu.memory_space<vmem>>, vector<128x512xbf16>
    %cst_146 = arith.constant dense<0.000000e+00> : vector<2x512xf32>
    %368 = tpu.matmul %366, %367, %cst_146 {dimension_numbers = #tpu.dot_dimension_numbers<[1], [0], [0], [1], [0, 0, 1, 1], [], []>} : vector<2x128xbf16>, vector<128x512xbf16>, vector<2x512xf32> -> vector<2x512xf32>
    %369 = arith.addf %365, %368 : vector<2x512xf32>
    %370 = vector.extract_strided_slice %369 {offsets = [0, 0], sizes = [2, 128], strides = [1, 1]} : vector<2x512xf32> to vector<2x128xf32>
    %cst_147 = arith.constant 0.000000e+00 : f32
    %371 = vector.broadcast %cst_147 : f32 to vector<2x128xf32>
    %372 = arith.subf %371, %370 : vector<2x128xf32>
    %373 = math.exp %372 : vector<2x128xf32>
    %cst_148 = arith.constant 1.000000e+00 : f32
    %374 = vector.broadcast %cst_148 : f32 to vector<2x128xf32>
    %375 = arith.addf %374, %373 : vector<2x128xf32>
    %cst_149 = arith.constant 1.000000e+00 : f32
    %376 = vector.broadcast %cst_149 : f32 to vector<2x128xf32>
    %377 = arith.divf %376, %375 : vector<2x128xf32>
    %378 = vector.extract_strided_slice %369 {offsets = [0, 128], sizes = [2, 128], strides = [1, 1]} : vector<2x512xf32> to vector<2x128xf32>
    %cst_150 = arith.constant 0.000000e+00 : f32
    %379 = vector.broadcast %cst_150 : f32 to vector<2x128xf32>
    %380 = arith.subf %379, %378 : vector<2x128xf32>
    %381 = math.exp %380 : vector<2x128xf32>
    %cst_151 = arith.constant 1.000000e+00 : f32
    %382 = vector.broadcast %cst_151 : f32 to vector<2x128xf32>
    %383 = arith.addf %382, %381 : vector<2x128xf32>
    %cst_152 = arith.constant 1.000000e+00 : f32
    %384 = vector.broadcast %cst_152 : f32 to vector<2x128xf32>
    %385 = arith.divf %384, %383 : vector<2x128xf32>
    %386 = vector.extract_strided_slice %369 {offsets = [0, 256], sizes = [2, 128], strides = [1, 1]} : vector<2x512xf32> to vector<2x128xf32>
    %387 = math.tanh %386 : vector<2x128xf32>
    %388 = vector.extract_strided_slice %369 {offsets = [0, 384], sizes = [2, 128], strides = [1, 1]} : vector<2x512xf32> to vector<2x128xf32>
    %cst_153 = arith.constant 0.000000e+00 : f32
    %389 = vector.broadcast %cst_153 : f32 to vector<2x128xf32>
    %390 = arith.subf %389, %388 : vector<2x128xf32>
    %391 = math.exp %390 : vector<2x128xf32>
    %cst_154 = arith.constant 1.000000e+00 : f32
    %392 = vector.broadcast %cst_154 : f32 to vector<2x128xf32>
    %393 = arith.addf %392, %391 : vector<2x128xf32>
    %cst_155 = arith.constant 1.000000e+00 : f32
    %394 = vector.broadcast %cst_155 : f32 to vector<2x128xf32>
    %395 = arith.divf %394, %393 : vector<2x128xf32>
    %396 = arith.mulf %385, %344 : vector<2x128xf32>
    %397 = arith.mulf %377, %387 : vector<2x128xf32>
    %398 = arith.addf %396, %397 : vector<2x128xf32>
    %399 = math.tanh %398 : vector<2x128xf32>
    %400 = arith.mulf %395, %399 : vector<2x128xf32>
    %401 = vector.extract_strided_slice %12 {offsets = [12, 0], sizes = [2, 1], strides = [1, 1]} : vector<16x1xi32> to vector<2x1xi32>
    %402 = vector.broadcast %401 : vector<2x1xi32> to vector<2x128xi32>
    %403 = arith.cmpi eq, %37, %402 : vector<2x128xi32>
    %404 = arith.ori %350, %403 : vector<2x128xi1>
    %405 = arith.ori %404, %39 : vector<2x128xi1>
    %cst_156 = arith.constant 0xFF800000 : f32
    %cst_157 = arith.constant 0.000000e+00 : f32
    %406 = vector.broadcast %cst_156 : f32 to vector<2x128xf32>
    %407 = vector.broadcast %cst_157 : f32 to vector<2x128xf32>
    %408 = arith.select %405, %406, %407 : vector<2x128xi1>, vector<2x128xf32>
    %409 = arith.truncf %400 : vector<2x128xf32> to vector<2x128xbf16>
    %c0_158 = arith.constant 0 : index
    %c0_159 = arith.constant 0 : index
    %410 = vector.load %arg11[%c0_158, %c0_159] : memref<128x128xbf16, #tpu.memory_space<vmem>>, vector<128x128xbf16>
    %cst_160 = arith.constant dense<0.000000e+00> : vector<2x128xf32>
    %411 = tpu.matmul %409, %410, %cst_160 {dimension_numbers = #tpu.dot_dimension_numbers<[1], [0], [0], [1], [0, 0, 1, 1], [], []>} : vector<2x128xbf16>, vector<128x128xbf16>, vector<2x128xf32> -> vector<2x128xf32>
    %412 = vector.broadcast %40 : vector<1x128xf32> to vector<2x128xf32>
    %413 = arith.addf %411, %412 : vector<2x128xf32>
    %414 = arith.addf %413, %408 : vector<2x128xf32>
    %415 = vector.extract_strided_slice %414 {offsets = [0, 0], sizes = [1, 128], strides = [1, 1]} : vector<2x128xf32> to vector<1x128xf32>
    %c6 = arith.constant 6 : index
    %c0_161 = arith.constant 0 : index
    %416 = vector.load %arg13[%c6, %c0_161] : memref<16x128xf32, #tpu.memory_space<vmem>>, vector<1x128xf32>
    tpu.vector_store %arg13[%c6, %c0_161], %415 {strides = array<i32>} : memref<16x128xf32, #tpu.memory_space<vmem>>, vector<1x128xf32>,
    %417 = vector.extract_strided_slice %414 {offsets = [1, 0], sizes = [1, 128], strides = [1, 1]} : vector<2x128xf32> to vector<1x128xf32>
    %c14 = arith.constant 14 : index
    %c0_162 = arith.constant 0 : index
    %418 = vector.load %arg13[%c14, %c0_162] : memref<16x128xf32, #tpu.memory_space<vmem>>, vector<1x128xf32>
    tpu.vector_store %arg13[%c14, %c0_162], %417 {strides = array<i32>} : memref<16x128xf32, #tpu.memory_space<vmem>>, vector<1x128xf32>,
    %419 = vector.extract_strided_slice %33 {offsets = [14, 0], sizes = [2, 512], strides = [1, 1]} : vector<16x512xf32> to vector<2x512xf32>
    %420 = arith.truncf %400 : vector<2x128xf32> to vector<2x128xbf16>
    %c0_163 = arith.constant 0 : index
    %c0_164 = arith.constant 0 : index
    %421 = vector.load %arg10[%c0_163, %c0_164] : memref<128x512xbf16, #tpu.memory_space<vmem>>, vector<128x512xbf16>
    %cst_165 = arith.constant dense<0.000000e+00> : vector<2x512xf32>
    %422 = tpu.matmul %420, %421, %cst_165 {dimension_numbers = #tpu.dot_dimension_numbers<[1], [0], [0], [1], [0, 0, 1, 1], [], []>} : vector<2x128xbf16>, vector<128x512xbf16>, vector<2x512xf32> -> vector<2x512xf32>
    %423 = arith.addf %419, %422 : vector<2x512xf32>
    %424 = vector.extract_strided_slice %423 {offsets = [0, 0], sizes = [2, 128], strides = [1, 1]} : vector<2x512xf32> to vector<2x128xf32>
    %cst_166 = arith.constant 0.000000e+00 : f32
    %425 = vector.broadcast %cst_166 : f32 to vector<2x128xf32>
    %426 = arith.subf %425, %424 : vector<2x128xf32>
    %427 = math.exp %426 : vector<2x128xf32>
    %cst_167 = arith.constant 1.000000e+00 : f32
    %428 = vector.broadcast %cst_167 : f32 to vector<2x128xf32>
    %429 = arith.addf %428, %427 : vector<2x128xf32>
    %cst_168 = arith.constant 1.000000e+00 : f32
    %430 = vector.broadcast %cst_168 : f32 to vector<2x128xf32>
    %431 = arith.divf %430, %429 : vector<2x128xf32>
    %432 = vector.extract_strided_slice %423 {offsets = [0, 128], sizes = [2, 128], strides = [1, 1]} : vector<2x512xf32> to vector<2x128xf32>
    %cst_169 = arith.constant 0.000000e+00 : f32
    %433 = vector.broadcast %cst_169 : f32 to vector<2x128xf32>
    %434 = arith.subf %433, %432 : vector<2x128xf32>
    %435 = math.exp %434 : vector<2x128xf32>
    %cst_170 = arith.constant 1.000000e+00 : f32
    %436 = vector.broadcast %cst_170 : f32 to vector<2x128xf32>
    %437 = arith.addf %436, %435 : vector<2x128xf32>
    %cst_171 = arith.constant 1.000000e+00 : f32
    %438 = vector.broadcast %cst_171 : f32 to vector<2x128xf32>
    %439 = arith.divf %438, %437 : vector<2x128xf32>
    %440 = vector.extract_strided_slice %423 {offsets = [0, 256], sizes = [2, 128], strides = [1, 1]} : vector<2x512xf32> to vector<2x128xf32>
    %441 = math.tanh %440 : vector<2x128xf32>
    %442 = vector.extract_strided_slice %423 {offsets = [0, 384], sizes = [2, 128], strides = [1, 1]} : vector<2x512xf32> to vector<2x128xf32>
    %cst_172 = arith.constant 0.000000e+00 : f32
    %443 = vector.broadcast %cst_172 : f32 to vector<2x128xf32>
    %444 = arith.subf %443, %442 : vector<2x128xf32>
    %445 = math.exp %444 : vector<2x128xf32>
    %cst_173 = arith.constant 1.000000e+00 : f32
    %446 = vector.broadcast %cst_173 : f32 to vector<2x128xf32>
    %447 = arith.addf %446, %445 : vector<2x128xf32>
    %cst_174 = arith.constant 1.000000e+00 : f32
    %448 = vector.broadcast %cst_174 : f32 to vector<2x128xf32>
    %449 = arith.divf %448, %447 : vector<2x128xf32>
    %450 = arith.mulf %439, %398 : vector<2x128xf32>
    %451 = arith.mulf %431, %441 : vector<2x128xf32>
    %452 = arith.addf %450, %451 : vector<2x128xf32>
    %453 = math.tanh %452 : vector<2x128xf32>
    %454 = arith.mulf %449, %453 : vector<2x128xf32>
    %455 = vector.extract_strided_slice %12 {offsets = [14, 0], sizes = [2, 1], strides = [1, 1]} : vector<16x1xi32> to vector<2x1xi32>
    %456 = vector.broadcast %455 : vector<2x1xi32> to vector<2x128xi32>
    %457 = arith.cmpi eq, %37, %456 : vector<2x128xi32>
    %458 = arith.ori %404, %457 : vector<2x128xi1>
    %459 = arith.ori %458, %39 : vector<2x128xi1>
    %cst_175 = arith.constant 0xFF800000 : f32
    %cst_176 = arith.constant 0.000000e+00 : f32
    %460 = vector.broadcast %cst_175 : f32 to vector<2x128xf32>
    %461 = vector.broadcast %cst_176 : f32 to vector<2x128xf32>
    %462 = arith.select %459, %460, %461 : vector<2x128xi1>, vector<2x128xf32>
    %463 = arith.truncf %454 : vector<2x128xf32> to vector<2x128xbf16>
    %c0_177 = arith.constant 0 : index
    %c0_178 = arith.constant 0 : index
    %464 = vector.load %arg11[%c0_177, %c0_178] : memref<128x128xbf16, #tpu.memory_space<vmem>>, vector<128x128xbf16>
    %cst_179 = arith.constant dense<0.000000e+00> : vector<2x128xf32>
    %465 = tpu.matmul %463, %464, %cst_179 {dimension_numbers = #tpu.dot_dimension_numbers<[1], [0], [0], [1], [0, 0, 1, 1], [], []>} : vector<2x128xbf16>, vector<128x128xbf16>, vector<2x128xf32> -> vector<2x128xf32>
    %466 = vector.broadcast %40 : vector<1x128xf32> to vector<2x128xf32>
    %467 = arith.addf %465, %466 : vector<2x128xf32>
    %468 = arith.addf %467, %462 : vector<2x128xf32>
    %469 = vector.extract_strided_slice %468 {offsets = [0, 0], sizes = [1, 128], strides = [1, 1]} : vector<2x128xf32> to vector<1x128xf32>
    %c7 = arith.constant 7 : index
    %c0_180 = arith.constant 0 : index
    %470 = vector.load %arg13[%c7, %c0_180] : memref<16x128xf32, #tpu.memory_space<vmem>>, vector<1x128xf32>
    tpu.vector_store %arg13[%c7, %c0_180], %469 {strides = array<i32>} : memref<16x128xf32, #tpu.memory_space<vmem>>, vector<1x128xf32>,
    %471 = vector.extract_strided_slice %468 {offsets = [1, 0], sizes = [1, 128], strides = [1, 1]} : vector<2x128xf32> to vector<1x128xf32>
    %c15 = arith.constant 15 : index
    %c0_181 = arith.constant 0 : index
    %472 = vector.load %arg13[%c15, %c0_181] : memref<16x128xf32, #tpu.memory_space<vmem>>, vector<1x128xf32>
    tpu.vector_store %arg13[%c15, %c0_181], %471 {strides = array<i32>} : memref<16x128xf32, #tpu.memory_space<vmem>>, vector<1x128xf32>,
    return
  }
  func.func @transform_0(%arg0: i32) -> (i32, i32) {
    %c0_i32 = arith.constant 0 : i32
    %c0_i32_0 = arith.constant 0 : i32
    %c0_i32_1 = arith.constant 0 : i32
    return %c0_i32, %c0_i32_0 : i32, i32
  }
  func.func @transform_1(%arg0: i32) -> (i32, i32) {
    %c0_i32 = arith.constant 0 : i32
    %c0_i32_0 = arith.constant 0 : i32
    %c0_i32_1 = arith.constant 0 : i32
    return %c0_i32, %c0_i32_0 : i32, i32
  }
  func.func @transform_2(%arg0: i32) -> (i32, i32) {
    %c0_i32 = arith.constant 0 : i32
    %c0_i32_0 = arith.constant 0 : i32
    %c0_i32_1 = arith.constant 0 : i32
    return %c0_i32, %c0_i32_0 : i32, i32
  }
  func.func @transform_3(%arg0: i32) -> (i32, i32) {
    %c0_i32 = arith.constant 0 : i32
    %c0_i32_0 = arith.constant 0 : i32
    %c0_i32_1 = arith.constant 0 : i32
    return %c0_i32, %c0_i32_0 : i32, i32
  }
  func.func @transform_4(%arg0: i32) -> (i32, i32) {
    %c0_i32 = arith.constant 0 : i32
    %c0_i32_0 = arith.constant 0 : i32
    %c0_i32_1 = arith.constant 0 : i32
    return %c0_i32, %c0_i32_0 : i32, i32
  }
  func.func @transform_5(%arg0: i32) -> (i32, i32) {
    %c0_i32 = arith.constant 0 : i32
    %c0_i32_0 = arith.constant 0 : i32
    %c0_i32_1 = arith.constant 0 : i32
    return %c0_i32, %c0_i32_0 : i32, i32
  }
  func.func @transform_6(%arg0: i32) -> (i32, i32) {
    %c0_i32 = arith.constant 0 : i32
    %c0_i32_0 = arith.constant 0 : i32
    %c0_i32_1 = arith.constant 0 : i32
    return %c0_i32, %c0_i32_0 : i32, i32
  }
  func.func @transform_7(%arg0: i32) -> (i32, i32) {
    %c0_i32 = arith.constant 0 : i32
    %c0_i32_0 = arith.constant 0 : i32
    %c0_i32_1 = arith.constant 0 : i32
    return %c0_i32, %c0_i32_0 : i32, i32
  }
  func.func @transform_8(%arg0: i32) -> (i32, i32) {
    %c0_i32 = arith.constant 0 : i32
    %c0_i32_0 = arith.constant 0 : i32
    %c0_i32_1 = arith.constant 0 : i32
    return %c0_i32, %c0_i32_0 : i32, i32
  }
  func.func @transform_9(%arg0: i32) -> (i32, i32) {
    %c0_i32 = arith.constant 0 : i32
    %c0_i32_0 = arith.constant 0 : i32
    %c0_i32_1 = arith.constant 0 : i32
    return %c0_i32, %c0_i32_0 : i32, i32
  }
  func.func @transform_10(%arg0: i32) -> (i32, i32) {
    %c0_i32 = arith.constant 0 : i32
    %c0_i32_0 = arith.constant 0 : i32
    %c0_i32_1 = arith.constant 0 : i32
    return %c0_i32, %c0_i32_0 : i32, i32
  }
  func.func @transform_11(%arg0: i32) -> (i32, i32) {
    %c0_i32 = arith.constant 0 : i32
    %c0_i32_0 = arith.constant 0 : i32
    %c0_i32_1 = arith.constant 0 : i32
    return %c0_i32, %c0_i32_0 : i32, i32
  }
  func.func @transform_12(%arg0: i32) -> (i32, i32) {
    %c0_i32 = arith.constant 0 : i32
    %c0_i32_0 = arith.constant 0 : i32
    %c0_i32_1 = arith.constant 0 : i32
    return %c0_i32, %c0_i32_0 : i32, i32
  }
}

</mosaic_0001>

<llo_original>
// kernel: mul.8
$region0: #{mul.8}
  %s0 = inlined_call_operand.vmem [shape: f32[8,2], index: 0, kind: input, shape index: {}]
  %s1 = inlined_call_operand.vmem [shape: f32[16], index: 1, kind: output, shape index: {}]
  $region1: #{mul.8} parent=0
    #allocation0 [shape = 'u8[4096]{0}', space=vmem, size = 0x1000, scoped, tag = 'scoped mem for output reshape']
    %v2 = vld [vmem:[%s0] sm:$0x1]
    %vm3 = vcmask 15360
    %4 = vst.msk [vmem:[#allocation0] sm:$0x1] %vm3, %v2
    %s5 = scalar_lea.vmem %s0, 7
    %v6 = vld [vmem:[%s5] sm:$0x1]
    %7 = vrot.lane.b32.xlu0 %v6, 14
    %v8 = vpop.permute.xlu0 %7
    %vm9 = vcmask 130160
    %10 = vst.msk [vmem:[#allocation0] sm:$0x1] %vm9, %v8
    %s11 = scalar_lea.vmem %s0, 6
    %v12 = vld [vmem:[%s11] sm:$0x1]
    %13 = vrot.lane.b32.xlu0 %v12, 12
    %v14 = vpop.permute.xlu0 %13
    %vm15 = vcmask 113760
    %16 = vst.msk [vmem:[#allocation0] sm:$0x1] %vm15, %v14
    %s17 = scalar_lea.vmem %s0, 5
    %v18 = vld [vmem:[%s17] sm:$0x1]
    %19 = vrot.lane.b32.xlu0 %v18, 10
    %v20 = vpop.permute.xlu0 %19
    %vm21 = vcmask 97360
    %22 = vst.msk [vmem:[#allocation0] sm:$0x1] %vm21, %v20
    %s23 = scalar_lea.vmem %s0, 4
    %v24 = vld [vmem:[%s23] sm:$0x1]
    %25 = vrot.lane.b32.xlu0 %v24, 8
    %v26 = vpop.permute.xlu0 %25
    %vm27 = vcmask 80960
    %28 = vst.msk [vmem:[#allocation0] sm:$0x1] %vm27, %v26
    %s29 = scalar_lea.vmem %s0, 3
    %v30 = vld [vmem:[%s29] sm:$0x1]
    %31 = vrot.lane.b32.xlu0 %v30, 6
    %v32 = vpop.permute.xlu0 %31
    %vm33 = vcmask 64560
    %34 = vst.msk [vmem:[#allocation0] sm:$0x1] %vm33, %v32
    %s35 = scalar_lea.vmem %s0, 2
    %v36 = vld [vmem:[%s35] sm:$0x1]
    %37 = vrot.lane.b32.xlu0 %v36, 4
    %v38 = vpop.permute.xlu0 %37
    %vm39 = vcmask 48160
    %40 = vst.msk [vmem:[#allocation0] sm:$0x1] %vm39, %v38
    %s41 = scalar_lea.vmem %s0, 1
    %v42 = vld [vmem:[%s41] sm:$0x1]
    %43 = vrot.lane.b32.xlu0 %v42, 2
    %v44 = vpop.permute.xlu0 %43
    %vm45 = vcmask 31760
    %46 = vst.msk [vmem:[#allocation0] sm:$0x1] %vm45, %v44
    %s48 = sshllo.u32 0, 1
    %v50 = vld [vmem:[#allocation0] sm:%s48]
    %s51 = sshllo.u32 0, 1
    %52 = vst [vmem:[%s1] sm:%s51] %v50

// kernel: metacas_forward.1
$region0: #{metacas_forward.1}
  #allocation0 [shape = 'u32[]', space=smem, size = 0x4, offset = 0x4, fixed_abs, tag = 'smem constant byte address 0x4 - core index']
  #allocation1 [shape = 'u32[144,128]{1,0:T(1,128)}', space=vmem, size = 0x12000, scoped, tag = 'internal scratch']
  %s0 = inlined_call_operand.vmem [shape: s32[16,1], index: 0, kind: input, shape index: {}]
  %s1 = inlined_call_operand.vmem [shape: f32[64,16], index: 1, kind: input, shape index: {}]
  %s2 = inlined_call_operand.vmem [shape: f32[16,32], index: 2, kind: input, shape index: {}]
  %s3 = inlined_call_operand.vmem [shape: f32[64,16], index: 3, kind: input, shape index: {}]
  %s4 = inlined_call_operand.vmem [shape: f32[16,32], index: 4, kind: input, shape index: {}]
  %s5 = inlined_call_operand.vmem [shape: f32[16,8], index: 5, kind: input, shape index: {}]
  %s6 = inlined_call_operand.vmem [shape: f32[16,8], index: 6, kind: input, shape index: {}]
  %s7 = inlined_call_operand.hbm [shape: bf16[64,512], index: 7, kind: input, shape index: {}]
  %s8 = inlined_call_operand.vmem [shape: f32[1,512], index: 8, kind: input, shape index: {}]
  %s9 = inlined_call_operand.vmem [shape: bf16[128,512], index: 9, kind: input, shape index: {}]
  %s10 = inlined_call_operand.hbm [shape: bf16[128,128], index: 10, kind: input, shape index: {}]
  %s11 = inlined_call_operand.vmem [shape: f32[1,128], index: 11, kind: input, shape index: {}]
  %s12 = inlined_call_operand.hbm [shape: f32[16,128], index: 12, kind: output, shape index: {}]
  %s13 = sld [smem:[#allocation0]]
  $region66: #{metacas_forward.1} parent=0
    _
  %s15 = ssub.s32 1, %s13
  %s16 = scalar_select 0, %s15, %s13
  $region1: #{metacas_forward.1} parent=0
    #allocation2 [shape = 'u8[65536]{0}', space=vmem, size = 0x10000, scoped, tag = 'input window, operand 7, single buffered']
    #allocation3 [shape = 's32[1]{0}', space=sflag, size = 0x4, scoped, tag = 'scoped memory for metacas_forward.1']
    #allocation4 [shape = 's32[1]{0}', space=sflag, size = 0x4, scoped, tag = 'scoped memory for metacas_forward.1']
    #allocation5 [shape = 'u8[32768]{0}', space=vmem, size = 0x8000, scoped, tag = 'input window, operand 10, single buffered']
    #allocation6 [shape = 's32[1]{0}', space=sflag, size = 0x4, scoped, tag = 'scoped memory for metacas_forward.1']
    #allocation7 [shape = 'u8[8192]{0}', space=vmem, size = 0x2000, scoped, tag = 'output window, operand 0, single buffered']
    %17 = vsyncpa [#allocation3], 0
    %18 = vsyncpa [#allocation6], 0
    %19 = vsyncpa [#allocation4], 0
    // Predicated region
    $region2: #{metacas_forward.1} parent=1 // pred_check
      _
    $region3: #{metacas_forward.1} parent=1 // pred_check_branch
      %21 = sbr.rel (0) target = $region5
    $region4: #{metacas_forward.1} parent=1 // pred_region
      _
    $region5: #{metacas_forward.1} parent=1 // pred_fallthru
      _
    // Predicated region
    $region6: #{metacas_forward.1} parent=1 // pred_check
      _
    $region7: #{metacas_forward.1} parent=1 // pred_check_branch
      %23 = sbr.rel (0) target = $region9
    $region8: #{metacas_forward.1} parent=1 // pred_region
      _
    $region9: #{metacas_forward.1} parent=1 // pred_fallthru
      _
    // Predicated region
    $region10: #{metacas_forward.1} parent=1 // pred_check
      _
    $region11: #{metacas_forward.1} parent=1 // pred_check_branch
      %25 = sbr.rel (0) target = $region13
    $region12: #{metacas_forward.1} parent=1 // pred_region
      _
    $region13: #{metacas_forward.1} parent=1 // pred_fallthru
      _
    // Predicated region
    $region14: #{metacas_forward.1} parent=1 // pred_check
      _
    $region15: #{metacas_forward.1} parent=1 // pred_check_branch
      %27 = sbr.rel (0) target = $region17
    $region16: #{metacas_forward.1} parent=1 // pred_region
      _
    $region17: #{metacas_forward.1} parent=1 // pred_fallthru
      _
    // Predicated region
    $region18: #{metacas_forward.1} parent=1 // pred_check
      _
    $region19: #{metacas_forward.1} parent=1 // pred_check_branch
      %29 = sbr.rel (0) target = $region21
    $region20: #{metacas_forward.1} parent=1 // pred_region
      _
    $region21: #{metacas_forward.1} parent=1 // pred_fallthru
      _
    // Predicated region
    $region22: #{metacas_forward.1} parent=1 // pred_check
      _
    $region23: #{metacas_forward.1} parent=1 // pred_check_branch
      %31 = sbr.rel (0) target = $region25
    $region24: #{metacas_forward.1} parent=1 // pred_region
      _
    $region25: #{metacas_forward.1} parent=1 // pred_fallthru
      _
    // Predicated region
    $region26: #{metacas_forward.1} parent=1 // pred_check
      _
    $region27: #{metacas_forward.1} parent=1 // pred_check_branch
      %33 = sbr.rel (0) target = $region29
    $region28: #{metacas_forward.1} parent=1 // pred_region
      _
    $region29: #{metacas_forward.1} parent=1 // pred_fallthru
      _
    // Predicated region
    $region30: #{metacas_forward.1} parent=1 // pred_check
      _
    $region31: #{metacas_forward.1} parent=1 // pred_check_branch
      %35 = sbr.rel (0) target = $region33
    $region32: #{metacas_forward.1} parent=1 // pred_region
      %s37 = ssub.s32 2048, 2048
      %38 = vsyncadd [#allocation3], %s37
      %s39 = sshll.u32 [#allocation2], 4
      %s40 = int_to_ptr.vmem [resolvable:$true] %s39
      %45 = dma.hbm_to_vmem [thread:$0]  %s7, 2048, %s40, [#allocation3], 256, 256, 16
    $region33: #{metacas_forward.1} parent=1 // pred_fallthru
      _
    // Predicated region
    $region34: #{metacas_forward.1} parent=1 // pred_check
      _
    $region35: #{metacas_forward.1} parent=1 // pred_check_branch
      %47 = sbr.rel (0) target = $region37
    $region36: #{metacas_forward.1} parent=1 // pred_region
      _
    $region37: #{metacas_forward.1} parent=1 // pred_fallthru
      _
    // Predicated region
    $region38: #{metacas_forward.1} parent=1 // pred_check
      _
    $region39: #{metacas_forward.1} parent=1 // pred_check_branch
      %49 = sbr.rel (0) target = $region41
    $region40: #{metacas_forward.1} parent=1 // pred_region
      _
    $region41: #{metacas_forward.1} parent=1 // pred_fallthru
      _
    // Predicated region
    $region42: #{metacas_forward.1} parent=1 // pred_check
      _
    $region43: #{metacas_forward.1} parent=1 // pred_check_branch
      %51 = sbr.rel (0) target = $region45
    $region44: #{metacas_forward.1} parent=1 // pred_region
      %s53 = ssub.s32 1024, 1024
      %54 = vsyncadd [#allocation6], %s53
      %s55 = sshll.u32 [#allocation5], 4
      %s56 = int_to_ptr.vmem [resolvable:$true] %s55
      %61 = dma.hbm_to_vmem [thread:$0]  %s10, 1024, %s56, [#allocation6], 64, 64, 4
    $region45: #{metacas_forward.1} parent=1 // pred_fallthru
      _
    // Predicated region
    $region46: #{metacas_forward.1} parent=1 // pred_check
      _
    $region47: #{metacas_forward.1} parent=1 // pred_check_branch
      %63 = sbr.rel (0) target = $region49
    $region48: #{metacas_forward.1} parent=1 // pred_region
      _
    $region49: #{metacas_forward.1} parent=1 // pred_fallthru
      _
    // Predicated region
    $region50: #{metacas_forward.1} parent=1 // pred_check
      _
    $region51: #{metacas_forward.1} parent=1 // pred_check_branch
      %65 = sbr.rel (0) target = $region53
    $region52: #{metacas_forward.1} parent=1 // pred_region
      %66 = dma.done [#allocation3], 2048
    $region53: #{metacas_forward.1} parent=1 // pred_fallthru
      _
    // Predicated region
    $region54: #{metacas_forward.1} parent=1 // pred_check
      _
    $region55: #{metacas_forward.1} parent=1 // pred_check_branch
      %68 = sbr.rel (0) target = $region57
    $region56: #{metacas_forward.1} parent=1 // pred_region
      %69 = dma.done [#allocation6], 1024
    $region57: #{metacas_forward.1} parent=1 // pred_fallthru
      _
    %v71 = vld [vmem:[%s1] sm:$0xff]
    %v72 = vld [vmem:[%s1 + $0x8] sm:$0xff]
    %v73 = vld [vmem:[%s1 + $0x10] sm:$0xff]
    %v74 = vld [vmem:[%s1 + $0x18] sm:$0xff]
    %v75 = vld [vmem:[%s1 + $0x20] sm:$0xff]
    %v76 = vld [vmem:[%s1 + $0x28] sm:$0xff]
    %v77 = vld [vmem:[%s1 + $0x30] sm:$0xff]
    %v78 = vld [vmem:[%s1 + $0x38] sm:$0xff]
    %v79 = vpack.c.bf16 %v72, %v71
    %v80 = vpack.c.bf16 %v74, %v73
    %v81 = vpack.c.bf16 %v76, %v75
    %v82 = vpack.c.bf16 %v78, %v77
    %v83 = vld [vmem:[%s2] sm:$0xff]
    %v84 = vld [vmem:[%s2 + $0x8] sm:$0xff]
    %v85 = vpack.c.bf16 %v84, %v83
    %v86 = vld [vmem:[%s3] sm:$0xff]
    %v87 = vld [vmem:[%s3 + $0x8] sm:$0xff]
    %v88 = vld [vmem:[%s3 + $0x10] sm:$0xff]
    %v89 = vld [vmem:[%s3 + $0x18] sm:$0xff]
    %v90 = vld [vmem:[%s3 + $0x20] sm:$0xff]
    %v91 = vld [vmem:[%s3 + $0x28] sm:$0xff]
    %v92 = vld [vmem:[%s3 + $0x30] sm:$0xff]
    %v93 = vld [vmem:[%s3 + $0x38] sm:$0xff]
    %v94 = vpack.c.bf16 %v87, %v86
    %v95 = vpack.c.bf16 %v89, %v88
    %v96 = vpack.c.bf16 %v91, %v90
    %v97 = vpack.c.bf16 %v93, %v92
    %v98 = vld [vmem:[%s4] sm:$0xff]
    %v99 = vld [vmem:[%s4 + $0x8] sm:$0xff]
    %v100 = vpack.c.bf16 %v99, %v98
    %vm101 = vcmask 130048
    %v103 = vsel %vm101, %v94, 0
    %v106 = vsel %vm101, %v95, 0
    %v109 = vsel %vm101, %v96, 0
    %v112 = vsel %vm101, %v97, 0
    %114 = vmatprep.subr.bf16.mxu0 0
    %115 = vmatpush1.bf16.msra.mxu0 %v100
    %116 = vmatprep.subr.bf16.mxu0 0
    %117 = vmatpush1.bf16.msra.mxu0 0
    %118 = vmatprep.subr.bf16.mxu0 0
    %119 = vmatpush1.bf16.msra.mxu0 0
    %120 = vmatprep.subr.bf16.mxu0 0
    %121 = vmatpush1.bf16.msra.mxu0 0
    %122 = vmatprep.subr.bf16.mxu0 0
    %123 = vmatpush1.bf16.msra.mxu0 0
    %124 = vmatprep.subr.bf16.mxu0 0
    %125 = vmatpush1.bf16.msra.mxu0 0
    %126 = vmatprep.subr.bf16.mxu0 0
    %127 = vmatpush1.bf16.msra.mxu0 0
    %128 = vmatprep.subr.bf16.mxu0 0
    %129 = vmatpush1.bf16.msra.mxu0 0
    %130 = vmatprep.subr.bf16.mxu0 0
    %131 = vmatpush1.bf16.msra.mxu0 0
    %132 = vmatprep.subr.bf16.mxu0 0
    %133 = vmatpush1.bf16.msra.mxu0 0
    %134 = vmatprep.subr.bf16.mxu0 0
    %135 = vmatpush1.bf16.msra.mxu0 0
    %136 = vmatprep.subr.bf16.mxu0 0
    %137 = vmatpush1.bf16.msra.mxu0 0
    %138 = vmatprep.subr.bf16.mxu0 0
    %139 = vmatpush1.bf16.msra.mxu0 0
    %140 = vmatprep.subr.bf16.mxu0 0
    %141 = vmatpush1.bf16.msra.mxu0 0
    %142 = vmatprep.subr.bf16.mxu0 0
    %143 = vmatpush1.bf16.msra.mxu0 0
    %144 = vmatprep.subr.bf16.mxu0 0
    %145 = vmatpush1.bf16.msra.mxu0 0
    %146 = vmatprep.mubr.bf16.mxu0 0
    %147 = vmatmul.mubr.bf16.gmra.mrb[0].mxu0 %v103
    %v148 = vpop.f32.mrb[0].mxu0
    %v149 = vadd.f32 0.0, %v148
    %v150 = vpop.f32.mrb[0].mxu0
    %v151 = vpop.f32.mrb[0].mxu0
    %v152 = vadd.f32 0.0, %v151
    %v153 = vpop.f32.mrb[0].mxu0
    %154 = vmatprep.mubr.bf16.mxu0 0
    %155 = vmatmul.mubr.bf16.gmra.mrb[0].mxu0 %v106
    %v156 = vpop.f32.mrb[0].mxu0
    %v157 = vadd.f32 0.0, %v156
    %v158 = vpop.f32.mrb[0].mxu0
    %v159 = vpop.f32.mrb[0].mxu0
    %v160 = vadd.f32 0.0, %v159
    %v161 = vpop.f32.mrb[0].mxu0
    %162 = vmatprep.mubr.bf16.mxu0 0
    %163 = vmatmul.mubr.bf16.gmra.mrb[0].mxu0 %v109
    %v164 = vpop.f32.mrb[0].mxu0
    %v165 = vadd.f32 0.0, %v164
    %v166 = vpop.f32.mrb[0].mxu0
    %v167 = vpop.f32.mrb[0].mxu0
    %v168 = vadd.f32 0.0, %v167
    %v169 = vpop.f32.mrb[0].mxu0
    %170 = vmatprep.mubr.bf16.mxu0 0
    %171 = vmatmul.mubr.bf16.gmra.mrb[0].mxu0 %v112
    %v172 = vpop.f32.mrb[0].mxu0
    %v173 = vadd.f32 0.0, %v172
    %v174 = vpop.f32.mrb[0].mxu0
    %v175 = vpop.f32.mrb[0].mxu0
    %v176 = vadd.f32 0.0, %v175
    %v177 = vpop.f32.mrb[0].mxu0
    %178 = vdwg.mxu0
    %v180 = vsel %vm101, %v79, 0
    %v183 = vsel %vm101, %v80, 0
    %v186 = vsel %vm101, %v81, 0
    %v189 = vsel %vm101, %v82, 0
    %191 = vmatprep.subr.bf16.mxu0 0
    %192 = vmatpush1.bf16.msra.mxu0 %v85
    %193 = vmatprep.subr.bf16.mxu0 0
    %194 = vmatpush1.bf16.msra.mxu0 0
    %195 = vmatprep.subr.bf16.mxu0 0
    %196 = vmatpush1.bf16.msra.mxu0 0
    %197 = vmatprep.subr.bf16.mxu0 0
    %198 = vmatpush1.bf16.msra.mxu0 0
    %199 = vmatprep.subr.bf16.mxu0 0
    %200 = vmatpush1.bf16.msra.mxu0 0
    %201 = vmatprep.subr.bf16.mxu0 0
    %202 = vmatpush1.bf16.msra.mxu0 0
    %203 = vmatprep.subr.bf16.mxu0 0
    %204 = vmatpush1.bf16.msra.mxu0 0
    %205 = vmatprep.subr.bf16.mxu0 0
    %206 = vmatpush1.bf16.msra.mxu0 0
    %207 = vmatprep.subr.bf16.mxu0 0
    %208 = vmatpush1.bf16.msra.mxu0 0
    %209 = vmatprep.subr.bf16.mxu0 0
    %210 = vmatpush1.bf16.msra.mxu0 0
    %211 = vmatprep.subr.bf16.mxu0 0
    %212 = vmatpush1.bf16.msra.mxu0 0
    %213 = vmatprep.subr.bf16.mxu0 0
    %214 = vmatpush1.bf16.msra.mxu0 0
    %215 = vmatprep.subr.bf16.mxu0 0
    %216 = vmatpush1.bf16.msra.mxu0 0
    %217 = vmatprep.subr.bf16.mxu0 0
    %218 = vmatpush1.bf16.msra.mxu0 0
    %219 = vmatprep.subr.bf16.mxu0 0
    %220 = vmatpush1.bf16.msra.mxu0 0
    %221 = vmatprep.subr.bf16.mxu0 0
    %222 = vmatpush1.bf16.msra.mxu0 0
    %223 = vmatprep.mubr.bf16.mxu0 0
    %224 = vmatmul.mubr.bf16.gmra.mrb[0].mxu0 %v180
    %v225 = vpop.f32.mrb[0].mxu0
    %v226 = vadd.f32 %v149, %v225
    %v227 = vpop.f32.mrb[0].mxu0
    %v228 = vpop.f32.mrb[0].mxu0
    %v229 = vadd.f32 %v152, %v228
    %v230 = vpop.f32.mrb[0].mxu0
    %231 = vmatprep.mubr.bf16.mxu0 0
    %232 = vmatmul.mubr.bf16.gmra.mrb[0].mxu0 %v183
    %v233 = vpop.f32.mrb[0].mxu0
    %v234 = vadd.f32 %v157, %v233
    %v235 = vpop.f32.mrb[0].mxu0
    %v236 = vpop.f32.mrb[0].mxu0
    %v237 = vadd.f32 %v160, %v236
    %v238 = vpop.f32.mrb[0].mxu0
    %239 = vmatprep.mubr.bf16.mxu0 0
    %240 = vmatmul.mubr.bf16.gmra.mrb[0].mxu0 %v186
    %v241 = vpop.f32.mrb[0].mxu0
    %v242 = vadd.f32 %v165, %v241
    %v243 = vpop.f32.mrb[0].mxu0
    %v244 = vpop.f32.mrb[0].mxu0
    %v245 = vadd.f32 %v168, %v244
    %v246 = vpop.f32.mrb[0].mxu0
    %247 = vmatprep.mubr.bf16.mxu0 0
    %248 = vmatmul.mubr.bf16.gmra.mrb[0].mxu0 %v189
    %v249 = vpop.f32.mrb[0].mxu0
    %v250 = vadd.f32 %v173, %v249
    %v251 = vpop.f32.mrb[0].mxu0
    %v252 = vpop.f32.mrb[0].mxu0
    %v253 = vadd.f32 %v176, %v252
    %v254 = vpop.f32.mrb[0].mxu0
    %255 = vdwg.mxu0
    %v256 = vtanh.pop %v226
    %v257 = vtanh.pop %v229
    %v258 = vtanh.pop %v234
    %v259 = vtanh.pop %v237
    %v260 = vtanh.pop %v242
    %v261 = vtanh.pop %v245
    %v262 = vtanh.pop %v250
    %v263 = vtanh.pop %v253
    %v264 = vld [vmem:[%s0] sm:$0xff]
    %v265 = vld [vmem:[%s0 + $0x8] sm:$0xff]
    %v266 = vlaneseq
    %v267 = vand.u32 %v266, 127
    %268 = vset.pattern.permute.xlu0 0
    %269 = vperm.xlu0 %268, %v264
    %v270 = vpop.permute.xlu0 %269
    %271 = vset.pattern.permute.xlu0 0
    %272 = vperm.xlu0 %271, %v265
    %v273 = vpop.permute.xlu0 %272
    %vm274 = vcmp.eq.s32.totalorder %v267, %v270
    %vm275 = vcmp.eq.s32.totalorder %v267, %v273
    %v276 = vsel %vm274, 1.0, 0.0
    %v277 = vsel %vm275, 1.0, 0.0
    %v278 = vpack.c.bf16 %v277, %v276
    %v279 = vpack.c.bf16 %v257, %v256
    %v280 = vpack.c.bf16 %v259, %v258
    %v281 = vpack.c.bf16 %v261, %v260
    %v282 = vpack.c.bf16 %v263, %v262
    %vm283 = vcmask 523264
    %v285 = vsel %vm283, %v278, 0
    %287 = vmatprep.subr.bf16.mxu0 0
    %288 = vmatpush1.bf16.msra.mxu0 %v279
    %289 = vmatprep.subr.bf16.mxu0 0
    %290 = vmatpush1.bf16.msra.mxu0 %v280
    %291 = vmatprep.subr.bf16.mxu0 0
    %292 = vmatpush1.bf16.msra.mxu0 %v281
    %293 = vmatprep.subr.bf16.mxu0 0
    %294 = vmatpush1.bf16.msra.mxu0 %v282
    %295 = vmatprep.subr.bf16.mxu0 0
    %296 = vmatpush1.bf16.msra.mxu0 0
    %297 = vmatprep.subr.bf16.mxu0 0
    %298 = vmatpush1.bf16.msra.mxu0 0
    %299 = vmatprep.subr.bf16.mxu0 0
    %300 = vmatpush1.bf16.msra.mxu0 0
    %301 = vmatprep.subr.bf16.mxu0 0
    %302 = vmatpush1.bf16.msra.mxu0 0
    %303 = vmatprep.subr.bf16.mxu0 0
    %304 = vmatpush1.bf16.msra.mxu0 0
    %305 = vmatprep.subr.bf16.mxu0 0
    %306 = vmatpush1.bf16.msra.mxu0 0
    %307 = vmatprep.subr.bf16.mxu0 0
    %308 = vmatpush1.bf16.msra.mxu0 0
    %309 = vmatprep.subr.bf16.mxu0 0
    %310 = vmatpush1.bf16.msra.mxu0 0
    %311 = vmatprep.subr.bf16.mxu0 0
    %312 = vmatpush1.bf16.msra.mxu0 0
    %313 = vmatprep.subr.bf16.mxu0 0
    %314 = vmatpush1.bf16.msra.mxu0 0
    %315 = vmatprep.subr.bf16.mxu0 0
    %316 = vmatpush1.bf16.msra.mxu0 0
    %317 = vmatprep.subr.bf16.mxu0 0
    %318 = vmatpush1.bf16.msra.mxu0 0
    %319 = vmatprep.mubr.bf16.mxu0 0
    %320 = vmatmul.mubr.bf16.gmra.mrb[0].mxu0 %v285
    %v321 = vpop.f32.mrb[0].mxu0
    %v322 = vadd.f32 0.0, %v321
    %v323 = vpop.f32.mrb[0].mxu0
    %v324 = vpop.f32.mrb[0].mxu0
    %v325 = vadd.f32 0.0, %v324
    %v326 = vpop.f32.mrb[0].mxu0
    %327 = vdwg.mxu0
    %328 = vmatprep.subr.bf16.mxu0 0
    %329 = vmatpush1.bf16.msra.mxu0 %v94
    %330 = vmatprep.subr.bf16.mxu0 0
    %331 = vmatpush1.bf16.msra.mxu0 %v95
    %332 = vmatprep.subr.bf16.mxu0 0
    %333 = vmatpush1.bf16.msra.mxu0 %v96
    %334 = vmatprep.subr.bf16.mxu0 0
    %335 = vmatpush1.bf16.msra.mxu0 %v97
    %336 = vmatprep.subr.bf16.mxu0 0
    %337 = vmatpush1.bf16.msra.mxu0 0
    %338 = vmatprep.subr.bf16.mxu0 0
    %339 = vmatpush1.bf16.msra.mxu0 0
    %340 = vmatprep.subr.bf16.mxu0 0
    %341 = vmatpush1.bf16.msra.mxu0 0
    %342 = vmatprep.subr.bf16.mxu0 0
    %343 = vmatpush1.bf16.msra.mxu0 0
    %344 = vmatprep.subr.bf16.mxu0 0
    %345 = vmatpush1.bf16.msra.mxu0 0
    %346 = vmatprep.subr.bf16.mxu0 0
    %347 = vmatpush1.bf16.msra.mxu0 0
    %348 = vmatprep.subr.bf16.mxu0 0
    %349 = vmatpush1.bf16.msra.mxu0 0
    %350 = vmatprep.subr.bf16.mxu0 0
    %351 = vmatpush1.bf16.msra.mxu0 0
    %352 = vmatprep.subr.bf16.mxu0 0
    %353 = vmatpush1.bf16.msra.mxu0 0
    %354 = vmatprep.subr.bf16.mxu0 0
    %355 = vmatpush1.bf16.msra.mxu0 0
    %356 = vmatprep.subr.bf16.mxu0 0
    %357 = vmatpush1.bf16.msra.mxu0 0
    %358 = vmatprep.subr.bf16.mxu0 0
    %359 = vmatpush1.bf16.msra.mxu0 0
    %360 = vmatprep.mubr.bf16.mxu0 0
    %361 = vmatmul.mubr.bf16.gmra.mrb[0].mxu0 %v285
    %v362 = vpop.f32.mrb[0].mxu0
    %v363 = vadd.f32 0.0, %v362
    %v364 = vpop.f32.mrb[0].mxu0
    %v365 = vpop.f32.mrb[0].mxu0
    %v366 = vadd.f32 0.0, %v365
    %v367 = vpop.f32.mrb[0].mxu0
    %368 = vdwg.mxu0
    %v369 = vld [vmem:[%s5] sm:$0xff]
    %v370 = vld [vmem:[%s5 + $0x8] sm:$0xff]
    %v371 = vld [vmem:[%s6] sm:$0xff]
    %v372 = vld [vmem:[%s6 + $0x8] sm:$0xff]
    %375 = vrot.lane.b32.xlu0 %v369, 32
    %v376 = vpop.permute.xlu0 %375
    %377 = vrot.lane.b32.xlu0 %v370, 32
    %v378 = vpop.permute.xlu0 %377
    %383 = vrot.lane.b32.xlu0 %v363, 40
    %v384 = vpop.permute.xlu0 %383
    %385 = vrot.lane.b32.xlu0 %v366, 40
    %v386 = vpop.permute.xlu0 %385
    %391 = vrot.lane.b32.xlu0 %v371, 56
    %v392 = vpop.permute.xlu0 %391
    %393 = vrot.lane.b32.xlu0 %v372, 56
    %v394 = vpop.permute.xlu0 %393
    %vm397 = vcmask 261120
    %v398 = vsel %vm397, %v322, %v376
    %v399 = vsel %vm397, %v325, %v378
    %vm400 = vcmask 326656
    %v401 = vsel %vm400, %v398, %v384
    %v402 = vsel %vm400, %v399, %v386
    %vm403 = vcmask 457728
    %v404 = vsel %vm403, %v401, %v392
    %v405 = vsel %vm403, %v402, %v394
    %v406 = vpack.c.bf16 %v405, %v404
    %v407 = vld [vmem:[#allocation2] sm:$0xff]
    %v408 = vld [vmem:[#allocation2 + $0x8] sm:$0xff]
    %v409 = vld [vmem:[#allocation2 + $0x10] sm:$0xff]
    %v410 = vld [vmem:[#allocation2 + $0x18] sm:$0xff]
    %v411 = vld [vmem:[#allocation2 + $0x20] sm:$0xff]
    %v412 = vld [vmem:[#allocation2 + $0x28] sm:$0xff]
    %v413 = vld [vmem:[#allocation2 + $0x30] sm:$0xff]
    %v414 = vld [vmem:[#allocation2 + $0x38] sm:$0xff]
    %v415 = vld [vmem:[#allocation2 + $0x40] sm:$0xff]
    %v416 = vld [vmem:[#allocation2 + $0x48] sm:$0xff]
    %v417 = vld [vmem:[#allocation2 + $0x50] sm:$0xff]
    %v418 = vld [vmem:[#allocation2 + $0x58] sm:$0xff]
    %v419 = vld [vmem:[#allocation2 + $0x60] sm:$0xff]
    %v420 = vld [vmem:[#allocation2 + $0x68] sm:$0xff]
    %v421 = vld [vmem:[#allocation2 + $0x70] sm:$0xff]
    %v422 = vld [vmem:[#allocation2 + $0x78] sm:$0xff]
    %v423 = vld [vmem:[%s8] sm:$0xf]
    %v425 = vlaneseq
    %v426 = vshrl.u32 %v425, 7
    %v427 = vsub.s32 0, %v426
    %v428 = vrot.slane %v423, %v427
    %v429 = vlaneseq
    %v430 = vshrl.u32 %v429, 7
    %v431 = vsub.s32 1, %v430
    %v432 = vrot.slane %v423, %v431
    %v433 = vlaneseq
    %v434 = vshrl.u32 %v433, 7
    %v435 = vsub.s32 2, %v434
    %v436 = vrot.slane %v423, %v435
    %v437 = vlaneseq
    %v438 = vshrl.u32 %v437, 7
    %v439 = vsub.s32 3, %v438
    %v440 = vrot.slane %v423, %v439
    %v461 = vunpack.c.l.b16 %v407
    %v462 = vunpack.c.h.b16 %v407
    %v463 = vunpack.c.l.b16 %v408
    %v464 = vunpack.c.h.b16 %v408
    %v465 = vunpack.c.l.b16 %v409
    %v466 = vunpack.c.h.b16 %v409
    %v467 = vunpack.c.l.b16 %v410
    %v468 = vunpack.c.h.b16 %v410
    %v469 = vunpack.c.l.b16 %v411
    %v470 = vunpack.c.h.b16 %v411
    %v471 = vunpack.c.l.b16 %v412
    %v472 = vunpack.c.h.b16 %v412
    %v473 = vunpack.c.l.b16 %v413
    %v474 = vunpack.c.h.b16 %v413
    %v475 = vunpack.c.l.b16 %v414
    %v476 = vunpack.c.h.b16 %v414
    %v477 = vunpack.c.l.b16 %v415
    %v478 = vunpack.c.h.b16 %v415
    %v479 = vunpack.c.l.b16 %v416
    %v480 = vunpack.c.h.b16 %v416
    %v481 = vunpack.c.l.b16 %v417
    %v482 = vunpack.c.h.b16 %v417
    %v483 = vunpack.c.l.b16 %v418
    %v484 = vunpack.c.h.b16 %v418
    %v485 = vunpack.c.l.b16 %v419
    %v486 = vunpack.c.h.b16 %v419
    %v487 = vunpack.c.l.b16 %v420
    %v488 = vunpack.c.h.b16 %v420
    %v489 = vunpack.c.l.b16 %v421
    %v490 = vunpack.c.h.b16 %v421
    %v491 = vunpack.c.l.b16 %v422
    %v492 = vunpack.c.h.b16 %v422
    %v493 = vpack.c.b16 %v465, %v461
    %v494 = vpack.c.b16 %v466, %v462
    %v495 = vpack.c.b16 %v467, %v463
    %v496 = vpack.c.b16 %v468, %v464
    %v497 = vpack.c.b16 %v473, %v469
    %v498 = vpack.c.b16 %v474, %v470
    %v499 = vpack.c.b16 %v475, %v471
    %v500 = vpack.c.b16 %v476, %v472
    %v501 = vpack.c.b16 %v481, %v477
    %v502 = vpack.c.b16 %v482, %v478
    %v503 = vpack.c.b16 %v483, %v479
    %v504 = vpack.c.b16 %v484, %v480
    %v505 = vpack.c.b16 %v489, %v485
    %v506 = vpack.c.b16 %v490, %v486
    %v507 = vpack.c.b16 %v491, %v487
    %v508 = vpack.c.b16 %v492, %v488
    %v526 = vsel %vm283, %v406, 0
    %528 = vmatprep.subr.bf16.mxu0 %v494
    %529 = vmatpush1.bf16.msra.mxu0 %v493
    %530 = vmatprep.subr.bf16.mxu0 %v498
    %531 = vmatpush1.bf16.msra.mxu0 %v497
    %532 = vmatprep.subr.bf16.mxu0 %v502
    %533 = vmatpush1.bf16.msra.mxu0 %v501
    %534 = vmatprep.subr.bf16.mxu0 %v506
    %535 = vmatpush1.bf16.msra.mxu0 %v505
    %536 = vmatprep.subr.bf16.mxu0 0
    %537 = vmatpush1.bf16.msra.mxu0 0
    %538 = vmatprep.subr.bf16.mxu0 0
    %539 = vmatpush1.bf16.msra.mxu0 0
    %540 = vmatprep.subr.bf16.mxu0 0
    %541 = vmatpush1.bf16.msra.mxu0 0
    %542 = vmatprep.subr.bf16.mxu0 0
    %543 = vmatpush1.bf16.msra.mxu0 0
    %544 = vmatprep.subr.bf16.mxu0 0
    %545 = vmatpush1.bf16.msra.mxu0 0
    %546 = vmatprep.subr.bf16.mxu0 0
    %547 = vmatpush1.bf16.msra.mxu0 0
    %548 = vmatprep.subr.bf16.mxu0 0
    %549 = vmatpush1.bf16.msra.mxu0 0
    %550 = vmatprep.subr.bf16.mxu0 0
    %551 = vmatpush1.bf16.msra.mxu0 0
    %552 = vmatprep.subr.bf16.mxu0 0
    %553 = vmatpush1.bf16.msra.mxu0 0
    %554 = vmatprep.subr.bf16.mxu0 0
    %555 = vmatpush1.bf16.msra.mxu0 0
    %556 = vmatprep.subr.bf16.mxu0 0
    %557 = vmatpush1.bf16.msra.mxu0 0
    %558 = vmatprep.subr.bf16.mxu0 0
    %559 = vmatpush1.bf16.msra.mxu0 0
    %560 = vmatprep.mubr.bf16.mxu0 0
    %561 = vmatmul.mubr.bf16.gmra.mrb[0].mxu0 %v526
    %v562 = vpop.f32.mrb[0].mxu0
    %v563 = vadd.f32 %v428, %v562
    %v564 = vpop.f32.mrb[0].mxu0
    %v565 = vadd.f32 %v432, %v564
    %v566 = vpop.f32.mrb[0].mxu0
    %v567 = vadd.f32 %v428, %v566
    %v568 = vpop.f32.mrb[0].mxu0
    %v569 = vadd.f32 %v432, %v568
    %570 = vdwg.mxu0
    %571 = vmatprep.subr.bf16.mxu0 %v496
    %572 = vmatpush1.bf16.msra.mxu0 %v495
    %573 = vmatprep.subr.bf16.mxu0 %v500
    %574 = vmatpush1.bf16.msra.mxu0 %v499
    %575 = vmatprep.subr.bf16.mxu0 %v504
    %576 = vmatpush1.bf16.msra.mxu0 %v503
    %577 = vmatprep.subr.bf16.mxu0 %v508
    %578 = vmatpush1.bf16.msra.mxu0 %v507
    %579 = vmatprep.subr.bf16.mxu0 0
    %580 = vmatpush1.bf16.msra.mxu0 0
    %581 = vmatprep.subr.bf16.mxu0 0
    %582 = vmatpush1.bf16.msra.mxu0 0
    %583 = vmatprep.subr.bf16.mxu0 0
    %584 = vmatpush1.bf16.msra.mxu0 0
    %585 = vmatprep.subr.bf16.mxu0 0
    %586 = vmatpush1.bf16.msra.mxu0 0
    %587 = vmatprep.subr.bf16.mxu0 0
    %588 = vmatpush1.bf16.msra.mxu0 0
    %589 = vmatprep.subr.bf16.mxu0 0
    %590 = vmatpush1.bf16.msra.mxu0 0
    %591 = vmatprep.subr.bf16.mxu0 0
    %592 = vmatpush1.bf16.msra.mxu0 0
    %593 = vmatprep.subr.bf16.mxu0 0
    %594 = vmatpush1.bf16.msra.mxu0 0
    %595 = vmatprep.subr.bf16.mxu0 0
    %596 = vmatpush1.bf16.msra.mxu0 0
    %597 = vmatprep.subr.bf16.mxu0 0
    %598 = vmatpush1.bf16.msra.mxu0 0
    %599 = vmatprep.subr.bf16.mxu0 0
    %600 = vmatpush1.bf16.msra.mxu0 0
    %601 = vmatprep.subr.bf16.mxu0 0
    %602 = vmatpush1.bf16.msra.mxu0 0
    %603 = vmatprep.mubr.bf16.mxu0 0
    %604 = vmatmul.mubr.bf16.gmra.mrb[0].mxu0 %v526
    %v605 = vpop.f32.mrb[0].mxu0
    %v606 = vadd.f32 %v436, %v605
    %v607 = vpop.f32.mrb[0].mxu0
    %v608 = vadd.f32 %v440, %v607
    %v609 = vpop.f32.mrb[0].mxu0
    %v610 = vadd.f32 %v436, %v609
    %v611 = vpop.f32.mrb[0].mxu0
    %v612 = vadd.f32 %v440, %v611
    %613 = vdwg.mxu0
    %vm614 = vcmp.eq.s32.totalorder %v267, 0
    %v615 = vld [vmem:[%s11] sm:$0x1]
    %v616 = vld [vmem:[%s9] sm:$0xff]
    %v617 = vld [vmem:[%s9 + $0x8] sm:$0xff]
    %v618 = vld [vmem:[%s9 + $0x10] sm:$0xff]
    %v619 = vld [vmem:[%s9 + $0x18] sm:$0xff]
    %v620 = vld [vmem:[%s9 + $0x20] sm:$0xff]
    %v621 = vld [vmem:[%s9 + $0x28] sm:$0xff]
    %v622 = vld [vmem:[%s9 + $0x30] sm:$0xff]
    %v623 = vld [vmem:[%s9 + $0x38] sm:$0xff]
    %v624 = vld [vmem:[%s9 + $0x40] sm:$0xff]
    %v625 = vld [vmem:[%s9 + $0x48] sm:$0xff]
    %v626 = vld [vmem:[%s9 + $0x50] sm:$0xff]
    %v627 = vld [vmem:[%s9 + $0x58] sm:$0xff]
    %v628 = vld [vmem:[%s9 + $0x60] sm:$0xff]
    %v629 = vld [vmem:[%s9 + $0x68] sm:$0xff]
    %v630 = vld [vmem:[%s9 + $0x70] sm:$0xff]
    %v631 = vld [vmem:[%s9 + $0x78] sm:$0xff]
    %v632 = vld [vmem:[%s9 + $0x80] sm:$0xff]
    %v633 = vld [vmem:[%s9 + $0x88] sm:$0xff]
    %v634 = vld [vmem:[%s9 + $0x90] sm:$0xff]
    %v635 = vld [vmem:[%s9 + $0x98] sm:$0xff]
    %v636 = vld [vmem:[%s9 + $0xa0] sm:$0xff]
    %v637 = vld [vmem:[%s9 + $0xa8] sm:$0xff]
    %v638 = vld [vmem:[%s9 + $0xb0] sm:$0xff]
    %v639 = vld [vmem:[%s9 + $0xb8] sm:$0xff]
    %v640 = vld [vmem:[%s9 + $0xc0] sm:$0xff]
    %v641 = vld [vmem:[%s9 + $0xc8] sm:$0xff]
    %v642 = vld [vmem:[%s9 + $0xd0] sm:$0xff]
    %v643 = vld [vmem:[%s9 + $0xd8] sm:$0xff]
    %v644 = vld [vmem:[%s9 + $0xe0] sm:$0xff]
    %v645 = vld [vmem:[%s9 + $0xe8] sm:$0xff]
    %v646 = vld [vmem:[%s9 + $0xf0] sm:$0xff]
    %v647 = vld [vmem:[%s9 + $0xf8] sm:$0xff]
    %v680 = vunpack.c.l.b16 %v616
    %v681 = vunpack.c.h.b16 %v616
    %v682 = vunpack.c.l.b16 %v617
    %v683 = vunpack.c.h.b16 %v617
    %v684 = vunpack.c.l.b16 %v618
    %v685 = vunpack.c.h.b16 %v618
    %v686 = vunpack.c.l.b16 %v619
    %v687 = vunpack.c.h.b16 %v619
    %v688 = vunpack.c.l.b16 %v620
    %v689 = vunpack.c.h.b16 %v620
    %v690 = vunpack.c.l.b16 %v621
    %v691 = vunpack.c.h.b16 %v621
    %v692 = vunpack.c.l.b16 %v622
    %v693 = vunpack.c.h.b16 %v622
    %v694 = vunpack.c.l.b16 %v623
    %v695 = vunpack.c.h.b16 %v623
    %v696 = vunpack.c.l.b16 %v624
    %v697 = vunpack.c.h.b16 %v624
    %v698 = vunpack.c.l.b16 %v625
    %v699 = vunpack.c.h.b16 %v625
    %v700 = vunpack.c.l.b16 %v626
    %v701 = vunpack.c.h.b16 %v626
    %v702 = vunpack.c.l.b16 %v627
    %v703 = vunpack.c.h.b16 %v627
    %v704 = vunpack.c.l.b16 %v628
    %v705 = vunpack.c.h.b16 %v628
    %v706 = vunpack.c.l.b16 %v629
    %v707 = vunpack.c.h.b16 %v629
    %v708 = vunpack.c.l.b16 %v630
    %v709 = vunpack.c.h.b16 %v630
    %v710 = vunpack.c.l.b16 %v631
    %v711 = vunpack.c.h.b16 %v631
    %v712 = vunpack.c.l.b16 %v632
    %v713 = vunpack.c.h.b16 %v632
    %v714 = vunpack.c.l.b16 %v633
    %v715 = vunpack.c.h.b16 %v633
    %v716 = vunpack.c.l.b16 %v634
    %v717 = vunpack.c.h.b16 %v634
    %v718 = vunpack.c.l.b16 %v635
    %v719 = vunpack.c.h.b16 %v635
    %v720 = vunpack.c.l.b16 %v636
    %v721 = vunpack.c.h.b16 %v636
    %v722 = vunpack.c.l.b16 %v637
    %v723 = vunpack.c.h.b16 %v637
    %v724 = vunpack.c.l.b16 %v638
    %v725 = vunpack.c.h.b16 %v638
    %v726 = vunpack.c.l.b16 %v639
    %v727 = vunpack.c.h.b16 %v639
    %v728 = vunpack.c.l.b16 %v640
    %v729 = vunpack.c.h.b16 %v640
    %v730 = vunpack.c.l.b16 %v641
    %v731 = vunpack.c.h.b16 %v641
    %v732 = vunpack.c.l.b16 %v642
    %v733 = vunpack.c.h.b16 %v642
    %v734 = vunpack.c.l.b16 %v643
    %v735 = vunpack.c.h.b16 %v643
    %v736 = vunpack.c.l.b16 %v644
    %v737 = vunpack.c.h.b16 %v644
    %v738 = vunpack.c.l.b16 %v645
    %v739 = vunpack.c.h.b16 %v645
    %v740 = vunpack.c.l.b16 %v646
    %v741 = vunpack.c.h.b16 %v646
    %v742 = vunpack.c.l.b16 %v647
    %v743 = vunpack.c.h.b16 %v647
    %v744 = vpack.c.b16 %v684, %v680
    %v745 = vpack.c.b16 %v685, %v681
    %v746 = vpack.c.b16 %v686, %v682
    %v747 = vpack.c.b16 %v687, %v683
    %v748 = vpack.c.b16 %v692, %v688
    %v749 = vpack.c.b16 %v693, %v689
    %v750 = vpack.c.b16 %v694, %v690
    %v751 = vpack.c.b16 %v695, %v691
    %v752 = vpack.c.b16 %v700, %v696
    %v753 = vpack.c.b16 %v701, %v697
    %v754 = vpack.c.b16 %v702, %v698
    %v755 = vpack.c.b16 %v703, %v699
    %v756 = vpack.c.b16 %v708, %v704
    %v757 = vpack.c.b16 %v709, %v705
    %v758 = vpack.c.b16 %v710, %v706
    %v759 = vpack.c.b16 %v711, %v707
    %v760 = vpack.c.b16 %v716, %v712
    %v761 = vpack.c.b16 %v717, %v713
    %v762 = vpack.c.b16 %v718, %v714
    %v763 = vpack.c.b16 %v719, %v715
    %v764 = vpack.c.b16 %v724, %v720
    %v765 = vpack.c.b16 %v725, %v721
    %v766 = vpack.c.b16 %v726, %v722
    %v767 = vpack.c.b16 %v727, %v723
    %v768 = vpack.c.b16 %v732, %v728
    %v769 = vpack.c.b16 %v733, %v729
    %v770 = vpack.c.b16 %v734, %v730
    %v771 = vpack.c.b16 %v735, %v731
    %v772 = vpack.c.b16 %v740, %v736
    %v773 = vpack.c.b16 %v741, %v737
    %v774 = vpack.c.b16 %v742, %v738
    %v775 = vpack.c.b16 %v743, %v739
    %808 = vmatprep.subr.bf16.mxu0 %v745
    %809 = vmatpush1.bf16.msra.mxu0 %v744
    %810 = vmatprep.subr.bf16.mxu0 %v749
    %811 = vmatpush1.bf16.msra.mxu0 %v748
    %812 = vmatprep.subr.bf16.mxu0 %v753
    %813 = vmatpush1.bf16.msra.mxu0 %v752
    %814 = vmatprep.subr.bf16.mxu0 %v757
    %815 = vmatpush1.bf16.msra.mxu0 %v756
    %816 = vmatprep.subr.bf16.mxu0 %v761
    %817 = vmatpush1.bf16.msra.mxu0 %v760
    %818 = vmatprep.subr.bf16.mxu0 %v765
    %819 = vmatpush1.bf16.msra.mxu0 %v764
    %820 = vmatprep.subr.bf16.mxu0 %v769
    %821 = vmatpush1.bf16.msra.mxu0 %v768
    %822 = vmatprep.subr.bf16.mxu0 %v773
    %823 = vmatpush1.bf16.msra.mxu0 %v772
    %824 = vmatprep.subr.bf16.mxu0 0
    %825 = vmatpush1.bf16.msra.mxu0 0
    %826 = vmatprep.subr.bf16.mxu0 0
    %827 = vmatpush1.bf16.msra.mxu0 0
    %828 = vmatprep.subr.bf16.mxu0 0
    %829 = vmatpush1.bf16.msra.mxu0 0
    %830 = vmatprep.subr.bf16.mxu0 0
    %831 = vmatpush1.bf16.msra.mxu0 0
    %832 = vmatprep.subr.bf16.mxu0 0
    %833 = vmatpush1.bf16.msra.mxu0 0
    %834 = vmatprep.subr.bf16.mxu0 0
    %835 = vmatpush1.bf16.msra.mxu0 0
    %836 = vmatprep.subr.bf16.mxu0 0
    %837 = vmatpush1.bf16.msra.mxu0 0
    %838 = vmatprep.subr.bf16.mxu0 0
    %839 = vmatpush1.bf16.msra.mxu0 0
    %840 = vmatprep.mubr.bf16.mxu0 0
    %841 = vmatmul.mubr.bf16.gmra.mrb[0].mxu0 0
    %v842 = vpop.f32.mrb[0].mxu0
    %v843 = vadd.f32 0.0, %v842
    %v844 = vpop.f32.mrb[0].mxu0
    %v845 = vadd.f32 0.0, %v844
    %v846 = vpop.f32.mrb[0].mxu0
    %v847 = vpop.f32.mrb[0].mxu0
    %848 = vdwg.mxu0
    %849 = vmatprep.subr.bf16.mxu0 %v747
    %850 = vmatpush1.bf16.msra.mxu0 %v746
    %851 = vmatprep.subr.bf16.mxu0 %v751
    %852 = vmatpush1.bf16.msra.mxu0 %v750
    %853 = vmatprep.subr.bf16.mxu0 %v755
    %854 = vmatpush1.bf16.msra.mxu0 %v754
    %855 = vmatprep.subr.bf16.mxu0 %v759
    %856 = vmatpush1.bf16.msra.mxu0 %v758
    %857 = vmatprep.subr.bf16.mxu0 %v763
    %858 = vmatpush1.bf16.msra.mxu0 %v762
    %859 = vmatprep.subr.bf16.mxu0 %v767
    %860 = vmatpush1.bf16.msra.mxu0 %v766
    %861 = vmatprep.subr.bf16.mxu0 %v771
    %862 = vmatpush1.bf16.msra.mxu0 %v770
    %863 = vmatprep.subr.bf16.mxu0 %v775
    %864 = vmatpush1.bf16.msra.mxu0 %v774
    %865 = vmatprep.subr.bf16.mxu0 0
    %866 = vmatpush1.bf16.msra.mxu0 0
    %867 = vmatprep.subr.bf16.mxu0 0
    %868 = vmatpush1.bf16.msra.mxu0 0
    %869 = vmatprep.subr.bf16.mxu0 0
    %870 = vmatpush1.bf16.msra.mxu0 0
    %871 = vmatprep.subr.bf16.mxu0 0
    %872 = vmatpush1.bf16.msra.mxu0 0
    %873 = vmatprep.subr.bf16.mxu0 0
    %874 = vmatpush1.bf16.msra.mxu0 0
    %875 = vmatprep.subr.bf16.mxu0 0
    %876 = vmatpush1.bf16.msra.mxu0 0
    %877 = vmatprep.subr.bf16.mxu0 0
    %878 = vmatpush1.bf16.msra.mxu0 0
    %879 = vmatprep.subr.bf16.mxu0 0
    %880 = vmatpush1.bf16.msra.mxu0 0
    %881 = vmatprep.mubr.bf16.mxu0 0
    %882 = vmatmul.mubr.bf16.gmra.mrb[0].mxu0 0
    %v883 = vpop.f32.mrb[0].mxu0
    %v884 = vadd.f32 0.0, %v883
    %v885 = vpop.f32.mrb[0].mxu0
    %v886 = vadd.f32 0.0, %v885
    %v887 = vpop.f32.mrb[0].mxu0
    %v888 = vpop.f32.mrb[0].mxu0
    %889 = vdwg.mxu0
    %v890 = vadd.f32 %v563, %v843
    %v891 = vadd.f32 %v565, %v845
    %v892 = vadd.f32 %v606, %v884
    %v893 = vadd.f32 %v608, %v886
    %v894 = vsub.f32 0.0, %v890
    %v895 = vmul.f32 %v894, 1.442695
    %v896 = vpow.pop %v895
    %v897 = vadd.f32 %v896, 1.0
    %v898 = vrcp.pop %v897
    %v899 = vmul.f32 1.0, %v898
    %v900 = vsub.f32 0.0, %v891
    %v901 = vmul.f32 %v900, 1.442695
    %v902 = vpow.pop %v901
    %v903 = vadd.f32 %v902, 1.0
    %v904 = vrcp.pop %v903
    %v905 = vmul.f32 1.0, %v904
    %v906 = vtanh.pop %v892
    %v907 = vsub.f32 0.0, %v893
    %v908 = vmul.f32 %v907, 1.442695
    %v909 = vpow.pop %v908
    %v910 = vadd.f32 %v909, 1.0
    %v911 = vrcp.pop %v910
    %v912 = vmul.f32 1.0, %v911
    %v913 = vmul.f32 %v905, 0.0
    %v914 = vmul.f32 %v899, %v906
    %v915 = vadd.f32 %v913, %v914
    %v916 = vtanh.pop %v915
    %v917 = vmul.f32 %v912, %v916
    %vm918 = vmor %vm274, %vm614
    %v919 = vsel %vm918, -inf, 0.0
    %v920 = vpack.c.bf16 %v917, %v917
    %v921 = vld [vmem:[#allocation5] sm:$0xf]
    %v922 = vld [vmem:[#allocation5 + $0x4] sm:$0xf]
    %v923 = vld [vmem:[#allocation5 + $0x8] sm:$0xf]
    %v924 = vld [vmem:[#allocation5 + $0xc] sm:$0xf]
    %v925 = vld [vmem:[#allocation5 + $0x10] sm:$0xf]
    %v926 = vld [vmem:[#allocation5 + $0x14] sm:$0xf]
    %v927 = vld [vmem:[#allocation5 + $0x18] sm:$0xf]
    %v928 = vld [vmem:[#allocation5 + $0x1c] sm:$0xf]
    %v929 = vld [vmem:[#allocation5 + $0x20] sm:$0xf]
    %v930 = vld [vmem:[#allocation5 + $0x24] sm:$0xf]
    %v931 = vld [vmem:[#allocation5 + $0x28] sm:$0xf]
    %v932 = vld [vmem:[#allocation5 + $0x2c] sm:$0xf]
    %v933 = vld [vmem:[#allocation5 + $0x30] sm:$0xf]
    %v934 = vld [vmem:[#allocation5 + $0x34] sm:$0xf]
    %v935 = vld [vmem:[#allocation5 + $0x38] sm:$0xf]
    %v936 = vld [vmem:[#allocation5 + $0x3c] sm:$0xf]
    %v938 = vlaneseq
    %v939 = vshrl.u32 %v938, 7
    %v940 = vsub.s32 0, %v939
    %v941 = vrot.slane %v615, %v940
    %v959 = vunpack.c.l.b16 %v921
    %v960 = vunpack.c.l.b16 %v922
    %v961 = vunpack.c.l.b16 %v923
    %v962 = vunpack.c.l.b16 %v924
    %v963 = vunpack.c.l.b16 %v925
    %v964 = vunpack.c.l.b16 %v926
    %v965 = vunpack.c.l.b16 %v927
    %v966 = vunpack.c.l.b16 %v928
    %v967 = vunpack.c.l.b16 %v929
    %v968 = vunpack.c.l.b16 %v930
    %v969 = vunpack.c.l.b16 %v931
    %v970 = vunpack.c.l.b16 %v932
    %v971 = vunpack.c.l.b16 %v933
    %v972 = vunpack.c.l.b16 %v934
    %v973 = vunpack.c.l.b16 %v935
    %v974 = vunpack.c.l.b16 %v936
    %v975 = vpack.c.b16 %v960, %v959
    %v976 = vpack.c.b16 %v962, %v961
    %v977 = vpack.c.b16 %v964, %v963
    %v978 = vpack.c.b16 %v966, %v965
    %v979 = vpack.c.b16 %v968, %v967
    %v980 = vpack.c.b16 %v970, %v969
    %v981 = vpack.c.b16 %v972, %v971
    %v982 = vpack.c.b16 %v974, %v973
    %991 = vmatprep.subr.bf16.mxu0 0
    %992 = vmatpush1.bf16.msra.mxu0 %v975
    %993 = vmatprep.subr.bf16.mxu0 0
    %994 = vmatpush1.bf16.msra.mxu0 %v976
    %995 = vmatprep.subr.bf16.mxu0 0
    %996 = vmatpush1.bf16.msra.mxu0 %v977
    %997 = vmatprep.subr.bf16.mxu0 0
    %998 = vmatpush1.bf16.msra.mxu0 %v978
    %999 = vmatprep.subr.bf16.mxu0 0
    %1000 = vmatpush1.bf16.msra.mxu0 %v979
    %1001 = vmatprep.subr.bf16.mxu0 0
    %1002 = vmatpush1.bf16.msra.mxu0 %v980
    %1003 = vmatprep.subr.bf16.mxu0 0
    %1004 = vmatpush1.bf16.msra.mxu0 %v981
    %1005 = vmatprep.subr.bf16.mxu0 0
    %1006 = vmatpush1.bf16.msra.mxu0 %v982
    %1007 = vmatprep.subr.bf16.mxu0 0
    %1008 = vmatpush1.bf16.msra.mxu0 0
    %1009 = vmatprep.subr.bf16.mxu0 0
    %1010 = vmatpush1.bf16.msra.mxu0 0
    %1011 = vmatprep.subr.bf16.mxu0 0
    %1012 = vmatpush1.bf16.msra.mxu0 0
    %1013 = vmatprep.subr.bf16.mxu0 0
    %1014 = vmatpush1.bf16.msra.mxu0 0
    %1015 = vmatprep.subr.bf16.mxu0 0
    %1016 = vmatpush1.bf16.msra.mxu0 0
    %1017 = vmatprep.subr.bf16.mxu0 0
    %1018 = vmatpush1.bf16.msra.mxu0 0
    %1019 = vmatprep.subr.bf16.mxu0 0
    %1020 = vmatpush1.bf16.msra.mxu0 0
    %1021 = vmatprep.subr.bf16.mxu0 0
    %1022 = vmatpush1.bf16.msra.mxu0 0
    %1023 = vmatprep.mubr.bf16.mxu0 0
    %1024 = vmatmul.mubr.bf16.gmra.mrb[0].mxu0 %v920
    %v1025 = vpop.f32.mrb[0].mxu0
    %v1026 = vadd.f32 %v941, %v1025
    %v1027 = vpop.f32.mrb[0].mxu0
    %v1028 = vpop.f32.mrb[0].mxu0
    %v1029 = vpop.f32.mrb[0].mxu0
    %1030 = vdwg.mxu0
    %v1031 = vadd.f32 %v1026, %v919
    %1032 = vst [vmem:[#allocation7] sm:$0x1] %v1031
    %1033 = vst [vmem:[#allocation7 + $0x7] sm:$0x2] %v1031
    %v1034 = vld [vmem:[%s9] sm:$0xff]
    %v1035 = vld [vmem:[%s9 + $0x8] sm:$0xff]
    %v1036 = vld [vmem:[%s9 + $0x10] sm:$0xff]
    %v1037 = vld [vmem:[%s9 + $0x18] sm:$0xff]
    %v1038 = vld [vmem:[%s9 + $0x20] sm:$0xff]
    %v1039 = vld [vmem:[%s9 + $0x28] sm:$0xff]
    %v1040 = vld [vmem:[%s9 + $0x30] sm:$0xff]
    %v1041 = vld [vmem:[%s9 + $0x38] sm:$0xff]
    %v1042 = vld [vmem:[%s9 + $0x40] sm:$0xff]
    %v1043 = vld [vmem:[%s9 + $0x48] sm:$0xff]
    %v1044 = vld [vmem:[%s9 + $0x50] sm:$0xff]
    %v1045 = vld [vmem:[%s9 + $0x58] sm:$0xff]
    %v1046 = vld [vmem:[%s9 + $0x60] sm:$0xff]
    %v1047 = vld [vmem:[%s9 + $0x68] sm:$0xff]
    %v1048 = vld [vmem:[%s9 + $0x70] sm:$0xff]
    %v1049 = vld [vmem:[%s9 + $0x78] sm:$0xff]
    %v1050 = vld [vmem:[%s9 + $0x80] sm:$0xff]
    %v1051 = vld [vmem:[%s9 + $0x88] sm:$0xff]
    %v1052 = vld [vmem:[%s9 + $0x90] sm:$0xff]
    %v1053 = vld [vmem:[%s9 + $0x98] sm:$0xff]
    %v1054 = vld [vmem:[%s9 + $0xa0] sm:$0xff]
    %v1055 = vld [vmem:[%s9 + $0xa8] sm:$0xff]
    %v1056 = vld [vmem:[%s9 + $0xb0] sm:$0xff]
    %v1057 = vld [vmem:[%s9 + $0xb8] sm:$0xff]
    %v1058 = vld [vmem:[%s9 + $0xc0] sm:$0xff]
    %v1059 = vld [vmem:[%s9 + $0xc8] sm:$0xff]
    %v1060 = vld [vmem:[%s9 + $0xd0] sm:$0xff]
    %v1061 = vld [vmem:[%s9 + $0xd8] sm:$0xff]
    %v1062 = vld [vmem:[%s9 + $0xe0] sm:$0xff]
    %v1063 = vld [vmem:[%s9 + $0xe8] sm:$0xff]
    %v1064 = vld [vmem:[%s9 + $0xf0] sm:$0xff]
    %v1065 = vld [vmem:[%s9 + $0xf8] sm:$0xff]
    %v1098 = vunpack.c.l.b16 %v1034
    %v1099 = vunpack.c.h.b16 %v1034
    %v1100 = vunpack.c.l.b16 %v1035
    %v1101 = vunpack.c.h.b16 %v1035
    %v1102 = vunpack.c.l.b16 %v1036
    %v1103 = vunpack.c.h.b16 %v1036
    %v1104 = vunpack.c.l.b16 %v1037
    %v1105 = vunpack.c.h.b16 %v1037
    %v1106 = vunpack.c.l.b16 %v1038
    %v1107 = vunpack.c.h.b16 %v1038
    %v1108 = vunpack.c.l.b16 %v1039
    %v1109 = vunpack.c.h.b16 %v1039
    %v1110 = vunpack.c.l.b16 %v1040
    %v1111 = vunpack.c.h.b16 %v1040
    %v1112 = vunpack.c.l.b16 %v1041
    %v1113 = vunpack.c.h.b16 %v1041
    %v1114 = vunpack.c.l.b16 %v1042
    %v1115 = vunpack.c.h.b16 %v1042
    %v1116 = vunpack.c.l.b16 %v1043
    %v1117 = vunpack.c.h.b16 %v1043
    %v1118 = vunpack.c.l.b16 %v1044
    %v1119 = vunpack.c.h.b16 %v1044
    %v1120 = vunpack.c.l.b16 %v1045
    %v1121 = vunpack.c.h.b16 %v1045
    %v1122 = vunpack.c.l.b16 %v1046
    %v1123 = vunpack.c.h.b16 %v1046
    %v1124 = vunpack.c.l.b16 %v1047
    %v1125 = vunpack.c.h.b16 %v1047
    %v1126 = vunpack.c.l.b16 %v1048
    %v1127 = vunpack.c.h.b16 %v1048
    %v1128 = vunpack.c.l.b16 %v1049
    %v1129 = vunpack.c.h.b16 %v1049
    %v1130 = vunpack.c.l.b16 %v1050
    %v1131 = vunpack.c.h.b16 %v1050
    %v1132 = vunpack.c.l.b16 %v1051
    %v1133 = vunpack.c.h.b16 %v1051
    %v1134 = vunpack.c.l.b16 %v1052
    %v1135 = vunpack.c.h.b16 %v1052
    %v1136 = vunpack.c.l.b16 %v1053
    %v1137 = vunpack.c.h.b16 %v1053
    %v1138 = vunpack.c.l.b16 %v1054
    %v1139 = vunpack.c.h.b16 %v1054
    %v1140 = vunpack.c.l.b16 %v1055
    %v1141 = vunpack.c.h.b16 %v1055
    %v1142 = vunpack.c.l.b16 %v1056
    %v1143 = vunpack.c.h.b16 %v1056
    %v1144 = vunpack.c.l.b16 %v1057
    %v1145 = vunpack.c.h.b16 %v1057
    %v1146 = vunpack.c.l.b16 %v1058
    %v1147 = vunpack.c.h.b16 %v1058
    %v1148 = vunpack.c.l.b16 %v1059
    %v1149 = vunpack.c.h.b16 %v1059
    %v1150 = vunpack.c.l.b16 %v1060
    %v1151 = vunpack.c.h.b16 %v1060
    %v1152 = vunpack.c.l.b16 %v1061
    %v1153 = vunpack.c.h.b16 %v1061
    %v1154 = vunpack.c.l.b16 %v1062
    %v1155 = vunpack.c.h.b16 %v1062
    %v1156 = vunpack.c.l.b16 %v1063
    %v1157 = vunpack.c.h.b16 %v1063
    %v1158 = vunpack.c.l.b16 %v1064
    %v1159 = vunpack.c.h.b16 %v1064
    %v1160 = vunpack.c.l.b16 %v1065
    %v1161 = vunpack.c.h.b16 %v1065
    %v1162 = vpack.c.b16 %v1102, %v1098
    %v1163 = vpack.c.b16 %v1103, %v1099
    %v1164 = vpack.c.b16 %v1104, %v1100
    %v1165 = vpack.c.b16 %v1105, %v1101
    %v1166 = vpack.c.b16 %v1110, %v1106
    %v1167 = vpack.c.b16 %v1111, %v1107
    %v1168 = vpack.c.b16 %v1112, %v1108
    %v1169 = vpack.c.b16 %v1113, %v1109
    %v1170 = vpack.c.b16 %v1118, %v1114
    %v1171 = vpack.c.b16 %v1119, %v1115
    %v1172 = vpack.c.b16 %v1120, %v1116
    %v1173 = vpack.c.b16 %v1121, %v1117
    %v1174 = vpack.c.b16 %v1126, %v1122
    %v1175 = vpack.c.b16 %v1127, %v1123
    %v1176 = vpack.c.b16 %v1128, %v1124
    %v1177 = vpack.c.b16 %v1129, %v1125
    %v1178 = vpack.c.b16 %v1134, %v1130
    %v1179 = vpack.c.b16 %v1135, %v1131
    %v1180 = vpack.c.b16 %v1136, %v1132
    %v1181 = vpack.c.b16 %v1137, %v1133
    %v1182 = vpack.c.b16 %v1142, %v1138
    %v1183 = vpack.c.b16 %v1143, %v1139
    %v1184 = vpack.c.b16 %v1144, %v1140
    %v1185 = vpack.c.b16 %v1145, %v1141
    %v1186 = vpack.c.b16 %v1150, %v1146
    %v1187 = vpack.c.b16 %v1151, %v1147
    %v1188 = vpack.c.b16 %v1152, %v1148
    %v1189 = vpack.c.b16 %v1153, %v1149
    %v1190 = vpack.c.b16 %v1158, %v1154
    %v1191 = vpack.c.b16 %v1159, %v1155
    %v1192 = vpack.c.b16 %v1160, %v1156
    %v1193 = vpack.c.b16 %v1161, %v1157
    %1226 = vmatprep.subr.bf16.mxu0 %v1163
    %1227 = vmatpush1.bf16.msra.mxu0 %v1162
    %1228 = vmatprep.subr.bf16.mxu0 %v1167
    %1229 = vmatpush1.bf16.msra.mxu0 %v1166
    %1230 = vmatprep.subr.bf16.mxu0 %v1171
    %1231 = vmatpush1.bf16.msra.mxu0 %v1170
    %1232 = vmatprep.subr.bf16.mxu0 %v1175
    %1233 = vmatpush1.bf16.msra.mxu0 %v1174
    %1234 = vmatprep.subr.bf16.mxu0 %v1179
    %1235 = vmatpush1.bf16.msra.mxu0 %v1178
    %1236 = vmatprep.subr.bf16.mxu0 %v1183
    %1237 = vmatpush1.bf16.msra.mxu0 %v1182
    %1238 = vmatprep.subr.bf16.mxu0 %v1187
    %1239 = vmatpush1.bf16.msra.mxu0 %v1186
    %1240 = vmatprep.subr.bf16.mxu0 %v1191
    %1241 = vmatpush1.bf16.msra.mxu0 %v1190
    %1242 = vmatprep.subr.bf16.mxu0 0
    %1243 = vmatpush1.bf16.msra.mxu0 0
    %1244 = vmatprep.subr.bf16.mxu0 0
    %1245 = vmatpush1.bf16.msra.mxu0 0
    %1246 = vmatprep.subr.bf16.mxu0 0
    %1247 = vmatpush1.bf16.msra.mxu0 0
    %1248 = vmatprep.subr.bf16.mxu0 0
    %1249 = vmatpush1.bf16.msra.mxu0 0
    %1250 = vmatprep.subr.bf16.mxu0 0
    %1251 = vmatpush1.bf16.msra.mxu0 0
    %1252 = vmatprep.subr.bf16.mxu0 0
    %1253 = vmatpush1.bf16.msra.mxu0 0
    %1254 = vmatprep.subr.bf16.mxu0 0
    %1255 = vmatpush1.bf16.msra.mxu0 0
    %1256 = vmatprep.subr.bf16.mxu0 0
    %1257 = vmatpush1.bf16.msra.mxu0 0
    %1258 = vmatprep.mubr.bf16.mxu0 0
    %1259 = vmatmul.mubr.bf16.gmra.mrb[0].mxu0 %v920
    %v1260 = vpop.f32.mrb[0].mxu0
    %v1261 = vadd.f32 0.0, %v1260
    %v1262 = vpop.f32.mrb[0].mxu0
    %v1263 = vadd.f32 0.0, %v1262
    %v1264 = vpop.f32.mrb[0].mxu0
    %v1265 = vpop.f32.mrb[0].mxu0
    %1266 = vdwg.mxu0
    %1267 = vmatprep.subr.bf16.mxu0 %v1165
    %1268 = vmatpush1.bf16.msra.mxu0 %v1164
    %1269 = vmatprep.subr.bf16.mxu0 %v1169
    %1270 = vmatpush1.bf16.msra.mxu0 %v1168
    %1271 = vmatprep.subr.bf16.mxu0 %v1173
    %1272 = vmatpush1.bf16.msra.mxu0 %v1172
    %1273 = vmatprep.subr.bf16.mxu0 %v1177
    %1274 = vmatpush1.bf16.msra.mxu0 %v1176
    %1275 = vmatprep.subr.bf16.mxu0 %v1181
    %1276 = vmatpush1.bf16.msra.mxu0 %v1180
    %1277 = vmatprep.subr.bf16.mxu0 %v1185
    %1278 = vmatpush1.bf16.msra.mxu0 %v1184
    %1279 = vmatprep.subr.bf16.mxu0 %v1189
    %1280 = vmatpush1.bf16.msra.mxu0 %v1188
    %1281 = vmatprep.subr.bf16.mxu0 %v1193
    %1282 = vmatpush1.bf16.msra.mxu0 %v1192
    %1283 = vmatprep.subr.bf16.mxu0 0
    %1284 = vmatpush1.bf16.msra.mxu0 0
    %1285 = vmatprep.subr.bf16.mxu0 0
    %1286 = vmatpush1.bf16.msra.mxu0 0
    %1287 = vmatprep.subr.bf16.mxu0 0
    %1288 = vmatpush1.bf16.msra.mxu0 0
    %1289 = vmatprep.subr.bf16.mxu0 0
    %1290 = vmatpush1.bf16.msra.mxu0 0
    %1291 = vmatprep.subr.bf16.mxu0 0
    %1292 = vmatpush1.bf16.msra.mxu0 0
    %1293 = vmatprep.subr.bf16.mxu0 0
    %1294 = vmatpush1.bf16.msra.mxu0 0
    %1295 = vmatprep.subr.bf16.mxu0 0
    %1296 = vmatpush1.bf16.msra.mxu0 0
    %1297 = vmatprep.subr.bf16.mxu0 0
    %1298 = vmatpush1.bf16.msra.mxu0 0
    %1299 = vmatprep.mubr.bf16.mxu0 0
    %1300 = vmatmul.mubr.bf16.gmra.mrb[0].mxu0 %v920
    %v1301 = vpop.f32.mrb[0].mxu0
    %v1302 = vadd.f32 0.0, %v1301
    %v1303 = vpop.f32.mrb[0].mxu0
    %v1304 = vadd.f32 0.0, %v1303
    %v1305 = vpop.f32.mrb[0].mxu0
    %v1306 = vpop.f32.mrb[0].mxu0
    %1307 = vdwg.mxu0
    %v1312 = vrot.slane %v1261, 6
    %v1313 = vrot.slane %v1263, 6
    %v1314 = vrot.slane %v1302, 6
    %v1315 = vrot.slane %v1304, 6
    %v1320 = vadd.f32 %v563, %v1312
    %v1321 = vadd.f32 %v565, %v1313
    %v1322 = vadd.f32 %v606, %v1314
    %v1323 = vadd.f32 %v608, %v1315
    %v1324 = vsub.f32 0.0, %v1320
    %v1325 = vmul.f32 %v1324, 1.442695
    %v1326 = vpow.pop %v1325
    %v1327 = vadd.f32 %v1326, 1.0
    %v1328 = vrcp.pop %v1327
    %v1329 = vmul.f32 1.0, %v1328
    %v1330 = vsub.f32 0.0, %v1321
    %v1331 = vmul.f32 %v1330, 1.442695
    %v1332 = vpow.pop %v1331
    %v1333 = vadd.f32 %v1332, 1.0
    %v1334 = vrcp.pop %v1333
    %v1335 = vmul.f32 1.0, %v1334
    %v1336 = vtanh.pop %v1322
    %v1337 = vsub.f32 0.0, %v1323
    %v1338 = vmul.f32 %v1337, 1.442695
    %v1339 = vpow.pop %v1338
    %v1340 = vadd.f32 %v1339, 1.0
    %v1341 = vrcp.pop %v1340
    %v1342 = vmul.f32 1.0, %v1341
    %v1344 = vrot.slane %v915, 6
    %v1346 = vmul.f32 %v1335, %v1344
    %v1347 = vmul.f32 %v1329, %v1336
    %v1348 = vadd.f32 %v1346, %v1347
    %v1349 = vtanh.pop %v1348
    %v1350 = vmul.f32 %v1342, %v1349
    %v1351 = vsel %vm274, 1, 0
    %v1352 = vrot.slane %v1351, 2
    %vm1353 = vcmp.ne.s32.totalorder %v1352, 0
    %vm1354 = vmor %vm274, %vm1353
    %vm1355 = vmor %vm1354, %vm614
    %v1356 = vsel %vm1355, -inf, 0.0
    %v1357 = vpack.c.bf16 %v1350, %v1350
    %v1358 = vld [vmem:[#allocation5] sm:$0xf]
    %v1359 = vld [vmem:[#allocation5 + $0x4] sm:$0xf]
    %v1360 = vld [vmem:[#allocation5 + $0x8] sm:$0xf]
    %v1361 = vld [vmem:[#allocation5 + $0xc] sm:$0xf]
    %v1362 = vld [vmem:[#allocation5 + $0x10] sm:$0xf]
    %v1363 = vld [vmem:[#allocation5 + $0x14] sm:$0xf]
    %v1364 = vld [vmem:[#allocation5 + $0x18] sm:$0xf]
    %v1365 = vld [vmem:[#allocation5 + $0x1c] sm:$0xf]
    %v1366 = vld [vmem:[#allocation5 + $0x20] sm:$0xf]
    %v1367 = vld [vmem:[#allocation5 + $0x24] sm:$0xf]
    %v1368 = vld [vmem:[#allocation5 + $0x28] sm:$0xf]
    %v1369 = vld [vmem:[#allocation5 + $0x2c] sm:$0xf]
    %v1370 = vld [vmem:[#allocation5 + $0x30] sm:$0xf]
    %v1371 = vld [vmem:[#allocation5 + $0x34] sm:$0xf]
    %v1372 = vld [vmem:[#allocation5 + $0x38] sm:$0xf]
    %v1373 = vld [vmem:[#allocation5 + $0x3c] sm:$0xf]
    %v1375 = vrot.slane %v1357, 1
    %v1393 = vunpack.c.l.b16 %v1358
    %v1394 = vunpack.c.l.b16 %v1359
    %v1395 = vunpack.c.l.b16 %v1360
    %v1396 = vunpack.c.l.b16 %v1361
    %v1397 = vunpack.c.l.b16 %v1362
    %v1398 = vunpack.c.l.b16 %v1363
    %v1399 = vunpack.c.l.b16 %v1364
    %v1400 = vunpack.c.l.b16 %v1365
    %v1401 = vunpack.c.l.b16 %v1366
    %v1402 = vunpack.c.l.b16 %v1367
    %v1403 = vunpack.c.l.b16 %v1368
    %v1404 = vunpack.c.l.b16 %v1369
    %v1405 = vunpack.c.l.b16 %v1370
    %v1406 = vunpack.c.l.b16 %v1371
    %v1407 = vunpack.c.l.b16 %v1372
    %v1408 = vunpack.c.l.b16 %v1373
    %v1409 = vpack.c.b16 %v1394, %v1393
    %v1410 = vpack.c.b16 %v1396, %v1395
    %v1411 = vpack.c.b16 %v1398, %v1397
    %v1412 = vpack.c.b16 %v1400, %v1399
    %v1413 = vpack.c.b16 %v1402, %v1401
    %v1414 = vpack.c.b16 %v1404, %v1403
    %v1415 = vpack.c.b16 %v1406, %v1405
    %v1416 = vpack.c.b16 %v1408, %v1407
    %1425 = vmatprep.subr.bf16.mxu0 0
    %1426 = vmatpush1.bf16.msra.mxu0 %v1409
    %1427 = vmatprep.subr.bf16.mxu0 0
    %1428 = vmatpush1.bf16.msra.mxu0 %v1410
    %1429 = vmatprep.subr.bf16.mxu0 0
    %1430 = vmatpush1.bf16.msra.mxu0 %v1411
    %1431 = vmatprep.subr.bf16.mxu0 0
    %1432 = vmatpush1.bf16.msra.mxu0 %v1412
    %1433 = vmatprep.subr.bf16.mxu0 0
    %1434 = vmatpush1.bf16.msra.mxu0 %v1413
    %1435 = vmatprep.subr.bf16.mxu0 0
    %1436 = vmatpush1.bf16.msra.mxu0 %v1414
    %1437 = vmatprep.subr.bf16.mxu0 0
    %1438 = vmatpush1.bf16.msra.mxu0 %v1415
    %1439 = vmatprep.subr.bf16.mxu0 0
    %1440 = vmatpush1.bf16.msra.mxu0 %v1416
    %1441 = vmatprep.subr.bf16.mxu0 0
    %1442 = vmatpush1.bf16.msra.mxu0 0
    %1443 = vmatprep.subr.bf16.mxu0 0
    %1444 = vmatpush1.bf16.msra.mxu0 0
    %1445 = vmatprep.subr.bf16.mxu0 0
    %1446 = vmatpush1.bf16.msra.mxu0 0
    %1447 = vmatprep.subr.bf16.mxu0 0
    %1448 = vmatpush1.bf16.msra.mxu0 0
    %1449 = vmatprep.subr.bf16.mxu0 0
    %1450 = vmatpush1.bf16.msra.mxu0 0
    %1451 = vmatprep.subr.bf16.mxu0 0
    %1452 = vmatpush1.bf16.msra.mxu0 0
    %1453 = vmatprep.subr.bf16.mxu0 0
    %1454 = vmatpush1.bf16.msra.mxu0 0
    %1455 = vmatprep.subr.bf16.mxu0 0
    %1456 = vmatpush1.bf16.msra.mxu0 0
    %1457 = vmatprep.mubr.bf16.mxu0 0
    %1458 = vmatmul.mubr.bf16.gmra.mrb[0].mxu0 %v1375
    %v1459 = vpop.f32.mrb[0].mxu0
    %v1460 = vadd.f32 %v941, %v1459
    %v1461 = vpop.f32.mrb[0].mxu0
    %v1462 = vpop.f32.mrb[0].mxu0
    %v1463 = vpop.f32.mrb[0].mxu0
    %1464 = vdwg.mxu0
    %v1465 = vadd.f32 %v1460, %v1356
    %1466 = vst [vmem:[#allocation7 + $0x1] sm:$0x1] %v1465
    %1467 = vst [vmem:[#allocation7 + $0x8] sm:$0x2] %v1465
    %v1468 = vld [vmem:[%s9] sm:$0xff]
    %v1469 = vld [vmem:[%s9 + $0x8] sm:$0xff]
    %v1470 = vld [vmem:[%s9 + $0x10] sm:$0xff]
    %v1471 = vld [vmem:[%s9 + $0x18] sm:$0xff]
    %v1472 = vld [vmem:[%s9 + $0x20] sm:$0xff]
    %v1473 = vld [vmem:[%s9 + $0x28] sm:$0xff]
    %v1474 = vld [vmem:[%s9 + $0x30] sm:$0xff]
    %v1475 = vld [vmem:[%s9 + $0x38] sm:$0xff]
    %v1476 = vld [vmem:[%s9 + $0x40] sm:$0xff]
    %v1477 = vld [vmem:[%s9 + $0x48] sm:$0xff]
    %v1478 = vld [vmem:[%s9 + $0x50] sm:$0xff]
    %v1479 = vld [vmem:[%s9 + $0x58] sm:$0xff]
    %v1480 = vld [vmem:[%s9 + $0x60] sm:$0xff]
    %v1481 = vld [vmem:[%s9 + $0x68] sm:$0xff]
    %v1482 = vld [vmem:[%s9 + $0x70] sm:$0xff]
    %v1483 = vld [vmem:[%s9 + $0x78] sm:$0xff]
    %v1484 = vld [vmem:[%s9 + $0x80] sm:$0xff]
    %v1485 = vld [vmem:[%s9 + $0x88] sm:$0xff]
    %v1486 = vld [vmem:[%s9 + $0x90] sm:$0xff]
    %v1487 = vld [vmem:[%s9 + $0x98] sm:$0xff]
    %v1488 = vld [vmem:[%s9 + $0xa0] sm:$0xff]
    %v1489 = vld [vmem:[%s9 + $0xa8] sm:$0xff]
    %v1490 = vld [vmem:[%s9 + $0xb0] sm:$0xff]
    %v1491 = vld [vmem:[%s9 + $0xb8] sm:$0xff]
    %v1492 = vld [vmem:[%s9 + $0xc0] sm:$0xff]
    %v1493 = vld [vmem:[%s9 + $0xc8] sm:$0xff]
    %v1494 = vld [vmem:[%s9 + $0xd0] sm:$0xff]
    %v1495 = vld [vmem:[%s9 + $0xd8] sm:$0xff]
    %v1496 = vld [vmem:[%s9 + $0xe0] sm:$0xff]
    %v1497 = vld [vmem:[%s9 + $0xe8] sm:$0xff]
    %v1498 = vld [vmem:[%s9 + $0xf0] sm:$0xff]
    %v1499 = vld [vmem:[%s9 + $0xf8] sm:$0xff]
    %v1532 = vunpack.c.l.b16 %v1468
    %v1533 = vunpack.c.h.b16 %v1468
    %v1534 = vunpack.c.l.b16 %v1469
    %v1535 = vunpack.c.h.b16 %v1469
    %v1536 = vunpack.c.l.b16 %v1470
    %v1537 = vunpack.c.h.b16 %v1470
    %v1538 = vunpack.c.l.b16 %v1471
    %v1539 = vunpack.c.h.b16 %v1471
    %v1540 = vunpack.c.l.b16 %v1472
    %v1541 = vunpack.c.h.b16 %v1472
    %v1542 = vunpack.c.l.b16 %v1473
    %v1543 = vunpack.c.h.b16 %v1473
    %v1544 = vunpack.c.l.b16 %v1474
    %v1545 = vunpack.c.h.b16 %v1474
    %v1546 = vunpack.c.l.b16 %v1475
    %v1547 = vunpack.c.h.b16 %v1475
    %v1548 = vunpack.c.l.b16 %v1476
    %v1549 = vunpack.c.h.b16 %v1476
    %v1550 = vunpack.c.l.b16 %v1477
    %v1551 = vunpack.c.h.b16 %v1477
    %v1552 = vunpack.c.l.b16 %v1478
    %v1553 = vunpack.c.h.b16 %v1478
    %v1554 = vunpack.c.l.b16 %v1479
    %v1555 = vunpack.c.h.b16 %v1479
    %v1556 = vunpack.c.l.b16 %v1480
    %v1557 = vunpack.c.h.b16 %v1480
    %v1558 = vunpack.c.l.b16 %v1481
    %v1559 = vunpack.c.h.b16 %v1481
    %v1560 = vunpack.c.l.b16 %v1482
    %v1561 = vunpack.c.h.b16 %v1482
    %v1562 = vunpack.c.l.b16 %v1483
    %v1563 = vunpack.c.h.b16 %v1483
    %v1564 = vunpack.c.l.b16 %v1484
    %v1565 = vunpack.c.h.b16 %v1484
    %v1566 = vunpack.c.l.b16 %v1485
    %v1567 = vunpack.c.h.b16 %v1485
    %v1568 = vunpack.c.l.b16 %v1486
    %v1569 = vunpack.c.h.b16 %v1486
    %v1570 = vunpack.c.l.b16 %v1487
    %v1571 = vunpack.c.h.b16 %v1487
    %v1572 = vunpack.c.l.b16 %v1488
    %v1573 = vunpack.c.h.b16 %v1488
    %v1574 = vunpack.c.l.b16 %v1489
    %v1575 = vunpack.c.h.b16 %v1489
    %v1576 = vunpack.c.l.b16 %v1490
    %v1577 = vunpack.c.h.b16 %v1490
    %v1578 = vunpack.c.l.b16 %v1491
    %v1579 = vunpack.c.h.b16 %v1491
    %v1580 = vunpack.c.l.b16 %v1492
    %v1581 = vunpack.c.h.b16 %v1492
    %v1582 = vunpack.c.l.b16 %v1493
    %v1583 = vunpack.c.h.b16 %v1493
    %v1584 = vunpack.c.l.b16 %v1494
    %v1585 = vunpack.c.h.b16 %v1494
    %v1586 = vunpack.c.l.b16 %v1495
    %v1587 = vunpack.c.h.b16 %v1495
    %v1588 = vunpack.c.l.b16 %v1496
    %v1589 = vunpack.c.h.b16 %v1496
    %v1590 = vunpack.c.l.b16 %v1497
    %v1591 = vunpack.c.h.b16 %v1497
    %v1592 = vunpack.c.l.b16 %v1498
    %v1593 = vunpack.c.h.b16 %v1498
    %v1594 = vunpack.c.l.b16 %v1499
    %v1595 = vunpack.c.h.b16 %v1499
    %v1596 = vpack.c.b16 %v1536, %v1532
    %v1597 = vpack.c.b16 %v1537, %v1533
    %v1598 = vpack.c.b16 %v1538, %v1534
    %v1599 = vpack.c.b16 %v1539, %v1535
    %v1600 = vpack.c.b16 %v1544, %v1540
    %v1601 = vpack.c.b16 %v1545, %v1541
    %v1602 = vpack.c.b16 %v1546, %v1542
    %v1603 = vpack.c.b16 %v1547, %v1543
    %v1604 = vpack.c.b16 %v1552, %v1548
    %v1605 = vpack.c.b16 %v1553, %v1549
    %v1606 = vpack.c.b16 %v1554, %v1550
    %v1607 = vpack.c.b16 %v1555, %v1551
    %v1608 = vpack.c.b16 %v1560, %v1556
    %v1609 = vpack.c.b16 %v1561, %v1557
    %v1610 = vpack.c.b16 %v1562, %v1558
    %v1611 = vpack.c.b16 %v1563, %v1559
    %v1612 = vpack.c.b16 %v1568, %v1564
    %v1613 = vpack.c.b16 %v1569, %v1565
    %v1614 = vpack.c.b16 %v1570, %v1566
    %v1615 = vpack.c.b16 %v1571, %v1567
    %v1616 = vpack.c.b16 %v1576, %v1572
    %v1617 = vpack.c.b16 %v1577, %v1573
    %v1618 = vpack.c.b16 %v1578, %v1574
    %v1619 = vpack.c.b16 %v1579, %v1575
    %v1620 = vpack.c.b16 %v1584, %v1580
    %v1621 = vpack.c.b16 %v1585, %v1581
    %v1622 = vpack.c.b16 %v1586, %v1582
    %v1623 = vpack.c.b16 %v1587, %v1583
    %v1624 = vpack.c.b16 %v1592, %v1588
    %v1625 = vpack.c.b16 %v1593, %v1589
    %v1626 = vpack.c.b16 %v1594, %v1590
    %v1627 = vpack.c.b16 %v1595, %v1591
    %1660 = vmatprep.subr.bf16.mxu0 %v1597
    %1661 = vmatpush1.bf16.msra.mxu0 %v1596
    %1662 = vmatprep.subr.bf16.mxu0 %v1601
    %1663 = vmatpush1.bf16.msra.mxu0 %v1600
    %1664 = vmatprep.subr.bf16.mxu0 %v1605
    %1665 = vmatpush1.bf16.msra.mxu0 %v1604
    %1666 = vmatprep.subr.bf16.mxu0 %v1609
    %1667 = vmatpush1.bf16.msra.mxu0 %v1608
    %1668 = vmatprep.subr.bf16.mxu0 %v1613
    %1669 = vmatpush1.bf16.msra.mxu0 %v1612
    %1670 = vmatprep.subr.bf16.mxu0 %v1617
    %1671 = vmatpush1.bf16.msra.mxu0 %v1616
    %1672 = vmatprep.subr.bf16.mxu0 %v1621
    %1673 = vmatpush1.bf16.msra.mxu0 %v1620
    %1674 = vmatprep.subr.bf16.mxu0 %v1625
    %1675 = vmatpush1.bf16.msra.mxu0 %v1624
    %1676 = vmatprep.subr.bf16.mxu0 0
    %1677 = vmatpush1.bf16.msra.mxu0 0
    %1678 = vmatprep.subr.bf16.mxu0 0
    %1679 = vmatpush1.bf16.msra.mxu0 0
    %1680 = vmatprep.subr.bf16.mxu0 0
    %1681 = vmatpush1.bf16.msra.mxu0 0
    %1682 = vmatprep.subr.bf16.mxu0 0
    %1683 = vmatpush1.bf16.msra.mxu0 0
    %1684 = vmatprep.subr.bf16.mxu0 0
    %1685 = vmatpush1.bf16.msra.mxu0 0
    %1686 = vmatprep.subr.bf16.mxu0 0
    %1687 = vmatpush1.bf16.msra.mxu0 0
    %1688 = vmatprep.subr.bf16.mxu0 0
    %1689 = vmatpush1.bf16.msra.mxu0 0
    %1690 = vmatprep.subr.bf16.mxu0 0
    %1691 = vmatpush1.bf16.msra.mxu0 0
    %1692 = vmatprep.mubr.bf16.mxu0 0
    %1693 = vmatmul.mubr.bf16.gmra.mrb[0].mxu0 %v1375
    %v1694 = vpop.f32.mrb[0].mxu0
    %v1695 = vadd.f32 0.0, %v1694
    %v1696 = vpop.f32.mrb[0].mxu0
    %v1697 = vadd.f32 0.0, %v1696
    %v1698 = vpop.f32.mrb[0].mxu0
    %v1699 = vpop.f32.mrb[0].mxu0
    %1700 = vdwg.mxu0
    %1701 = vmatprep.subr.bf16.mxu0 %v1599
    %1702 = vmatpush1.bf16.msra.mxu0 %v1598
    %1703 = vmatprep.subr.bf16.mxu0 %v1603
    %1704 = vmatpush1.bf16.msra.mxu0 %v1602
    %1705 = vmatprep.subr.bf16.mxu0 %v1607
    %1706 = vmatpush1.bf16.msra.mxu0 %v1606
    %1707 = vmatprep.subr.bf16.mxu0 %v1611
    %1708 = vmatpush1.bf16.msra.mxu0 %v1610
    %1709 = vmatprep.subr.bf16.mxu0 %v1615
    %1710 = vmatpush1.bf16.msra.mxu0 %v1614
    %1711 = vmatprep.subr.bf16.mxu0 %v1619
    %1712 = vmatpush1.bf16.msra.mxu0 %v1618
    %1713 = vmatprep.subr.bf16.mxu0 %v1623
    %1714 = vmatpush1.bf16.msra.mxu0 %v1622
    %1715 = vmatprep.subr.bf16.mxu0 %v1627
    %1716 = vmatpush1.bf16.msra.mxu0 %v1626
    %1717 = vmatprep.subr.bf16.mxu0 0
    %1718 = vmatpush1.bf16.msra.mxu0 0
    %1719 = vmatprep.subr.bf16.mxu0 0
    %1720 = vmatpush1.bf16.msra.mxu0 0
    %1721 = vmatprep.subr.bf16.mxu0 0
    %1722 = vmatpush1.bf16.msra.mxu0 0
    %1723 = vmatprep.subr.bf16.mxu0 0
    %1724 = vmatpush1.bf16.msra.mxu0 0
    %1725 = vmatprep.subr.bf16.mxu0 0
    %1726 = vmatpush1.bf16.msra.mxu0 0
    %1727 = vmatprep.subr.bf16.mxu0 0
    %1728 = vmatpush1.bf16.msra.mxu0 0
    %1729 = vmatprep.subr.bf16.mxu0 0
    %1730 = vmatpush1.bf16.msra.mxu0 0
    %1731 = vmatprep.subr.bf16.mxu0 0
    %1732 = vmatpush1.bf16.msra.mxu0 0
    %1733 = vmatprep.mubr.bf16.mxu0 0
    %1734 = vmatmul.mubr.bf16.gmra.mrb[0].mxu0 %v1375
    %v1735 = vpop.f32.mrb[0].mxu0
    %v1736 = vadd.f32 0.0, %v1735
    %v1737 = vpop.f32.mrb[0].mxu0
    %v1738 = vadd.f32 0.0, %v1737
    %v1739 = vpop.f32.mrb[0].mxu0
    %v1740 = vpop.f32.mrb[0].mxu0
    %1741 = vdwg.mxu0
    %v1746 = vrot.slane %v1695, 4
    %v1747 = vrot.slane %v1697, 4
    %v1748 = vrot.slane %v1736, 4
    %v1749 = vrot.slane %v1738, 4
    %v1754 = vadd.f32 %v563, %v1746
    %v1755 = vadd.f32 %v565, %v1747
    %v1756 = vadd.f32 %v606, %v1748
    %v1757 = vadd.f32 %v608, %v1749
    %v1758 = vsub.f32 0.0, %v1754
    %v1759 = vmul.f32 %v1758, 1.442695
    %v1760 = vpow.pop %v1759
    %v1761 = vadd.f32 %v1760, 1.0
    %v1762 = vrcp.pop %v1761
    %v1763 = vmul.f32 1.0, %v1762
    %v1764 = vsub.f32 0.0, %v1755
    %v1765 = vmul.f32 %v1764, 1.442695
    %v1766 = vpow.pop %v1765
    %v1767 = vadd.f32 %v1766, 1.0
    %v1768 = vrcp.pop %v1767
    %v1769 = vmul.f32 1.0, %v1768
    %v1770 = vtanh.pop %v1756
    %v1771 = vsub.f32 0.0, %v1757
    %v1772 = vmul.f32 %v1771, 1.442695
    %v1773 = vpow.pop %v1772
    %v1774 = vadd.f32 %v1773, 1.0
    %v1775 = vrcp.pop %v1774
    %v1776 = vmul.f32 1.0, %v1775
    %v1778 = vrot.slane %v1348, 6
    %v1780 = vmul.f32 %v1769, %v1778
    %v1781 = vmul.f32 %v1763, %v1770
    %v1782 = vadd.f32 %v1780, %v1781
    %v1783 = vtanh.pop %v1782
    %v1784 = vmul.f32 %v1776, %v1783
    %v1785 = vrot.slane %v1351, 4
    %vm1786 = vcmp.ne.s32.totalorder %v1785, 0
    %vm1787 = vmor %vm1354, %vm1786
    %vm1788 = vmor %vm1787, %vm614
    %v1789 = vsel %vm1788, -inf, 0.0
    %v1790 = vpack.c.bf16 %v1784, %v1784
    %v1791 = vld [vmem:[#allocation5] sm:$0xf]
    %v1792 = vld [vmem:[#allocation5 + $0x4] sm:$0xf]
    %v1793 = vld [vmem:[#allocation5 + $0x8] sm:$0xf]
    %v1794 = vld [vmem:[#allocation5 + $0xc] sm:$0xf]
    %v1795 = vld [vmem:[#allocation5 + $0x10] sm:$0xf]
    %v1796 = vld [vmem:[#allocation5 + $0x14] sm:$0xf]
    %v1797 = vld [vmem:[#allocation5 + $0x18] sm:$0xf]
    %v1798 = vld [vmem:[#allocation5 + $0x1c] sm:$0xf]
    %v1799 = vld [vmem:[#allocation5 + $0x20] sm:$0xf]
    %v1800 = vld [vmem:[#allocation5 + $0x24] sm:$0xf]
    %v1801 = vld [vmem:[#allocation5 + $0x28] sm:$0xf]
    %v1802 = vld [vmem:[#allocation5 + $0x2c] sm:$0xf]
    %v1803 = vld [vmem:[#allocation5 + $0x30] sm:$0xf]
    %v1804 = vld [vmem:[#allocation5 + $0x34] sm:$0xf]
    %v1805 = vld [vmem:[#allocation5 + $0x38] sm:$0xf]
    %v1806 = vld [vmem:[#allocation5 + $0x3c] sm:$0xf]
    %v1808 = vrot.slane %v1790, 2
    %v1826 = vunpack.c.l.b16 %v1791
    %v1827 = vunpack.c.l.b16 %v1792
    %v1828 = vunpack.c.l.b16 %v1793
    %v1829 = vunpack.c.l.b16 %v1794
    %v1830 = vunpack.c.l.b16 %v1795
    %v1831 = vunpack.c.l.b16 %v1796
    %v1832 = vunpack.c.l.b16 %v1797
    %v1833 = vunpack.c.l.b16 %v1798
    %v1834 = vunpack.c.l.b16 %v1799
    %v1835 = vunpack.c.l.b16 %v1800
    %v1836 = vunpack.c.l.b16 %v1801
    %v1837 = vunpack.c.l.b16 %v1802
    %v1838 = vunpack.c.l.b16 %v1803
    %v1839 = vunpack.c.l.b16 %v1804
    %v1840 = vunpack.c.l.b16 %v1805
    %v1841 = vunpack.c.l.b16 %v1806
    %v1842 = vpack.c.b16 %v1827, %v1826
    %v1843 = vpack.c.b16 %v1829, %v1828
    %v1844 = vpack.c.b16 %v1831, %v1830
    %v1845 = vpack.c.b16 %v1833, %v1832
    %v1846 = vpack.c.b16 %v1835, %v1834
    %v1847 = vpack.c.b16 %v1837, %v1836
    %v1848 = vpack.c.b16 %v1839, %v1838
    %v1849 = vpack.c.b16 %v1841, %v1840
    %1858 = vmatprep.subr.bf16.mxu0 0
    %1859 = vmatpush1.bf16.msra.mxu0 %v1842
    %1860 = vmatprep.subr.bf16.mxu0 0
    %1861 = vmatpush1.bf16.msra.mxu0 %v1843
    %1862 = vmatprep.subr.bf16.mxu0 0
    %1863 = vmatpush1.bf16.msra.mxu0 %v1844
    %1864 = vmatprep.subr.bf16.mxu0 0
    %1865 = vmatpush1.bf16.msra.mxu0 %v1845
    %1866 = vmatprep.subr.bf16.mxu0 0
    %1867 = vmatpush1.bf16.msra.mxu0 %v1846
    %1868 = vmatprep.subr.bf16.mxu0 0
    %1869 = vmatpush1.bf16.msra.mxu0 %v1847
    %1870 = vmatprep.subr.bf16.mxu0 0
    %1871 = vmatpush1.bf16.msra.mxu0 %v1848
    %1872 = vmatprep.subr.bf16.mxu0 0
    %1873 = vmatpush1.bf16.msra.mxu0 %v1849
    %1874 = vmatprep.subr.bf16.mxu0 0
    %1875 = vmatpush1.bf16.msra.mxu0 0
    %1876 = vmatprep.subr.bf16.mxu0 0
    %1877 = vmatpush1.bf16.msra.mxu0 0
    %1878 = vmatprep.subr.bf16.mxu0 0
    %1879 = vmatpush1.bf16.msra.mxu0 0
    %1880 = vmatprep.subr.bf16.mxu0 0
    %1881 = vmatpush1.bf16.msra.mxu0 0
    %1882 = vmatprep.subr.bf16.mxu0 0
    %1883 = vmatpush1.bf16.msra.mxu0 0
    %1884 = vmatprep.subr.bf16.mxu0 0
    %1885 = vmatpush1.bf16.msra.mxu0 0
    %1886 = vmatprep.subr.bf16.mxu0 0
    %1887 = vmatpush1.bf16.msra.mxu0 0
    %1888 = vmatprep.subr.bf16.mxu0 0
    %1889 = vmatpush1.bf16.msra.mxu0 0
    %1890 = vmatprep.mubr.bf16.mxu0 0
    %1891 = vmatmul.mubr.bf16.gmra.mrb[0].mxu0 %v1808
    %v1892 = vpop.f32.mrb[0].mxu0
    %v1893 = vadd.f32 %v941, %v1892
    %v1894 = vpop.f32.mrb[0].mxu0
    %v1895 = vpop.f32.mrb[0].mxu0
    %v1896 = vpop.f32.mrb[0].mxu0
    %1897 = vdwg.mxu0
    %v1898 = vadd.f32 %v1893, %v1789
    %1899 = vst [vmem:[#allocation7 + $0x2] sm:$0x1] %v1898
    %1900 = vst [vmem:[#allocation7 + $0x9] sm:$0x2] %v1898
    %v1901 = vld [vmem:[%s9] sm:$0xff]
    %v1902 = vld [vmem:[%s9 + $0x8] sm:$0xff]
    %v1903 = vld [vmem:[%s9 + $0x10] sm:$0xff]
    %v1904 = vld [vmem:[%s9 + $0x18] sm:$0xff]
    %v1905 = vld [vmem:[%s9 + $0x20] sm:$0xff]
    %v1906 = vld [vmem:[%s9 + $0x28] sm:$0xff]
    %v1907 = vld [vmem:[%s9 + $0x30] sm:$0xff]
    %v1908 = vld [vmem:[%s9 + $0x38] sm:$0xff]
    %v1909 = vld [vmem:[%s9 + $0x40] sm:$0xff]
    %v1910 = vld [vmem:[%s9 + $0x48] sm:$0xff]
    %v1911 = vld [vmem:[%s9 + $0x50] sm:$0xff]
    %v1912 = vld [vmem:[%s9 + $0x58] sm:$0xff]
    %v1913 = vld [vmem:[%s9 + $0x60] sm:$0xff]
    %v1914 = vld [vmem:[%s9 + $0x68] sm:$0xff]
    %v1915 = vld [vmem:[%s9 + $0x70] sm:$0xff]
    %v1916 = vld [vmem:[%s9 + $0x78] sm:$0xff]
    %v1917 = vld [vmem:[%s9 + $0x80] sm:$0xff]
    %v1918 = vld [vmem:[%s9 + $0x88] sm:$0xff]
    %v1919 = vld [vmem:[%s9 + $0x90] sm:$0xff]
    %v1920 = vld [vmem:[%s9 + $0x98] sm:$0xff]
    %v1921 = vld [vmem:[%s9 + $0xa0] sm:$0xff]
    %v1922 = vld [vmem:[%s9 + $0xa8] sm:$0xff]
    %v1923 = vld [vmem:[%s9 + $0xb0] sm:$0xff]
    %v1924 = vld [vmem:[%s9 + $0xb8] sm:$0xff]
    %v1925 = vld [vmem:[%s9 + $0xc0] sm:$0xff]
    %v1926 = vld [vmem:[%s9 + $0xc8] sm:$0xff]
    %v1927 = vld [vmem:[%s9 + $0xd0] sm:$0xff]
    %v1928 = vld [vmem:[%s9 + $0xd8] sm:$0xff]
    %v1929 = vld [vmem:[%s9 + $0xe0] sm:$0xff]
    %v1930 = vld [vmem:[%s9 + $0xe8] sm:$0xff]
    %v1931 = vld [vmem:[%s9 + $0xf0] sm:$0xff]
    %v1932 = vld [vmem:[%s9 + $0xf8] sm:$0xff]
    %v1965 = vunpack.c.l.b16 %v1901
    %v1966 = vunpack.c.h.b16 %v1901
    %v1967 = vunpack.c.l.b16 %v1902
    %v1968 = vunpack.c.h.b16 %v1902
    %v1969 = vunpack.c.l.b16 %v1903
    %v1970 = vunpack.c.h.b16 %v1903
    %v1971 = vunpack.c.l.b16 %v1904
    %v1972 = vunpack.c.h.b16 %v1904
    %v1973 = vunpack.c.l.b16 %v1905
    %v1974 = vunpack.c.h.b16 %v1905
    %v1975 = vunpack.c.l.b16 %v1906
    %v1976 = vunpack.c.h.b16 %v1906
    %v1977 = vunpack.c.l.b16 %v1907
    %v1978 = vunpack.c.h.b16 %v1907
    %v1979 = vunpack.c.l.b16 %v1908
    %v1980 = vunpack.c.h.b16 %v1908
    %v1981 = vunpack.c.l.b16 %v1909
    %v1982 = vunpack.c.h.b16 %v1909
    %v1983 = vunpack.c.l.b16 %v1910
    %v1984 = vunpack.c.h.b16 %v1910
    %v1985 = vunpack.c.l.b16 %v1911
    %v1986 = vunpack.c.h.b16 %v1911
    %v1987 = vunpack.c.l.b16 %v1912
    %v1988 = vunpack.c.h.b16 %v1912
    %v1989 = vunpack.c.l.b16 %v1913
    %v1990 = vunpack.c.h.b16 %v1913
    %v1991 = vunpack.c.l.b16 %v1914
    %v1992 = vunpack.c.h.b16 %v1914
    %v1993 = vunpack.c.l.b16 %v1915
    %v1994 = vunpack.c.h.b16 %v1915
    %v1995 = vunpack.c.l.b16 %v1916
    %v1996 = vunpack.c.h.b16 %v1916
    %v1997 = vunpack.c.l.b16 %v1917
    %v1998 = vunpack.c.h.b16 %v1917
    %v1999 = vunpack.c.l.b16 %v1918
    %v2000 = vunpack.c.h.b16 %v1918
    %v2001 = vunpack.c.l.b16 %v1919
    %v2002 = vunpack.c.h.b16 %v1919
    %v2003 = vunpack.c.l.b16 %v1920
    %v2004 = vunpack.c.h.b16 %v1920
    %v2005 = vunpack.c.l.b16 %v1921
    %v2006 = vunpack.c.h.b16 %v1921
    %v2007 = vunpack.c.l.b16 %v1922
    %v2008 = vunpack.c.h.b16 %v1922
    %v2009 = vunpack.c.l.b16 %v1923
    %v2010 = vunpack.c.h.b16 %v1923
    %v2011 = vunpack.c.l.b16 %v1924
    %v2012 = vunpack.c.h.b16 %v1924
    %v2013 = vunpack.c.l.b16 %v1925
    %v2014 = vunpack.c.h.b16 %v1925
    %v2015 = vunpack.c.l.b16 %v1926
    %v2016 = vunpack.c.h.b16 %v1926
    %v2017 = vunpack.c.l.b16 %v1927
    %v2018 = vunpack.c.h.b16 %v1927
    %v2019 = vunpack.c.l.b16 %v1928
    %v2020 = vunpack.c.h.b16 %v1928
    %v2021 = vunpack.c.l.b16 %v1929
    %v2022 = vunpack.c.h.b16 %v1929
    %v2023 = vunpack.c.l.b16 %v1930
    %v2024 = vunpack.c.h.b16 %v1930
    %v2025 = vunpack.c.l.b16 %v1931
    %v2026 = vunpack.c.h.b16 %v1931
    %v2027 = vunpack.c.l.b16 %v1932
    %v2028 = vunpack.c.h.b16 %v1932
    %v2029 = vpack.c.b16 %v1969, %v1965
    %v2030 = vpack.c.b16 %v1970, %v1966
    %v2031 = vpack.c.b16 %v1971, %v1967
    %v2032 = vpack.c.b16 %v1972, %v1968
    %v2033 = vpack.c.b16 %v1977, %v1973
    %v2034 = vpack.c.b16 %v1978, %v1974
    %v2035 = vpack.c.b16 %v1979, %v1975
    %v2036 = vpack.c.b16 %v1980, %v1976
    %v2037 = vpack.c.b16 %v1985, %v1981
    %v2038 = vpack.c.b16 %v1986, %v1982
    %v2039 = vpack.c.b16 %v1987, %v1983
    %v2040 = vpack.c.b16 %v1988, %v1984
    %v2041 = vpack.c.b16 %v1993, %v1989
    %v2042 = vpack.c.b16 %v1994, %v1990
    %v2043 = vpack.c.b16 %v1995, %v1991
    %v2044 = vpack.c.b16 %v1996, %v1992
    %v2045 = vpack.c.b16 %v2001, %v1997
    %v2046 = vpack.c.b16 %v2002, %v1998
    %v2047 = vpack.c.b16 %v2003, %v1999
    %v2048 = vpack.c.b16 %v2004, %v2000
    %v2049 = vpack.c.b16 %v2009, %v2005
    %v2050 = vpack.c.b16 %v2010, %v2006
    %v2051 = vpack.c.b16 %v2011, %v2007
    %v2052 = vpack.c.b16 %v2012, %v2008
    %v2053 = vpack.c.b16 %v2017, %v2013
    %v2054 = vpack.c.b16 %v2018, %v2014
    %v2055 = vpack.c.b16 %v2019, %v2015
    %v2056 = vpack.c.b16 %v2020, %v2016
    %v2057 = vpack.c.b16 %v2025, %v2021
    %v2058 = vpack.c.b16 %v2026, %v2022
    %v2059 = vpack.c.b16 %v2027, %v2023
    %v2060 = vpack.c.b16 %v2028, %v2024
    %2093 = vmatprep.subr.bf16.mxu0 %v2030
    %2094 = vmatpush1.bf16.msra.mxu0 %v2029
    %2095 = vmatprep.subr.bf16.mxu0 %v2034
    %2096 = vmatpush1.bf16.msra.mxu0 %v2033
    %2097 = vmatprep.subr.bf16.mxu0 %v2038
    %2098 = vmatpush1.bf16.msra.mxu0 %v2037
    %2099 = vmatprep.subr.bf16.mxu0 %v2042
    %2100 = vmatpush1.bf16.msra.mxu0 %v2041
    %2101 = vmatprep.subr.bf16.mxu0 %v2046
    %2102 = vmatpush1.bf16.msra.mxu0 %v2045
    %2103 = vmatprep.subr.bf16.mxu0 %v2050
    %2104 = vmatpush1.bf16.msra.mxu0 %v2049
    %2105 = vmatprep.subr.bf16.mxu0 %v2054
    %2106 = vmatpush1.bf16.msra.mxu0 %v2053
    %2107 = vmatprep.subr.bf16.mxu0 %v2058
    %2108 = vmatpush1.bf16.msra.mxu0 %v2057
    %2109 = vmatprep.subr.bf16.mxu0 0
    %2110 = vmatpush1.bf16.msra.mxu0 0
    %2111 = vmatprep.subr.bf16.mxu0 0
    %2112 = vmatpush1.bf16.msra.mxu0 0
    %2113 = vmatprep.subr.bf16.mxu0 0
    %2114 = vmatpush1.bf16.msra.mxu0 0
    %2115 = vmatprep.subr.bf16.mxu0 0
    %2116 = vmatpush1.bf16.msra.mxu0 0
    %2117 = vmatprep.subr.bf16.mxu0 0
    %2118 = vmatpush1.bf16.msra.mxu0 0
    %2119 = vmatprep.subr.bf16.mxu0 0
    %2120 = vmatpush1.bf16.msra.mxu0 0
    %2121 = vmatprep.subr.bf16.mxu0 0
    %2122 = vmatpush1.bf16.msra.mxu0 0
    %2123 = vmatprep.subr.bf16.mxu0 0
    %2124 = vmatpush1.bf16.msra.mxu0 0
    %2125 = vmatprep.mubr.bf16.mxu0 0
    %2126 = vmatmul.mubr.bf16.gmra.mrb[0].mxu0 %v1808
    %v2127 = vpop.f32.mrb[0].mxu0
    %v2128 = vadd.f32 0.0, %v2127
    %v2129 = vpop.f32.mrb[0].mxu0
    %v2130 = vadd.f32 0.0, %v2129
    %v2131 = vpop.f32.mrb[0].mxu0
    %v2132 = vpop.f32.mrb[0].mxu0
    %2133 = vdwg.mxu0
    %2134 = vmatprep.subr.bf16.mxu0 %v2032
    %2135 = vmatpush1.bf16.msra.mxu0 %v2031
    %2136 = vmatprep.subr.bf16.mxu0 %v2036
    %2137 = vmatpush1.bf16.msra.mxu0 %v2035
    %2138 = vmatprep.subr.bf16.mxu0 %v2040
    %2139 = vmatpush1.bf16.msra.mxu0 %v2039
    %2140 = vmatprep.subr.bf16.mxu0 %v2044
    %2141 = vmatpush1.bf16.msra.mxu0 %v2043
    %2142 = vmatprep.subr.bf16.mxu0 %v2048
    %2143 = vmatpush1.bf16.msra.mxu0 %v2047
    %2144 = vmatprep.subr.bf16.mxu0 %v2052
    %2145 = vmatpush1.bf16.msra.mxu0 %v2051
    %2146 = vmatprep.subr.bf16.mxu0 %v2056
    %2147 = vmatpush1.bf16.msra.mxu0 %v2055
    %2148 = vmatprep.subr.bf16.mxu0 %v2060
    %2149 = vmatpush1.bf16.msra.mxu0 %v2059
    %2150 = vmatprep.subr.bf16.mxu0 0
    %2151 = vmatpush1.bf16.msra.mxu0 0
    %2152 = vmatprep.subr.bf16.mxu0 0
    %2153 = vmatpush1.bf16.msra.mxu0 0
    %2154 = vmatprep.subr.bf16.mxu0 0
    %2155 = vmatpush1.bf16.msra.mxu0 0
    %2156 = vmatprep.subr.bf16.mxu0 0
    %2157 = vmatpush1.bf16.msra.mxu0 0
    %2158 = vmatprep.subr.bf16.mxu0 0
    %2159 = vmatpush1.bf16.msra.mxu0 0
    %2160 = vmatprep.subr.bf16.mxu0 0
    %2161 = vmatpush1.bf16.msra.mxu0 0
    %2162 = vmatprep.subr.bf16.mxu0 0
    %2163 = vmatpush1.bf16.msra.mxu0 0
    %2164 = vmatprep.subr.bf16.mxu0 0
    %2165 = vmatpush1.bf16.msra.mxu0 0
    %2166 = vmatprep.mubr.bf16.mxu0 0
    %2167 = vmatmul.mubr.bf16.gmra.mrb[0].mxu0 %v1808
    %v2168 = vpop.f32.mrb[0].mxu0
    %v2169 = vadd.f32 0.0, %v2168
    %v2170 = vpop.f32.mrb[0].mxu0
    %v2171 = vadd.f32 0.0, %v2170
    %v2172 = vpop.f32.mrb[0].mxu0
    %v2173 = vpop.f32.mrb[0].mxu0
    %2174 = vdwg.mxu0
    %v2179 = vrot.slane %v2128, 2
    %v2180 = vrot.slane %v2130, 2
    %v2181 = vrot.slane %v2169, 2
    %v2182 = vrot.slane %v2171, 2
    %v2187 = vadd.f32 %v563, %v2179
    %v2188 = vadd.f32 %v565, %v2180
    %v2189 = vadd.f32 %v606, %v2181
    %v2190 = vadd.f32 %v608, %v2182
    %v2191 = vsub.f32 0.0, %v2187
    %v2192 = vmul.f32 %v2191, 1.442695
    %v2193 = vpow.pop %v2192
    %v2194 = vadd.f32 %v2193, 1.0
    %v2195 = vrcp.pop %v2194
    %v2196 = vmul.f32 1.0, %v2195
    %v2197 = vsub.f32 0.0, %v2188
    %v2198 = vmul.f32 %v2197, 1.442695
    %v2199 = vpow.pop %v2198
    %v2200 = vadd.f32 %v2199, 1.0
    %v2201 = vrcp.pop %v2200
    %v2202 = vmul.f32 1.0, %v2201
    %v2203 = vtanh.pop %v2189
    %v2204 = vsub.f32 0.0, %v2190
    %v2205 = vmul.f32 %v2204, 1.442695
    %v2206 = vpow.pop %v2205
    %v2207 = vadd.f32 %v2206, 1.0
    %v2208 = vrcp.pop %v2207
    %v2209 = vmul.f32 1.0, %v2208
    %v2211 = vrot.slane %v1782, 6
    %v2213 = vmul.f32 %v2202, %v2211
    %v2214 = vmul.f32 %v2196, %v2203
    %v2215 = vadd.f32 %v2213, %v2214
    %v2216 = vtanh.pop %v2215
    %v2217 = vmul.f32 %v2209, %v2216
    %v2218 = vrot.slane %v1351, 6
    %vm2219 = vcmp.ne.s32.totalorder %v2218, 0
    %vm2220 = vmor %vm1787, %vm2219
    %vm2221 = vmor %vm2220, %vm614
    %v2222 = vsel %vm2221, -inf, 0.0
    %v2223 = vpack.c.bf16 %v2217, %v2217
    %v2224 = vld [vmem:[#allocation5] sm:$0xf]
    %v2225 = vld [vmem:[#allocation5 + $0x4] sm:$0xf]
    %v2226 = vld [vmem:[#allocation5 + $0x8] sm:$0xf]
    %v2227 = vld [vmem:[#allocation5 + $0xc] sm:$0xf]
    %v2228 = vld [vmem:[#allocation5 + $0x10] sm:$0xf]
    %v2229 = vld [vmem:[#allocation5 + $0x14] sm:$0xf]
    %v2230 = vld [vmem:[#allocation5 + $0x18] sm:$0xf]
    %v2231 = vld [vmem:[#allocation5 + $0x1c] sm:$0xf]
    %v2232 = vld [vmem:[#allocation5 + $0x20] sm:$0xf]
    %v2233 = vld [vmem:[#allocation5 + $0x24] sm:$0xf]
    %v2234 = vld [vmem:[#allocation5 + $0x28] sm:$0xf]
    %v2235 = vld [vmem:[#allocation5 + $0x2c] sm:$0xf]
    %v2236 = vld [vmem:[#allocation5 + $0x30] sm:$0xf]
    %v2237 = vld [vmem:[#allocation5 + $0x34] sm:$0xf]
    %v2238 = vld [vmem:[#allocation5 + $0x38] sm:$0xf]
    %v2239 = vld [vmem:[#allocation5 + $0x3c] sm:$0xf]
    %v2241 = vrot.slane %v2223, 3
    %v2259 = vunpack.c.l.b16 %v2224
    %v2260 = vunpack.c.l.b16 %v2225
    %v2261 = vunpack.c.l.b16 %v2226
    %v2262 = vunpack.c.l.b16 %v2227
    %v2263 = vunpack.c.l.b16 %v2228
    %v2264 = vunpack.c.l.b16 %v2229
    %v2265 = vunpack.c.l.b16 %v2230
    %v2266 = vunpack.c.l.b16 %v2231
    %v2267 = vunpack.c.l.b16 %v2232
    %v2268 = vunpack.c.l.b16 %v2233
    %v2269 = vunpack.c.l.b16 %v2234
    %v2270 = vunpack.c.l.b16 %v2235
    %v2271 = vunpack.c.l.b16 %v2236
    %v2272 = vunpack.c.l.b16 %v2237
    %v2273 = vunpack.c.l.b16 %v2238
    %v2274 = vunpack.c.l.b16 %v2239
    %v2275 = vpack.c.b16 %v2260, %v2259
    %v2276 = vpack.c.b16 %v2262, %v2261
    %v2277 = vpack.c.b16 %v2264, %v2263
    %v2278 = vpack.c.b16 %v2266, %v2265
    %v2279 = vpack.c.b16 %v2268, %v2267
    %v2280 = vpack.c.b16 %v2270, %v2269
    %v2281 = vpack.c.b16 %v2272, %v2271
    %v2282 = vpack.c.b16 %v2274, %v2273
    %2291 = vmatprep.subr.bf16.mxu0 0
    %2292 = vmatpush1.bf16.msra.mxu0 %v2275
    %2293 = vmatprep.subr.bf16.mxu0 0
    %2294 = vmatpush1.bf16.msra.mxu0 %v2276
    %2295 = vmatprep.subr.bf16.mxu0 0
    %2296 = vmatpush1.bf16.msra.mxu0 %v2277
    %2297 = vmatprep.subr.bf16.mxu0 0
    %2298 = vmatpush1.bf16.msra.mxu0 %v2278
    %2299 = vmatprep.subr.bf16.mxu0 0
    %2300 = vmatpush1.bf16.msra.mxu0 %v2279
    %2301 = vmatprep.subr.bf16.mxu0 0
    %2302 = vmatpush1.bf16.msra.mxu0 %v2280
    %2303 = vmatprep.subr.bf16.mxu0 0
    %2304 = vmatpush1.bf16.msra.mxu0 %v2281
    %2305 = vmatprep.subr.bf16.mxu0 0
    %2306 = vmatpush1.bf16.msra.mxu0 %v2282
    %2307 = vmatprep.subr.bf16.mxu0 0
    %2308 = vmatpush1.bf16.msra.mxu0 0
    %2309 = vmatprep.subr.bf16.mxu0 0
    %2310 = vmatpush1.bf16.msra.mxu0 0
    %2311 = vmatprep.subr.bf16.mxu0 0
    %2312 = vmatpush1.bf16.msra.mxu0 0
    %2313 = vmatprep.subr.bf16.mxu0 0
    %2314 = vmatpush1.bf16.msra.mxu0 0
    %2315 = vmatprep.subr.bf16.mxu0 0
    %2316 = vmatpush1.bf16.msra.mxu0 0
    %2317 = vmatprep.subr.bf16.mxu0 0
    %2318 = vmatpush1.bf16.msra.mxu0 0
    %2319 = vmatprep.subr.bf16.mxu0 0
    %2320 = vmatpush1.bf16.msra.mxu0 0
    %2321 = vmatprep.subr.bf16.mxu0 0
    %2322 = vmatpush1.bf16.msra.mxu0 0
    %2323 = vmatprep.mubr.bf16.mxu0 0
    %2324 = vmatmul.mubr.bf16.gmra.mrb[0].mxu0 %v2241
    %v2325 = vpop.f32.mrb[0].mxu0
    %v2326 = vadd.f32 %v941, %v2325
    %v2327 = vpop.f32.mrb[0].mxu0
    %v2328 = vpop.f32.mrb[0].mxu0
    %v2329 = vpop.f32.mrb[0].mxu0
    %2330 = vdwg.mxu0
    %v2331 = vadd.f32 %v2326, %v2222
    %2332 = vst [vmem:[#allocation7 + $0x3] sm:$0x1] %v2331
    %2333 = vst [vmem:[#allocation7 + $0xa] sm:$0x2] %v2331
    %v2334 = vld [vmem:[%s9] sm:$0xff]
    %v2335 = vld [vmem:[%s9 + $0x8] sm:$0xff]
    %v2336 = vld [vmem:[%s9 + $0x10] sm:$0xff]
    %v2337 = vld [vmem:[%s9 + $0x18] sm:$0xff]
    %v2338 = vld [vmem:[%s9 + $0x20] sm:$0xff]
    %v2339 = vld [vmem:[%s9 + $0x28] sm:$0xff]
    %v2340 = vld [vmem:[%s9 + $0x30] sm:$0xff]
    %v2341 = vld [vmem:[%s9 + $0x38] sm:$0xff]
    %v2342 = vld [vmem:[%s9 + $0x40] sm:$0xff]
    %v2343 = vld [vmem:[%s9 + $0x48] sm:$0xff]
    %v2344 = vld [vmem:[%s9 + $0x50] sm:$0xff]
    %v2345 = vld [vmem:[%s9 + $0x58] sm:$0xff]
    %v2346 = vld [vmem:[%s9 + $0x60] sm:$0xff]
    %v2347 = vld [vmem:[%s9 + $0x68] sm:$0xff]
    %v2348 = vld [vmem:[%s9 + $0x70] sm:$0xff]
    %v2349 = vld [vmem:[%s9 + $0x78] sm:$0xff]
    %v2350 = vld [vmem:[%s9 + $0x80] sm:$0xff]
    %v2351 = vld [vmem:[%s9 + $0x88] sm:$0xff]
    %v2352 = vld [vmem:[%s9 + $0x90] sm:$0xff]
    %v2353 = vld [vmem:[%s9 + $0x98] sm:$0xff]
    %v2354 = vld [vmem:[%s9 + $0xa0] sm:$0xff]
    %v2355 = vld [vmem:[%s9 + $0xa8] sm:$0xff]
    %v2356 = vld [vmem:[%s9 + $0xb0] sm:$0xff]
    %v2357 = vld [vmem:[%s9 + $0xb8] sm:$0xff]
    %v2358 = vld [vmem:[%s9 + $0xc0] sm:$0xff]
    %v2359 = vld [vmem:[%s9 + $0xc8] sm:$0xff]
    %v2360 = vld [vmem:[%s9 + $0xd0] sm:$0xff]
    %v2361 = vld [vmem:[%s9 + $0xd8] sm:$0xff]
    %v2362 = vld [vmem:[%s9 + $0xe0] sm:$0xff]
    %v2363 = vld [vmem:[%s9 + $0xe8] sm:$0xff]
    %v2364 = vld [vmem:[%s9 + $0xf0] sm:$0xff]
    %v2365 = vld [vmem:[%s9 + $0xf8] sm:$0xff]
    %v2398 = vunpack.c.l.b16 %v2334
    %v2399 = vunpack.c.h.b16 %v2334
    %v2400 = vunpack.c.l.b16 %v2335
    %v2401 = vunpack.c.h.b16 %v2335
    %v2402 = vunpack.c.l.b16 %v2336
    %v2403 = vunpack.c.h.b16 %v2336
    %v2404 = vunpack.c.l.b16 %v2337
    %v2405 = vunpack.c.h.b16 %v2337
    %v2406 = vunpack.c.l.b16 %v2338
    %v2407 = vunpack.c.h.b16 %v2338
    %v2408 = vunpack.c.l.b16 %v2339
    %v2409 = vunpack.c.h.b16 %v2339
    %v2410 = vunpack.c.l.b16 %v2340
    %v2411 = vunpack.c.h.b16 %v2340
    %v2412 = vunpack.c.l.b16 %v2341
    %v2413 = vunpack.c.h.b16 %v2341
    %v2414 = vunpack.c.l.b16 %v2342
    %v2415 = vunpack.c.h.b16 %v2342
    %v2416 = vunpack.c.l.b16 %v2343
    %v2417 = vunpack.c.h.b16 %v2343
    %v2418 = vunpack.c.l.b16 %v2344
    %v2419 = vunpack.c.h.b16 %v2344
    %v2420 = vunpack.c.l.b16 %v2345
    %v2421 = vunpack.c.h.b16 %v2345
    %v2422 = vunpack.c.l.b16 %v2346
    %v2423 = vunpack.c.h.b16 %v2346
    %v2424 = vunpack.c.l.b16 %v2347
    %v2425 = vunpack.c.h.b16 %v2347
    %v2426 = vunpack.c.l.b16 %v2348
    %v2427 = vunpack.c.h.b16 %v2348
    %v2428 = vunpack.c.l.b16 %v2349
    %v2429 = vunpack.c.h.b16 %v2349
    %v2430 = vunpack.c.l.b16 %v2350
    %v2431 = vunpack.c.h.b16 %v2350
    %v2432 = vunpack.c.l.b16 %v2351
    %v2433 = vunpack.c.h.b16 %v2351
    %v2434 = vunpack.c.l.b16 %v2352
    %v2435 = vunpack.c.h.b16 %v2352
    %v2436 = vunpack.c.l.b16 %v2353
    %v2437 = vunpack.c.h.b16 %v2353
    %v2438 = vunpack.c.l.b16 %v2354
    %v2439 = vunpack.c.h.b16 %v2354
    %v2440 = vunpack.c.l.b16 %v2355
    %v2441 = vunpack.c.h.b16 %v2355
    %v2442 = vunpack.c.l.b16 %v2356
    %v2443 = vunpack.c.h.b16 %v2356
    %v2444 = vunpack.c.l.b16 %v2357
    %v2445 = vunpack.c.h.b16 %v2357
    %v2446 = vunpack.c.l.b16 %v2358
    %v2447 = vunpack.c.h.b16 %v2358
    %v2448 = vunpack.c.l.b16 %v2359
    %v2449 = vunpack.c.h.b16 %v2359
    %v2450 = vunpack.c.l.b16 %v2360
    %v2451 = vunpack.c.h.b16 %v2360
    %v2452 = vunpack.c.l.b16 %v2361
    %v2453 = vunpack.c.h.b16 %v2361
    %v2454 = vunpack.c.l.b16 %v2362
    %v2455 = vunpack.c.h.b16 %v2362
    %v2456 = vunpack.c.l.b16 %v2363
    %v2457 = vunpack.c.h.b16 %v2363
    %v2458 = vunpack.c.l.b16 %v2364
    %v2459 = vunpack.c.h.b16 %v2364
    %v2460 = vunpack.c.l.b16 %v2365
    %v2461 = vunpack.c.h.b16 %v2365
    %v2462 = vpack.c.b16 %v2402, %v2398
    %v2463 = vpack.c.b16 %v2403, %v2399
    %v2464 = vpack.c.b16 %v2404, %v2400
    %v2465 = vpack.c.b16 %v2405, %v2401
    %v2466 = vpack.c.b16 %v2410, %v2406
    %v2467 = vpack.c.b16 %v2411, %v2407
    %v2468 = vpack.c.b16 %v2412, %v2408
    %v2469 = vpack.c.b16 %v2413, %v2409
    %v2470 = vpack.c.b16 %v2418, %v2414
    %v2471 = vpack.c.b16 %v2419, %v2415
    %v2472 = vpack.c.b16 %v2420, %v2416
    %v2473 = vpack.c.b16 %v2421, %v2417
    %v2474 = vpack.c.b16 %v2426, %v2422
    %v2475 = vpack.c.b16 %v2427, %v2423
    %v2476 = vpack.c.b16 %v2428, %v2424
    %v2477 = vpack.c.b16 %v2429, %v2425
    %v2478 = vpack.c.b16 %v2434, %v2430
    %v2479 = vpack.c.b16 %v2435, %v2431
    %v2480 = vpack.c.b16 %v2436, %v2432
    %v2481 = vpack.c.b16 %v2437, %v2433
    %v2482 = vpack.c.b16 %v2442, %v2438
    %v2483 = vpack.c.b16 %v2443, %v2439
    %v2484 = vpack.c.b16 %v2444, %v2440
    %v2485 = vpack.c.b16 %v2445, %v2441
    %v2486 = vpack.c.b16 %v2450, %v2446
    %v2487 = vpack.c.b16 %v2451, %v2447
    %v2488 = vpack.c.b16 %v2452, %v2448
    %v2489 = vpack.c.b16 %v2453, %v2449
    %v2490 = vpack.c.b16 %v2458, %v2454
    %v2491 = vpack.c.b16 %v2459, %v2455
    %v2492 = vpack.c.b16 %v2460, %v2456
    %v2493 = vpack.c.b16 %v2461, %v2457
    %2526 = vmatprep.subr.bf16.mxu0 %v2463
    %2527 = vmatpush1.bf16.msra.mxu0 %v2462
    %2528 = vmatprep.subr.bf16.mxu0 %v2467
    %2529 = vmatpush1.bf16.msra.mxu0 %v2466
    %2530 = vmatprep.subr.bf16.mxu0 %v2471
    %2531 = vmatpush1.bf16.msra.mxu0 %v2470
    %2532 = vmatprep.subr.bf16.mxu0 %v2475
    %2533 = vmatpush1.bf16.msra.mxu0 %v2474
    %2534 = vmatprep.subr.bf16.mxu0 %v2479
    %2535 = vmatpush1.bf16.msra.mxu0 %v2478
    %2536 = vmatprep.subr.bf16.mxu0 %v2483
    %2537 = vmatpush1.bf16.msra.mxu0 %v2482
    %2538 = vmatprep.subr.bf16.mxu0 %v2487
    %2539 = vmatpush1.bf16.msra.mxu0 %v2486
    %2540 = vmatprep.subr.bf16.mxu0 %v2491
    %2541 = vmatpush1.bf16.msra.mxu0 %v2490
    %2542 = vmatprep.subr.bf16.mxu0 0
    %2543 = vmatpush1.bf16.msra.mxu0 0
    %2544 = vmatprep.subr.bf16.mxu0 0
    %2545 = vmatpush1.bf16.msra.mxu0 0
    %2546 = vmatprep.subr.bf16.mxu0 0
    %2547 = vmatpush1.bf16.msra.mxu0 0
    %2548 = vmatprep.subr.bf16.mxu0 0
    %2549 = vmatpush1.bf16.msra.mxu0 0
    %2550 = vmatprep.subr.bf16.mxu0 0
    %2551 = vmatpush1.bf16.msra.mxu0 0
    %2552 = vmatprep.subr.bf16.mxu0 0
    %2553 = vmatpush1.bf16.msra.mxu0 0
    %2554 = vmatprep.subr.bf16.mxu0 0
    %2555 = vmatpush1.bf16.msra.mxu0 0
    %2556 = vmatprep.subr.bf16.mxu0 0
    %2557 = vmatpush1.bf16.msra.mxu0 0
    %2558 = vmatprep.mubr.bf16.mxu0 0
    %2559 = vmatmul.mubr.bf16.gmra.mrb[0].mxu0 %v2241
    %v2560 = vpop.f32.mrb[0].mxu0
    %v2561 = vadd.f32 0.0, %v2560
    %v2562 = vpop.f32.mrb[0].mxu0
    %v2563 = vadd.f32 0.0, %v2562
    %v2564 = vpop.f32.mrb[0].mxu0
    %v2565 = vpop.f32.mrb[0].mxu0
    %2566 = vdwg.mxu0
    %2567 = vmatprep.subr.bf16.mxu0 %v2465
    %2568 = vmatpush1.bf16.msra.mxu0 %v2464
    %2569 = vmatprep.subr.bf16.mxu0 %v2469
    %2570 = vmatpush1.bf16.msra.mxu0 %v2468
    %2571 = vmatprep.subr.bf16.mxu0 %v2473
    %2572 = vmatpush1.bf16.msra.mxu0 %v2472
    %2573 = vmatprep.subr.bf16.mxu0 %v2477
    %2574 = vmatpush1.bf16.msra.mxu0 %v2476
    %2575 = vmatprep.subr.bf16.mxu0 %v2481
    %2576 = vmatpush1.bf16.msra.mxu0 %v2480
    %2577 = vmatprep.subr.bf16.mxu0 %v2485
    %2578 = vmatpush1.bf16.msra.mxu0 %v2484
    %2579 = vmatprep.subr.bf16.mxu0 %v2489
    %2580 = vmatpush1.bf16.msra.mxu0 %v2488
    %2581 = vmatprep.subr.bf16.mxu0 %v2493
    %2582 = vmatpush1.bf16.msra.mxu0 %v2492
    %2583 = vmatprep.subr.bf16.mxu0 0
    %2584 = vmatpush1.bf16.msra.mxu0 0
    %2585 = vmatprep.subr.bf16.mxu0 0
    %2586 = vmatpush1.bf16.msra.mxu0 0
    %2587 = vmatprep.subr.bf16.mxu0 0
    %2588 = vmatpush1.bf16.msra.mxu0 0
    %2589 = vmatprep.subr.bf16.mxu0 0
    %2590 = vmatpush1.bf16.msra.mxu0 0
    %2591 = vmatprep.subr.bf16.mxu0 0
    %2592 = vmatpush1.bf16.msra.mxu0 0
    %2593 = vmatprep.subr.bf16.mxu0 0
    %2594 = vmatpush1.bf16.msra.mxu0 0
    %2595 = vmatprep.subr.bf16.mxu0 0
    %2596 = vmatpush1.bf16.msra.mxu0 0
    %2597 = vmatprep.subr.bf16.mxu0 0
    %2598 = vmatpush1.bf16.msra.mxu0 0
    %2599 = vmatprep.mubr.bf16.mxu0 0
    %2600 = vmatmul.mubr.bf16.gmra.mrb[0].mxu0 %v2241
    %v2601 = vpop.f32.mrb[0].mxu0
    %v2602 = vadd.f32 0.0, %v2601
    %v2603 = vpop.f32.mrb[0].mxu0
    %v2604 = vadd.f32 0.0, %v2603
    %v2605 = vpop.f32.mrb[0].mxu0
    %v2606 = vpop.f32.mrb[0].mxu0
    %2607 = vdwg.mxu0
    %v2608 = vadd.f32 %v567, %v2561
    %v2609 = vadd.f32 %v569, %v2563
    %v2610 = vadd.f32 %v610, %v2602
    %v2611 = vadd.f32 %v612, %v2604
    %v2612 = vsub.f32 0.0, %v2608
    %v2613 = vmul.f32 %v2612, 1.442695
    %v2614 = vpow.pop %v2613
    %v2615 = vadd.f32 %v2614, 1.0
    %v2616 = vrcp.pop %v2615
    %v2617 = vmul.f32 1.0, %v2616
    %v2618 = vsub.f32 0.0, %v2609
    %v2619 = vmul.f32 %v2618, 1.442695
    %v2620 = vpow.pop %v2619
    %v2621 = vadd.f32 %v2620, 1.0
    %v2622 = vrcp.pop %v2621
    %v2623 = vmul.f32 1.0, %v2622
    %v2624 = vtanh.pop %v2610
    %v2625 = vsub.f32 0.0, %v2611
    %v2626 = vmul.f32 %v2625, 1.442695
    %v2627 = vpow.pop %v2626
    %v2628 = vadd.f32 %v2627, 1.0
    %v2629 = vrcp.pop %v2628
    %v2630 = vmul.f32 1.0, %v2629
    %v2632 = vrot.slane %v2215, 6
    %v2634 = vmul.f32 %v2623, %v2632
    %v2635 = vmul.f32 %v2617, %v2624
    %v2636 = vadd.f32 %v2634, %v2635
    %v2637 = vtanh.pop %v2636
    %v2638 = vmul.f32 %v2630, %v2637
    %vm2639 = vmor %vm2220, %vm275
    %vm2640 = vmor %vm2639, %vm614
    %v2641 = vsel %vm2640, -inf, 0.0
    %v2642 = vpack.c.bf16 %v2638, %v2638
    %v2643 = vld [vmem:[#allocation5] sm:$0xf]
    %v2644 = vld [vmem:[#allocation5 + $0x4] sm:$0xf]
    %v2645 = vld [vmem:[#allocation5 + $0x8] sm:$0xf]
    %v2646 = vld [vmem:[#allocation5 + $0xc] sm:$0xf]
    %v2647 = vld [vmem:[#allocation5 + $0x10] sm:$0xf]
    %v2648 = vld [vmem:[#allocation5 + $0x14] sm:$0xf]
    %v2649 = vld [vmem:[#allocation5 + $0x18] sm:$0xf]
    %v2650 = vld [vmem:[#allocation5 + $0x1c] sm:$0xf]
    %v2651 = vld [vmem:[#allocation5 + $0x20] sm:$0xf]
    %v2652 = vld [vmem:[#allocation5 + $0x24] sm:$0xf]
    %v2653 = vld [vmem:[#allocation5 + $0x28] sm:$0xf]
    %v2654 = vld [vmem:[#allocation5 + $0x2c] sm:$0xf]
    %v2655 = vld [vmem:[#allocation5 + $0x30] sm:$0xf]
    %v2656 = vld [vmem:[#allocation5 + $0x34] sm:$0xf]
    %v2657 = vld [vmem:[#allocation5 + $0x38] sm:$0xf]
    %v2658 = vld [vmem:[#allocation5 + $0x3c] sm:$0xf]
    %v2675 = vunpack.c.l.b16 %v2643
    %v2676 = vunpack.c.l.b16 %v2644
    %v2677 = vunpack.c.l.b16 %v2645
    %v2678 = vunpack.c.l.b16 %v2646
    %v2679 = vunpack.c.l.b16 %v2647
    %v2680 = vunpack.c.l.b16 %v2648
    %v2681 = vunpack.c.l.b16 %v2649
    %v2682 = vunpack.c.l.b16 %v2650
    %v2683 = vunpack.c.l.b16 %v2651
    %v2684 = vunpack.c.l.b16 %v2652
    %v2685 = vunpack.c.l.b16 %v2653
    %v2686 = vunpack.c.l.b16 %v2654
    %v2687 = vunpack.c.l.b16 %v2655
    %v2688 = vunpack.c.l.b16 %v2656
    %v2689 = vunpack.c.l.b16 %v2657
    %v2690 = vunpack.c.l.b16 %v2658
    %v2691 = vpack.c.b16 %v2676, %v2675
    %v2692 = vpack.c.b16 %v2678, %v2677
    %v2693 = vpack.c.b16 %v2680, %v2679
    %v2694 = vpack.c.b16 %v2682, %v2681
    %v2695 = vpack.c.b16 %v2684, %v2683
    %v2696 = vpack.c.b16 %v2686, %v2685
    %v2697 = vpack.c.b16 %v2688, %v2687
    %v2698 = vpack.c.b16 %v2690, %v2689
    %2707 = vmatprep.subr.bf16.mxu0 0
    %2708 = vmatpush1.bf16.msra.mxu0 %v2691
    %2709 = vmatprep.subr.bf16.mxu0 0
    %2710 = vmatpush1.bf16.msra.mxu0 %v2692
    %2711 = vmatprep.subr.bf16.mxu0 0
    %2712 = vmatpush1.bf16.msra.mxu0 %v2693
    %2713 = vmatprep.subr.bf16.mxu0 0
    %2714 = vmatpush1.bf16.msra.mxu0 %v2694
    %2715 = vmatprep.subr.bf16.mxu0 0
    %2716 = vmatpush1.bf16.msra.mxu0 %v2695
    %2717 = vmatprep.subr.bf16.mxu0 0
    %2718 = vmatpush1.bf16.msra.mxu0 %v2696
    %2719 = vmatprep.subr.bf16.mxu0 0
    %2720 = vmatpush1.bf16.msra.mxu0 %v2697
    %2721 = vmatprep.subr.bf16.mxu0 0
    %2722 = vmatpush1.bf16.msra.mxu0 %v2698
    %2723 = vmatprep.subr.bf16.mxu0 0
    %2724 = vmatpush1.bf16.msra.mxu0 0
    %2725 = vmatprep.subr.bf16.mxu0 0
    %2726 = vmatpush1.bf16.msra.mxu0 0
    %2727 = vmatprep.subr.bf16.mxu0 0
    %2728 = vmatpush1.bf16.msra.mxu0 0
    %2729 = vmatprep.subr.bf16.mxu0 0
    %2730 = vmatpush1.bf16.msra.mxu0 0
    %2731 = vmatprep.subr.bf16.mxu0 0
    %2732 = vmatpush1.bf16.msra.mxu0 0
    %2733 = vmatprep.subr.bf16.mxu0 0
    %2734 = vmatpush1.bf16.msra.mxu0 0
    %2735 = vmatprep.subr.bf16.mxu0 0
    %2736 = vmatpush1.bf16.msra.mxu0 0
    %2737 = vmatprep.subr.bf16.mxu0 0
    %2738 = vmatpush1.bf16.msra.mxu0 0
    %2739 = vmatprep.mubr.bf16.mxu0 0
    %2740 = vmatmul.mubr.bf16.gmra.mrb[0].mxu0 %v2642
    %v2741 = vpop.f32.mrb[0].mxu0
    %v2742 = vadd.f32 %v941, %v2741
    %v2743 = vpop.f32.mrb[0].mxu0
    %v2744 = vpop.f32.mrb[0].mxu0
    %v2745 = vpop.f32.mrb[0].mxu0
    %2746 = vdwg.mxu0
    %v2747 = vadd.f32 %v2742, %v2641
    %2748 = vst [vmem:[#allocation7 + $0x4] sm:$0x1] %v2747
    %2749 = vst [vmem:[#allocation7 + $0xb] sm:$0x2] %v2747
    %v2750 = vld [vmem:[%s9] sm:$0xff]
    %v2751 = vld [vmem:[%s9 + $0x8] sm:$0xff]
    %v2752 = vld [vmem:[%s9 + $0x10] sm:$0xff]
    %v2753 = vld [vmem:[%s9 + $0x18] sm:$0xff]
    %v2754 = vld [vmem:[%s9 + $0x20] sm:$0xff]
    %v2755 = vld [vmem:[%s9 + $0x28] sm:$0xff]
    %v2756 = vld [vmem:[%s9 + $0x30] sm:$0xff]
    %v2757 = vld [vmem:[%s9 + $0x38] sm:$0xff]
    %v2758 = vld [vmem:[%s9 + $0x40] sm:$0xff]
    %v2759 = vld [vmem:[%s9 + $0x48] sm:$0xff]
    %v2760 = vld [vmem:[%s9 + $0x50] sm:$0xff]
    %v2761 = vld [vmem:[%s9 + $0x58] sm:$0xff]
    %v2762 = vld [vmem:[%s9 + $0x60] sm:$0xff]
    %v2763 = vld [vmem:[%s9 + $0x68] sm:$0xff]
    %v2764 = vld [vmem:[%s9 + $0x70] sm:$0xff]
    %v2765 = vld [vmem:[%s9 + $0x78] sm:$0xff]
    %v2766 = vld [vmem:[%s9 + $0x80] sm:$0xff]
    %v2767 = vld [vmem:[%s9 + $0x88] sm:$0xff]
    %v2768 = vld [vmem:[%s9 + $0x90] sm:$0xff]
    %v2769 = vld [vmem:[%s9 + $0x98] sm:$0xff]
    %v2770 = vld [vmem:[%s9 + $0xa0] sm:$0xff]
    %v2771 = vld [vmem:[%s9 + $0xa8] sm:$0xff]
    %v2772 = vld [vmem:[%s9 + $0xb0] sm:$0xff]
    %v2773 = vld [vmem:[%s9 + $0xb8] sm:$0xff]
    %v2774 = vld [vmem:[%s9 + $0xc0] sm:$0xff]
    %v2775 = vld [vmem:[%s9 + $0xc8] sm:$0xff]
    %v2776 = vld [vmem:[%s9 + $0xd0] sm:$0xff]
    %v2777 = vld [vmem:[%s9 + $0xd8] sm:$0xff]
    %v2778 = vld [vmem:[%s9 + $0xe0] sm:$0xff]
    %v2779 = vld [vmem:[%s9 + $0xe8] sm:$0xff]
    %v2780 = vld [vmem:[%s9 + $0xf0] sm:$0xff]
    %v2781 = vld [vmem:[%s9 + $0xf8] sm:$0xff]
    %v2814 = vunpack.c.l.b16 %v2750
    %v2815 = vunpack.c.h.b16 %v2750
    %v2816 = vunpack.c.l.b16 %v2751
    %v2817 = vunpack.c.h.b16 %v2751
    %v2818 = vunpack.c.l.b16 %v2752
    %v2819 = vunpack.c.h.b16 %v2752
    %v2820 = vunpack.c.l.b16 %v2753
    %v2821 = vunpack.c.h.b16 %v2753
    %v2822 = vunpack.c.l.b16 %v2754
    %v2823 = vunpack.c.h.b16 %v2754
    %v2824 = vunpack.c.l.b16 %v2755
    %v2825 = vunpack.c.h.b16 %v2755
    %v2826 = vunpack.c.l.b16 %v2756
    %v2827 = vunpack.c.h.b16 %v2756
    %v2828 = vunpack.c.l.b16 %v2757
    %v2829 = vunpack.c.h.b16 %v2757
    %v2830 = vunpack.c.l.b16 %v2758
    %v2831 = vunpack.c.h.b16 %v2758
    %v2832 = vunpack.c.l.b16 %v2759
    %v2833 = vunpack.c.h.b16 %v2759
    %v2834 = vunpack.c.l.b16 %v2760
    %v2835 = vunpack.c.h.b16 %v2760
    %v2836 = vunpack.c.l.b16 %v2761
    %v2837 = vunpack.c.h.b16 %v2761
    %v2838 = vunpack.c.l.b16 %v2762
    %v2839 = vunpack.c.h.b16 %v2762
    %v2840 = vunpack.c.l.b16 %v2763
    %v2841 = vunpack.c.h.b16 %v2763
    %v2842 = vunpack.c.l.b16 %v2764
    %v2843 = vunpack.c.h.b16 %v2764
    %v2844 = vunpack.c.l.b16 %v2765
    %v2845 = vunpack.c.h.b16 %v2765
    %v2846 = vunpack.c.l.b16 %v2766
    %v2847 = vunpack.c.h.b16 %v2766
    %v2848 = vunpack.c.l.b16 %v2767
    %v2849 = vunpack.c.h.b16 %v2767
    %v2850 = vunpack.c.l.b16 %v2768
    %v2851 = vunpack.c.h.b16 %v2768
    %v2852 = vunpack.c.l.b16 %v2769
    %v2853 = vunpack.c.h.b16 %v2769
    %v2854 = vunpack.c.l.b16 %v2770
    %v2855 = vunpack.c.h.b16 %v2770
    %v2856 = vunpack.c.l.b16 %v2771
    %v2857 = vunpack.c.h.b16 %v2771
    %v2858 = vunpack.c.l.b16 %v2772
    %v2859 = vunpack.c.h.b16 %v2772
    %v2860 = vunpack.c.l.b16 %v2773
    %v2861 = vunpack.c.h.b16 %v2773
    %v2862 = vunpack.c.l.b16 %v2774
    %v2863 = vunpack.c.h.b16 %v2774
    %v2864 = vunpack.c.l.b16 %v2775
    %v2865 = vunpack.c.h.b16 %v2775
    %v2866 = vunpack.c.l.b16 %v2776
    %v2867 = vunpack.c.h.b16 %v2776
    %v2868 = vunpack.c.l.b16 %v2777
    %v2869 = vunpack.c.h.b16 %v2777
    %v2870 = vunpack.c.l.b16 %v2778
    %v2871 = vunpack.c.h.b16 %v2778
    %v2872 = vunpack.c.l.b16 %v2779
    %v2873 = vunpack.c.h.b16 %v2779
    %v2874 = vunpack.c.l.b16 %v2780
    %v2875 = vunpack.c.h.b16 %v2780
    %v2876 = vunpack.c.l.b16 %v2781
    %v2877 = vunpack.c.h.b16 %v2781
    %v2878 = vpack.c.b16 %v2818, %v2814
    %v2879 = vpack.c.b16 %v2819, %v2815
    %v2880 = vpack.c.b16 %v2820, %v2816
    %v2881 = vpack.c.b16 %v2821, %v2817
    %v2882 = vpack.c.b16 %v2826, %v2822
    %v2883 = vpack.c.b16 %v2827, %v2823
    %v2884 = vpack.c.b16 %v2828, %v2824
    %v2885 = vpack.c.b16 %v2829, %v2825
    %v2886 = vpack.c.b16 %v2834, %v2830
    %v2887 = vpack.c.b16 %v2835, %v2831
    %v2888 = vpack.c.b16 %v2836, %v2832
    %v2889 = vpack.c.b16 %v2837, %v2833
    %v2890 = vpack.c.b16 %v2842, %v2838
    %v2891 = vpack.c.b16 %v2843, %v2839
    %v2892 = vpack.c.b16 %v2844, %v2840
    %v2893 = vpack.c.b16 %v2845, %v2841
    %v2894 = vpack.c.b16 %v2850, %v2846
    %v2895 = vpack.c.b16 %v2851, %v2847
    %v2896 = vpack.c.b16 %v2852, %v2848
    %v2897 = vpack.c.b16 %v2853, %v2849
    %v2898 = vpack.c.b16 %v2858, %v2854
    %v2899 = vpack.c.b16 %v2859, %v2855
    %v2900 = vpack.c.b16 %v2860, %v2856
    %v2901 = vpack.c.b16 %v2861, %v2857
    %v2902 = vpack.c.b16 %v2866, %v2862
    %v2903 = vpack.c.b16 %v2867, %v2863
    %v2904 = vpack.c.b16 %v2868, %v2864
    %v2905 = vpack.c.b16 %v2869, %v2865
    %v2906 = vpack.c.b16 %v2874, %v2870
    %v2907 = vpack.c.b16 %v2875, %v2871
    %v2908 = vpack.c.b16 %v2876, %v2872
    %v2909 = vpack.c.b16 %v2877, %v2873
    %2942 = vmatprep.subr.bf16.mxu0 %v2879
    %2943 = vmatpush1.bf16.msra.mxu0 %v2878
    %2944 = vmatprep.subr.bf16.mxu0 %v2883
    %2945 = vmatpush1.bf16.msra.mxu0 %v2882
    %2946 = vmatprep.subr.bf16.mxu0 %v2887
    %2947 = vmatpush1.bf16.msra.mxu0 %v2886
    %2948 = vmatprep.subr.bf16.mxu0 %v2891
    %2949 = vmatpush1.bf16.msra.mxu0 %v2890
    %2950 = vmatprep.subr.bf16.mxu0 %v2895
    %2951 = vmatpush1.bf16.msra.mxu0 %v2894
    %2952 = vmatprep.subr.bf16.mxu0 %v2899
    %2953 = vmatpush1.bf16.msra.mxu0 %v2898
    %2954 = vmatprep.subr.bf16.mxu0 %v2903
    %2955 = vmatpush1.bf16.msra.mxu0 %v2902
    %2956 = vmatprep.subr.bf16.mxu0 %v2907
    %2957 = vmatpush1.bf16.msra.mxu0 %v2906
    %2958 = vmatprep.subr.bf16.mxu0 0
    %2959 = vmatpush1.bf16.msra.mxu0 0
    %2960 = vmatprep.subr.bf16.mxu0 0
    %2961 = vmatpush1.bf16.msra.mxu0 0
    %2962 = vmatprep.subr.bf16.mxu0 0
    %2963 = vmatpush1.bf16.msra.mxu0 0
    %2964 = vmatprep.subr.bf16.mxu0 0
    %2965 = vmatpush1.bf16.msra.mxu0 0
    %2966 = vmatprep.subr.bf16.mxu0 0
    %2967 = vmatpush1.bf16.msra.mxu0 0
    %2968 = vmatprep.subr.bf16.mxu0 0
    %2969 = vmatpush1.bf16.msra.mxu0 0
    %2970 = vmatprep.subr.bf16.mxu0 0
    %2971 = vmatpush1.bf16.msra.mxu0 0
    %2972 = vmatprep.subr.bf16.mxu0 0
    %2973 = vmatpush1.bf16.msra.mxu0 0
    %2974 = vmatprep.mubr.bf16.mxu0 0
    %2975 = vmatmul.mubr.bf16.gmra.mrb[0].mxu0 %v2642
    %v2976 = vpop.f32.mrb[0].mxu0
    %v2977 = vadd.f32 0.0, %v2976
    %v2978 = vpop.f32.mrb[0].mxu0
    %v2979 = vadd.f32 0.0, %v2978
    %v2980 = vpop.f32.mrb[0].mxu0
    %v2981 = vpop.f32.mrb[0].mxu0
    %2982 = vdwg.mxu0
    %2983 = vmatprep.subr.bf16.mxu0 %v2881
    %2984 = vmatpush1.bf16.msra.mxu0 %v2880
    %2985 = vmatprep.subr.bf16.mxu0 %v2885
    %2986 = vmatpush1.bf16.msra.mxu0 %v2884
    %2987 = vmatprep.subr.bf16.mxu0 %v2889
    %2988 = vmatpush1.bf16.msra.mxu0 %v2888
    %2989 = vmatprep.subr.bf16.mxu0 %v2893
    %2990 = vmatpush1.bf16.msra.mxu0 %v2892
    %2991 = vmatprep.subr.bf16.mxu0 %v2897
    %2992 = vmatpush1.bf16.msra.mxu0 %v2896
    %2993 = vmatprep.subr.bf16.mxu0 %v2901
    %2994 = vmatpush1.bf16.msra.mxu0 %v2900
    %2995 = vmatprep.subr.bf16.mxu0 %v2905
    %2996 = vmatpush1.bf16.msra.mxu0 %v2904
    %2997 = vmatprep.subr.bf16.mxu0 %v2909
    %2998 = vmatpush1.bf16.msra.mxu0 %v2908
    %2999 = vmatprep.subr.bf16.mxu0 0
    %3000 = vmatpush1.bf16.msra.mxu0 0
    %3001 = vmatprep.subr.bf16.mxu0 0
    %3002 = vmatpush1.bf16.msra.mxu0 0
    %3003 = vmatprep.subr.bf16.mxu0 0
    %3004 = vmatpush1.bf16.msra.mxu0 0
    %3005 = vmatprep.subr.bf16.mxu0 0
    %3006 = vmatpush1.bf16.msra.mxu0 0
    %3007 = vmatprep.subr.bf16.mxu0 0
    %3008 = vmatpush1.bf16.msra.mxu0 0
    %3009 = vmatprep.subr.bf16.mxu0 0
    %3010 = vmatpush1.bf16.msra.mxu0 0
    %3011 = vmatprep.subr.bf16.mxu0 0
    %3012 = vmatpush1.bf16.msra.mxu0 0
    %3013 = vmatprep.subr.bf16.mxu0 0
    %3014 = vmatpush1.bf16.msra.mxu0 0
    %3015 = vmatprep.mubr.bf16.mxu0 0
    %3016 = vmatmul.mubr.bf16.gmra.mrb[0].mxu0 %v2642
    %v3017 = vpop.f32.mrb[0].mxu0
    %v3018 = vadd.f32 0.0, %v3017
    %v3019 = vpop.f32.mrb[0].mxu0
    %v3020 = vadd.f32 0.0, %v3019
    %v3021 = vpop.f32.mrb[0].mxu0
    %v3022 = vpop.f32.mrb[0].mxu0
    %3023 = vdwg.mxu0
    %v3028 = vrot.slane %v2977, 6
    %v3029 = vrot.slane %v2979, 6
    %v3030 = vrot.slane %v3018, 6
    %v3031 = vrot.slane %v3020, 6
    %v3036 = vadd.f32 %v567, %v3028
    %v3037 = vadd.f32 %v569, %v3029
    %v3038 = vadd.f32 %v610, %v3030
    %v3039 = vadd.f32 %v612, %v3031
    %v3040 = vsub.f32 0.0, %v3036
    %v3041 = vmul.f32 %v3040, 1.442695
    %v3042 = vpow.pop %v3041
    %v3043 = vadd.f32 %v3042, 1.0
    %v3044 = vrcp.pop %v3043
    %v3045 = vmul.f32 1.0, %v3044
    %v3046 = vsub.f32 0.0, %v3037
    %v3047 = vmul.f32 %v3046, 1.442695
    %v3048 = vpow.pop %v3047
    %v3049 = vadd.f32 %v3048, 1.0
    %v3050 = vrcp.pop %v3049
    %v3051 = vmul.f32 1.0, %v3050
    %v3052 = vtanh.pop %v3038
    %v3053 = vsub.f32 0.0, %v3039
    %v3054 = vmul.f32 %v3053, 1.442695
    %v3055 = vpow.pop %v3054
    %v3056 = vadd.f32 %v3055, 1.0
    %v3057 = vrcp.pop %v3056
    %v3058 = vmul.f32 1.0, %v3057
    %v3060 = vrot.slane %v2636, 6
    %v3062 = vmul.f32 %v3051, %v3060
    %v3063 = vmul.f32 %v3045, %v3052
    %v3064 = vadd.f32 %v3062, %v3063
    %v3065 = vtanh.pop %v3064
    %v3066 = vmul.f32 %v3058, %v3065
    %v3067 = vsel %vm275, 1, 0
    %v3068 = vrot.slane %v3067, 2
    %vm3069 = vcmp.ne.s32.totalorder %v3068, 0
    %vm3070 = vmor %vm2639, %vm3069
    %vm3071 = vmor %vm3070, %vm614
    %v3072 = vsel %vm3071, -inf, 0.0
    %v3073 = vpack.c.bf16 %v3066, %v3066
    %v3074 = vld [vmem:[#allocation5] sm:$0xf]
    %v3075 = vld [vmem:[#allocation5 + $0x4] sm:$0xf]
    %v3076 = vld [vmem:[#allocation5 + $0x8] sm:$0xf]
    %v3077 = vld [vmem:[#allocation5 + $0xc] sm:$0xf]
    %v3078 = vld [vmem:[#allocation5 + $0x10] sm:$0xf]
    %v3079 = vld [vmem:[#allocation5 + $0x14] sm:$0xf]
    %v3080 = vld [vmem:[#allocation5 + $0x18] sm:$0xf]
    %v3081 = vld [vmem:[#allocation5 + $0x1c] sm:$0xf]
    %v3082 = vld [vmem:[#allocation5 + $0x20] sm:$0xf]
    %v3083 = vld [vmem:[#allocation5 + $0x24] sm:$0xf]
    %v3084 = vld [vmem:[#allocation5 + $0x28] sm:$0xf]
    %v3085 = vld [vmem:[#allocation5 + $0x2c] sm:$0xf]
    %v3086 = vld [vmem:[#allocation5 + $0x30] sm:$0xf]
    %v3087 = vld [vmem:[#allocation5 + $0x34] sm:$0xf]
    %v3088 = vld [vmem:[#allocation5 + $0x38] sm:$0xf]
    %v3089 = vld [vmem:[#allocation5 + $0x3c] sm:$0xf]
    %v3091 = vrot.slane %v3073, 1
    %v3109 = vunpack.c.l.b16 %v3074
    %v3110 = vunpack.c.l.b16 %v3075
    %v3111 = vunpack.c.l.b16 %v3076
    %v3112 = vunpack.c.l.b16 %v3077
    %v3113 = vunpack.c.l.b16 %v3078
    %v3114 = vunpack.c.l.b16 %v3079
    %v3115 = vunpack.c.l.b16 %v3080
    %v3116 = vunpack.c.l.b16 %v3081
    %v3117 = vunpack.c.l.b16 %v3082
    %v3118 = vunpack.c.l.b16 %v3083
    %v3119 = vunpack.c.l.b16 %v3084
    %v3120 = vunpack.c.l.b16 %v3085
    %v3121 = vunpack.c.l.b16 %v3086
    %v3122 = vunpack.c.l.b16 %v3087
    %v3123 = vunpack.c.l.b16 %v3088
    %v3124 = vunpack.c.l.b16 %v3089
    %v3125 = vpack.c.b16 %v3110, %v3109
    %v3126 = vpack.c.b16 %v3112, %v3111
    %v3127 = vpack.c.b16 %v3114, %v3113
    %v3128 = vpack.c.b16 %v3116, %v3115
    %v3129 = vpack.c.b16 %v3118, %v3117
    %v3130 = vpack.c.b16 %v3120, %v3119
    %v3131 = vpack.c.b16 %v3122, %v3121
    %v3132 = vpack.c.b16 %v3124, %v3123
    %3141 = vmatprep.subr.bf16.mxu0 0
    %3142 = vmatpush1.bf16.msra.mxu0 %v3125
    %3143 = vmatprep.subr.bf16.mxu0 0
    %3144 = vmatpush1.bf16.msra.mxu0 %v3126
    %3145 = vmatprep.subr.bf16.mxu0 0
    %3146 = vmatpush1.bf16.msra.mxu0 %v3127
    %3147 = vmatprep.subr.bf16.mxu0 0
    %3148 = vmatpush1.bf16.msra.mxu0 %v3128
    %3149 = vmatprep.subr.bf16.mxu0 0
    %3150 = vmatpush1.bf16.msra.mxu0 %v3129
    %3151 = vmatprep.subr.bf16.mxu0 0
    %3152 = vmatpush1.bf16.msra.mxu0 %v3130
    %3153 = vmatprep.subr.bf16.mxu0 0
    %3154 = vmatpush1.bf16.msra.mxu0 %v3131
    %3155 = vmatprep.subr.bf16.mxu0 0
    %3156 = vmatpush1.bf16.msra.mxu0 %v3132
    %3157 = vmatprep.subr.bf16.mxu0 0
    %3158 = vmatpush1.bf16.msra.mxu0 0
    %3159 = vmatprep.subr.bf16.mxu0 0
    %3160 = vmatpush1.bf16.msra.mxu0 0
    %3161 = vmatprep.subr.bf16.mxu0 0
    %3162 = vmatpush1.bf16.msra.mxu0 0
    %3163 = vmatprep.subr.bf16.mxu0 0
    %3164 = vmatpush1.bf16.msra.mxu0 0
    %3165 = vmatprep.subr.bf16.mxu0 0
    %3166 = vmatpush1.bf16.msra.mxu0 0
    %3167 = vmatprep.subr.bf16.mxu0 0
    %3168 = vmatpush1.bf16.msra.mxu0 0
    %3169 = vmatprep.subr.bf16.mxu0 0
    %3170 = vmatpush1.bf16.msra.mxu0 0
    %3171 = vmatprep.subr.bf16.mxu0 0
    %3172 = vmatpush1.bf16.msra.mxu0 0
    %3173 = vmatprep.mubr.bf16.mxu0 0
    %3174 = vmatmul.mubr.bf16.gmra.mrb[0].mxu0 %v3091
    %v3175 = vpop.f32.mrb[0].mxu0
    %v3176 = vadd.f32 %v941, %v3175
    %v3177 = vpop.f32.mrb[0].mxu0
    %v3178 = vpop.f32.mrb[0].mxu0
    %v3179 = vpop.f32.mrb[0].mxu0
    %3180 = vdwg.mxu0
    %v3181 = vadd.f32 %v3176, %v3072
    %3182 = vst [vmem:[#allocation7 + $0x5] sm:$0x1] %v3181
    %3183 = vst [vmem:[#allocation7 + $0xc] sm:$0x2] %v3181
    %v3184 = vld [vmem:[%s9] sm:$0xff]
    %v3185 = vld [vmem:[%s9 + $0x8] sm:$0xff]
    %v3186 = vld [vmem:[%s9 + $0x10] sm:$0xff]
    %v3187 = vld [vmem:[%s9 + $0x18] sm:$0xff]
    %v3188 = vld [vmem:[%s9 + $0x20] sm:$0xff]
    %v3189 = vld [vmem:[%s9 + $0x28] sm:$0xff]
    %v3190 = vld [vmem:[%s9 + $0x30] sm:$0xff]
    %v3191 = vld [vmem:[%s9 + $0x38] sm:$0xff]
    %v3192 = vld [vmem:[%s9 + $0x40] sm:$0xff]
    %v3193 = vld [vmem:[%s9 + $0x48] sm:$0xff]
    %v3194 = vld [vmem:[%s9 + $0x50] sm:$0xff]
    %v3195 = vld [vmem:[%s9 + $0x58] sm:$0xff]
    %v3196 = vld [vmem:[%s9 + $0x60] sm:$0xff]
    %v3197 = vld [vmem:[%s9 + $0x68] sm:$0xff]
    %v3198 = vld [vmem:[%s9 + $0x70] sm:$0xff]
    %v3199 = vld [vmem:[%s9 + $0x78] sm:$0xff]
    %v3200 = vld [vmem:[%s9 + $0x80] sm:$0xff]
    %v3201 = vld [vmem:[%s9 + $0x88] sm:$0xff]
    %v3202 = vld [vmem:[%s9 + $0x90] sm:$0xff]
    %v3203 = vld [vmem:[%s9 + $0x98] sm:$0xff]
    %v3204 = vld [vmem:[%s9 + $0xa0] sm:$0xff]
    %v3205 = vld [vmem:[%s9 + $0xa8] sm:$0xff]
    %v3206 = vld [vmem:[%s9 + $0xb0] sm:$0xff]
    %v3207 = vld [vmem:[%s9 + $0xb8] sm:$0xff]
    %v3208 = vld [vmem:[%s9 + $0xc0] sm:$0xff]
    %v3209 = vld [vmem:[%s9 + $0xc8] sm:$0xff]
    %v3210 = vld [vmem:[%s9 + $0xd0] sm:$0xff]
    %v3211 = vld [vmem:[%s9 + $0xd8] sm:$0xff]
    %v3212 = vld [vmem:[%s9 + $0xe0] sm:$0xff]
    %v3213 = vld [vmem:[%s9 + $0xe8] sm:$0xff]
    %v3214 = vld [vmem:[%s9 + $0xf0] sm:$0xff]
    %v3215 = vld [vmem:[%s9 + $0xf8] sm:$0xff]
    %v3248 = vunpack.c.l.b16 %v3184
    %v3249 = vunpack.c.h.b16 %v3184
    %v3250 = vunpack.c.l.b16 %v3185
    %v3251 = vunpack.c.h.b16 %v3185
    %v3252 = vunpack.c.l.b16 %v3186
    %v3253 = vunpack.c.h.b16 %v3186
    %v3254 = vunpack.c.l.b16 %v3187
    %v3255 = vunpack.c.h.b16 %v3187
    %v3256 = vunpack.c.l.b16 %v3188
    %v3257 = vunpack.c.h.b16 %v3188
    %v3258 = vunpack.c.l.b16 %v3189
    %v3259 = vunpack.c.h.b16 %v3189
    %v3260 = vunpack.c.l.b16 %v3190
    %v3261 = vunpack.c.h.b16 %v3190
    %v3262 = vunpack.c.l.b16 %v3191
    %v3263 = vunpack.c.h.b16 %v3191
    %v3264 = vunpack.c.l.b16 %v3192
    %v3265 = vunpack.c.h.b16 %v3192
    %v3266 = vunpack.c.l.b16 %v3193
    %v3267 = vunpack.c.h.b16 %v3193
    %v3268 = vunpack.c.l.b16 %v3194
    %v3269 = vunpack.c.h.b16 %v3194
    %v3270 = vunpack.c.l.b16 %v3195
    %v3271 = vunpack.c.h.b16 %v3195
    %v3272 = vunpack.c.l.b16 %v3196
    %v3273 = vunpack.c.h.b16 %v3196
    %v3274 = vunpack.c.l.b16 %v3197
    %v3275 = vunpack.c.h.b16 %v3197
    %v3276 = vunpack.c.l.b16 %v3198
    %v3277 = vunpack.c.h.b16 %v3198
    %v3278 = vunpack.c.l.b16 %v3199
    %v3279 = vunpack.c.h.b16 %v3199
    %v3280 = vunpack.c.l.b16 %v3200
    %v3281 = vunpack.c.h.b16 %v3200
    %v3282 = vunpack.c.l.b16 %v3201
    %v3283 = vunpack.c.h.b16 %v3201
    %v3284 = vunpack.c.l.b16 %v3202
    %v3285 = vunpack.c.h.b16 %v3202
    %v3286 = vunpack.c.l.b16 %v3203
    %v3287 = vunpack.c.h.b16 %v3203
    %v3288 = vunpack.c.l.b16 %v3204
    %v3289 = vunpack.c.h.b16 %v3204
    %v3290 = vunpack.c.l.b16 %v3205
    %v3291 = vunpack.c.h.b16 %v3205
    %v3292 = vunpack.c.l.b16 %v3206
    %v3293 = vunpack.c.h.b16 %v3206
    %v3294 = vunpack.c.l.b16 %v3207
    %v3295 = vunpack.c.h.b16 %v3207
    %v3296 = vunpack.c.l.b16 %v3208
    %v3297 = vunpack.c.h.b16 %v3208
    %v3298 = vunpack.c.l.b16 %v3209
    %v3299 = vunpack.c.h.b16 %v3209
    %v3300 = vunpack.c.l.b16 %v3210
    %v3301 = vunpack.c.h.b16 %v3210
    %v3302 = vunpack.c.l.b16 %v3211
    %v3303 = vunpack.c.h.b16 %v3211
    %v3304 = vunpack.c.l.b16 %v3212
    %v3305 = vunpack.c.h.b16 %v3212
    %v3306 = vunpack.c.l.b16 %v3213
    %v3307 = vunpack.c.h.b16 %v3213
    %v3308 = vunpack.c.l.b16 %v3214
    %v3309 = vunpack.c.h.b16 %v3214
    %v3310 = vunpack.c.l.b16 %v3215
    %v3311 = vunpack.c.h.b16 %v3215
    %v3312 = vpack.c.b16 %v3252, %v3248
    %v3313 = vpack.c.b16 %v3253, %v3249
    %v3314 = vpack.c.b16 %v3254, %v3250
    %v3315 = vpack.c.b16 %v3255, %v3251
    %v3316 = vpack.c.b16 %v3260, %v3256
    %v3317 = vpack.c.b16 %v3261, %v3257
    %v3318 = vpack.c.b16 %v3262, %v3258
    %v3319 = vpack.c.b16 %v3263, %v3259
    %v3320 = vpack.c.b16 %v3268, %v3264
    %v3321 = vpack.c.b16 %v3269, %v3265
    %v3322 = vpack.c.b16 %v3270, %v3266
    %v3323 = vpack.c.b16 %v3271, %v3267
    %v3324 = vpack.c.b16 %v3276, %v3272
    %v3325 = vpack.c.b16 %v3277, %v3273
    %v3326 = vpack.c.b16 %v3278, %v3274
    %v3327 = vpack.c.b16 %v3279, %v3275
    %v3328 = vpack.c.b16 %v3284, %v3280
    %v3329 = vpack.c.b16 %v3285, %v3281
    %v3330 = vpack.c.b16 %v3286, %v3282
    %v3331 = vpack.c.b16 %v3287, %v3283
    %v3332 = vpack.c.b16 %v3292, %v3288
    %v3333 = vpack.c.b16 %v3293, %v3289
    %v3334 = vpack.c.b16 %v3294, %v3290
    %v3335 = vpack.c.b16 %v3295, %v3291
    %v3336 = vpack.c.b16 %v3300, %v3296
    %v3337 = vpack.c.b16 %v3301, %v3297
    %v3338 = vpack.c.b16 %v3302, %v3298
    %v3339 = vpack.c.b16 %v3303, %v3299
    %v3340 = vpack.c.b16 %v3308, %v3304
    %v3341 = vpack.c.b16 %v3309, %v3305
    %v3342 = vpack.c.b16 %v3310, %v3306
    %v3343 = vpack.c.b16 %v3311, %v3307
    %3376 = vmatprep.subr.bf16.mxu0 %v3313
    %3377 = vmatpush1.bf16.msra.mxu0 %v3312
    %3378 = vmatprep.subr.bf16.mxu0 %v3317
    %3379 = vmatpush1.bf16.msra.mxu0 %v3316
    %3380 = vmatprep.subr.bf16.mxu0 %v3321
    %3381 = vmatpush1.bf16.msra.mxu0 %v3320
    %3382 = vmatprep.subr.bf16.mxu0 %v3325
    %3383 = vmatpush1.bf16.msra.mxu0 %v3324
    %3384 = vmatprep.subr.bf16.mxu0 %v3329
    %3385 = vmatpush1.bf16.msra.mxu0 %v3328
    %3386 = vmatprep.subr.bf16.mxu0 %v3333
    %3387 = vmatpush1.bf16.msra.mxu0 %v3332
    %3388 = vmatprep.subr.bf16.mxu0 %v3337
    %3389 = vmatpush1.bf16.msra.mxu0 %v3336
    %3390 = vmatprep.subr.bf16.mxu0 %v3341
    %3391 = vmatpush1.bf16.msra.mxu0 %v3340
    %3392 = vmatprep.subr.bf16.mxu0 0
    %3393 = vmatpush1.bf16.msra.mxu0 0
    %3394 = vmatprep.subr.bf16.mxu0 0
    %3395 = vmatpush1.bf16.msra.mxu0 0
    %3396 = vmatprep.subr.bf16.mxu0 0
    %3397 = vmatpush1.bf16.msra.mxu0 0
    %3398 = vmatprep.subr.bf16.mxu0 0
    %3399 = vmatpush1.bf16.msra.mxu0 0
    %3400 = vmatprep.subr.bf16.mxu0 0
    %3401 = vmatpush1.bf16.msra.mxu0 0
    %3402 = vmatprep.subr.bf16.mxu0 0
    %3403 = vmatpush1.bf16.msra.mxu0 0
    %3404 = vmatprep.subr.bf16.mxu0 0
    %3405 = vmatpush1.bf16.msra.mxu0 0
    %3406 = vmatprep.subr.bf16.mxu0 0
    %3407 = vmatpush1.bf16.msra.mxu0 0
    %3408 = vmatprep.mubr.bf16.mxu0 0
    %3409 = vmatmul.mubr.bf16.gmra.mrb[0].mxu0 %v3091
    %v3410 = vpop.f32.mrb[0].mxu0
    %v3411 = vadd.f32 0.0, %v3410
    %v3412 = vpop.f32.mrb[0].mxu0
    %v3413 = vadd.f32 0.0, %v3412
    %v3414 = vpop.f32.mrb[0].mxu0
    %v3415 = vpop.f32.mrb[0].mxu0
    %3416 = vdwg.mxu0
    %3417 = vmatprep.subr.bf16.mxu0 %v3315
    %3418 = vmatpush1.bf16.msra.mxu0 %v3314
    %3419 = vmatprep.subr.bf16.mxu0 %v3319
    %3420 = vmatpush1.bf16.msra.mxu0 %v3318
    %3421 = vmatprep.subr.bf16.mxu0 %v3323
    %3422 = vmatpush1.bf16.msra.mxu0 %v3322
    %3423 = vmatprep.subr.bf16.mxu0 %v3327
    %3424 = vmatpush1.bf16.msra.mxu0 %v3326
    %3425 = vmatprep.subr.bf16.mxu0 %v3331
    %3426 = vmatpush1.bf16.msra.mxu0 %v3330
    %3427 = vmatprep.subr.bf16.mxu0 %v3335
    %3428 = vmatpush1.bf16.msra.mxu0 %v3334
    %3429 = vmatprep.subr.bf16.mxu0 %v3339
    %3430 = vmatpush1.bf16.msra.mxu0 %v3338
    %3431 = vmatprep.subr.bf16.mxu0 %v3343
    %3432 = vmatpush1.bf16.msra.mxu0 %v3342
    %3433 = vmatprep.subr.bf16.mxu0 0
    %3434 = vmatpush1.bf16.msra.mxu0 0
    %3435 = vmatprep.subr.bf16.mxu0 0
    %3436 = vmatpush1.bf16.msra.mxu0 0
    %3437 = vmatprep.subr.bf16.mxu0 0
    %3438 = vmatpush1.bf16.msra.mxu0 0
    %3439 = vmatprep.subr.bf16.mxu0 0
    %3440 = vmatpush1.bf16.msra.mxu0 0
    %3441 = vmatprep.subr.bf16.mxu0 0
    %3442 = vmatpush1.bf16.msra.mxu0 0
    %3443 = vmatprep.subr.bf16.mxu0 0
    %3444 = vmatpush1.bf16.msra.mxu0 0
    %3445 = vmatprep.subr.bf16.mxu0 0
    %3446 = vmatpush1.bf16.msra.mxu0 0
    %3447 = vmatprep.subr.bf16.mxu0 0
    %3448 = vmatpush1.bf16.msra.mxu0 0
    %3449 = vmatprep.mubr.bf16.mxu0 0
    %3450 = vmatmul.mubr.bf16.gmra.mrb[0].mxu0 %v3091
    %v3451 = vpop.f32.mrb[0].mxu0
    %v3452 = vadd.f32 0.0, %v3451
    %v3453 = vpop.f32.mrb[0].mxu0
    %v3454 = vadd.f32 0.0, %v3453
    %v3455 = vpop.f32.mrb[0].mxu0
    %v3456 = vpop.f32.mrb[0].mxu0
    %3457 = vdwg.mxu0
    %v3462 = vrot.slane %v3411, 4
    %v3463 = vrot.slane %v3413, 4
    %v3464 = vrot.slane %v3452, 4
    %v3465 = vrot.slane %v3454, 4
    %v3470 = vadd.f32 %v567, %v3462
    %v3471 = vadd.f32 %v569, %v3463
    %v3472 = vadd.f32 %v610, %v3464
    %v3473 = vadd.f32 %v612, %v3465
    %v3474 = vsub.f32 0.0, %v3470
    %v3475 = vmul.f32 %v3474, 1.442695
    %v3476 = vpow.pop %v3475
    %v3477 = vadd.f32 %v3476, 1.0
    %v3478 = vrcp.pop %v3477
    %v3479 = vmul.f32 1.0, %v3478
    %v3480 = vsub.f32 0.0, %v3471
    %v3481 = vmul.f32 %v3480, 1.442695
    %v3482 = vpow.pop %v3481
    %v3483 = vadd.f32 %v3482, 1.0
    %v3484 = vrcp.pop %v3483
    %v3485 = vmul.f32 1.0, %v3484
    %v3486 = vtanh.pop %v3472
    %v3487 = vsub.f32 0.0, %v3473
    %v3488 = vmul.f32 %v3487, 1.442695
    %v3489 = vpow.pop %v3488
    %v3490 = vadd.f32 %v3489, 1.0
    %v3491 = vrcp.pop %v3490
    %v3492 = vmul.f32 1.0, %v3491
    %v3494 = vrot.slane %v3064, 6
    %v3496 = vmul.f32 %v3485, %v3494
    %v3497 = vmul.f32 %v3479, %v3486
    %v3498 = vadd.f32 %v3496, %v3497
    %v3499 = vtanh.pop %v3498
    %v3500 = vmul.f32 %v3492, %v3499
    %v3501 = vrot.slane %v3067, 4
    %vm3502 = vcmp.ne.s32.totalorder %v3501, 0
    %vm3503 = vmor %vm3070, %vm3502
    %vm3504 = vmor %vm3503, %vm614
    %v3505 = vsel %vm3504, -inf, 0.0
    %v3506 = vpack.c.bf16 %v3500, %v3500
    %v3507 = vld [vmem:[#allocation5] sm:$0xf]
    %v3508 = vld [vmem:[#allocation5 + $0x4] sm:$0xf]
    %v3509 = vld [vmem:[#allocation5 + $0x8] sm:$0xf]
    %v3510 = vld [vmem:[#allocation5 + $0xc] sm:$0xf]
    %v3511 = vld [vmem:[#allocation5 + $0x10] sm:$0xf]
    %v3512 = vld [vmem:[#allocation5 + $0x14] sm:$0xf]
    %v3513 = vld [vmem:[#allocation5 + $0x18] sm:$0xf]
    %v3514 = vld [vmem:[#allocation5 + $0x1c] sm:$0xf]
    %v3515 = vld [vmem:[#allocation5 + $0x20] sm:$0xf]
    %v3516 = vld [vmem:[#allocation5 + $0x24] sm:$0xf]
    %v3517 = vld [vmem:[#allocation5 + $0x28] sm:$0xf]
    %v3518 = vld [vmem:[#allocation5 + $0x2c] sm:$0xf]
    %v3519 = vld [vmem:[#allocation5 + $0x30] sm:$0xf]
    %v3520 = vld [vmem:[#allocation5 + $0x34] sm:$0xf]
    %v3521 = vld [vmem:[#allocation5 + $0x38] sm:$0xf]
    %v3522 = vld [vmem:[#allocation5 + $0x3c] sm:$0xf]
    %v3524 = vrot.slane %v3506, 2
    %v3542 = vunpack.c.l.b16 %v3507
    %v3543 = vunpack.c.l.b16 %v3508
    %v3544 = vunpack.c.l.b16 %v3509
    %v3545 = vunpack.c.l.b16 %v3510
    %v3546 = vunpack.c.l.b16 %v3511
    %v3547 = vunpack.c.l.b16 %v3512
    %v3548 = vunpack.c.l.b16 %v3513
    %v3549 = vunpack.c.l.b16 %v3514
    %v3550 = vunpack.c.l.b16 %v3515
    %v3551 = vunpack.c.l.b16 %v3516
    %v3552 = vunpack.c.l.b16 %v3517
    %v3553 = vunpack.c.l.b16 %v3518
    %v3554 = vunpack.c.l.b16 %v3519
    %v3555 = vunpack.c.l.b16 %v3520
    %v3556 = vunpack.c.l.b16 %v3521
    %v3557 = vunpack.c.l.b16 %v3522
    %v3558 = vpack.c.b16 %v3543, %v3542
    %v3559 = vpack.c.b16 %v3545, %v3544
    %v3560 = vpack.c.b16 %v3547, %v3546
    %v3561 = vpack.c.b16 %v3549, %v3548
    %v3562 = vpack.c.b16 %v3551, %v3550
    %v3563 = vpack.c.b16 %v3553, %v3552
    %v3564 = vpack.c.b16 %v3555, %v3554
    %v3565 = vpack.c.b16 %v3557, %v3556
    %3574 = vmatprep.subr.bf16.mxu0 0
    %3575 = vmatpush1.bf16.msra.mxu0 %v3558
    %3576 = vmatprep.subr.bf16.mxu0 0
    %3577 = vmatpush1.bf16.msra.mxu0 %v3559
    %3578 = vmatprep.subr.bf16.mxu0 0
    %3579 = vmatpush1.bf16.msra.mxu0 %v3560
    %3580 = vmatprep.subr.bf16.mxu0 0
    %3581 = vmatpush1.bf16.msra.mxu0 %v3561
    %3582 = vmatprep.subr.bf16.mxu0 0
    %3583 = vmatpush1.bf16.msra.mxu0 %v3562
    %3584 = vmatprep.subr.bf16.mxu0 0
    %3585 = vmatpush1.bf16.msra.mxu0 %v3563
    %3586 = vmatprep.subr.bf16.mxu0 0
    %3587 = vmatpush1.bf16.msra.mxu0 %v3564
    %3588 = vmatprep.subr.bf16.mxu0 0
    %3589 = vmatpush1.bf16.msra.mxu0 %v3565
    %3590 = vmatprep.subr.bf16.mxu0 0
    %3591 = vmatpush1.bf16.msra.mxu0 0
    %3592 = vmatprep.subr.bf16.mxu0 0
    %3593 = vmatpush1.bf16.msra.mxu0 0
    %3594 = vmatprep.subr.bf16.mxu0 0
    %3595 = vmatpush1.bf16.msra.mxu0 0
    %3596 = vmatprep.subr.bf16.mxu0 0
    %3597 = vmatpush1.bf16.msra.mxu0 0
    %3598 = vmatprep.subr.bf16.mxu0 0
    %3599 = vmatpush1.bf16.msra.mxu0 0
    %3600 = vmatprep.subr.bf16.mxu0 0
    %3601 = vmatpush1.bf16.msra.mxu0 0
    %3602 = vmatprep.subr.bf16.mxu0 0
    %3603 = vmatpush1.bf16.msra.mxu0 0
    %3604 = vmatprep.subr.bf16.mxu0 0
    %3605 = vmatpush1.bf16.msra.mxu0 0
    %3606 = vmatprep.mubr.bf16.mxu0 0
    %3607 = vmatmul.mubr.bf16.gmra.mrb[0].mxu0 %v3524
    %v3608 = vpop.f32.mrb[0].mxu0
    %v3609 = vadd.f32 %v941, %v3608
    %v3610 = vpop.f32.mrb[0].mxu0
    %v3611 = vpop.f32.mrb[0].mxu0
    %v3612 = vpop.f32.mrb[0].mxu0
    %3613 = vdwg.mxu0
    %v3614 = vadd.f32 %v3609, %v3505
    %3615 = vst [vmem:[#allocation7 + $0x6] sm:$0x1] %v3614
    %3616 = vst [vmem:[#allocation7 + $0xd] sm:$0x2] %v3614
    %v3617 = vld [vmem:[%s9] sm:$0xff]
    %v3618 = vld [vmem:[%s9 + $0x8] sm:$0xff]
    %v3619 = vld [vmem:[%s9 + $0x10] sm:$0xff]
    %v3620 = vld [vmem:[%s9 + $0x18] sm:$0xff]
    %v3621 = vld [vmem:[%s9 + $0x20] sm:$0xff]
    %v3622 = vld [vmem:[%s9 + $0x28] sm:$0xff]
    %v3623 = vld [vmem:[%s9 + $0x30] sm:$0xff]
    %v3624 = vld [vmem:[%s9 + $0x38] sm:$0xff]
    %v3625 = vld [vmem:[%s9 + $0x40] sm:$0xff]
    %v3626 = vld [vmem:[%s9 + $0x48] sm:$0xff]
    %v3627 = vld [vmem:[%s9 + $0x50] sm:$0xff]
    %v3628 = vld [vmem:[%s9 + $0x58] sm:$0xff]
    %v3629 = vld [vmem:[%s9 + $0x60] sm:$0xff]
    %v3630 = vld [vmem:[%s9 + $0x68] sm:$0xff]
    %v3631 = vld [vmem:[%s9 + $0x70] sm:$0xff]
    %v3632 = vld [vmem:[%s9 + $0x78] sm:$0xff]
    %v3633 = vld [vmem:[%s9 + $0x80] sm:$0xff]
    %v3634 = vld [vmem:[%s9 + $0x88] sm:$0xff]
    %v3635 = vld [vmem:[%s9 + $0x90] sm:$0xff]
    %v3636 = vld [vmem:[%s9 + $0x98] sm:$0xff]
    %v3637 = vld [vmem:[%s9 + $0xa0] sm:$0xff]
    %v3638 = vld [vmem:[%s9 + $0xa8] sm:$0xff]
    %v3639 = vld [vmem:[%s9 + $0xb0] sm:$0xff]
    %v3640 = vld [vmem:[%s9 + $0xb8] sm:$0xff]
    %v3641 = vld [vmem:[%s9 + $0xc0] sm:$0xff]
    %v3642 = vld [vmem:[%s9 + $0xc8] sm:$0xff]
    %v3643 = vld [vmem:[%s9 + $0xd0] sm:$0xff]
    %v3644 = vld [vmem:[%s9 + $0xd8] sm:$0xff]
    %v3645 = vld [vmem:[%s9 + $0xe0] sm:$0xff]
    %v3646 = vld [vmem:[%s9 + $0xe8] sm:$0xff]
    %v3647 = vld [vmem:[%s9 + $0xf0] sm:$0xff]
    %v3648 = vld [vmem:[%s9 + $0xf8] sm:$0xff]
    %v3681 = vunpack.c.l.b16 %v3617
    %v3682 = vunpack.c.h.b16 %v3617
    %v3683 = vunpack.c.l.b16 %v3618
    %v3684 = vunpack.c.h.b16 %v3618
    %v3685 = vunpack.c.l.b16 %v3619
    %v3686 = vunpack.c.h.b16 %v3619
    %v3687 = vunpack.c.l.b16 %v3620
    %v3688 = vunpack.c.h.b16 %v3620
    %v3689 = vunpack.c.l.b16 %v3621
    %v3690 = vunpack.c.h.b16 %v3621
    %v3691 = vunpack.c.l.b16 %v3622
    %v3692 = vunpack.c.h.b16 %v3622
    %v3693 = vunpack.c.l.b16 %v3623
    %v3694 = vunpack.c.h.b16 %v3623
    %v3695 = vunpack.c.l.b16 %v3624
    %v3696 = vunpack.c.h.b16 %v3624
    %v3697 = vunpack.c.l.b16 %v3625
    %v3698 = vunpack.c.h.b16 %v3625
    %v3699 = vunpack.c.l.b16 %v3626
    %v3700 = vunpack.c.h.b16 %v3626
    %v3701 = vunpack.c.l.b16 %v3627
    %v3702 = vunpack.c.h.b16 %v3627
    %v3703 = vunpack.c.l.b16 %v3628
    %v3704 = vunpack.c.h.b16 %v3628
    %v3705 = vunpack.c.l.b16 %v3629
    %v3706 = vunpack.c.h.b16 %v3629
    %v3707 = vunpack.c.l.b16 %v3630
    %v3708 = vunpack.c.h.b16 %v3630
    %v3709 = vunpack.c.l.b16 %v3631
    %v3710 = vunpack.c.h.b16 %v3631
    %v3711 = vunpack.c.l.b16 %v3632
    %v3712 = vunpack.c.h.b16 %v3632
    %v3713 = vunpack.c.l.b16 %v3633
    %v3714 = vunpack.c.h.b16 %v3633
    %v3715 = vunpack.c.l.b16 %v3634
    %v3716 = vunpack.c.h.b16 %v3634
    %v3717 = vunpack.c.l.b16 %v3635
    %v3718 = vunpack.c.h.b16 %v3635
    %v3719 = vunpack.c.l.b16 %v3636
    %v3720 = vunpack.c.h.b16 %v3636
    %v3721 = vunpack.c.l.b16 %v3637
    %v3722 = vunpack.c.h.b16 %v3637
    %v3723 = vunpack.c.l.b16 %v3638
    %v3724 = vunpack.c.h.b16 %v3638
    %v3725 = vunpack.c.l.b16 %v3639
    %v3726 = vunpack.c.h.b16 %v3639
    %v3727 = vunpack.c.l.b16 %v3640
    %v3728 = vunpack.c.h.b16 %v3640
    %v3729 = vunpack.c.l.b16 %v3641
    %v3730 = vunpack.c.h.b16 %v3641
    %v3731 = vunpack.c.l.b16 %v3642
    %v3732 = vunpack.c.h.b16 %v3642
    %v3733 = vunpack.c.l.b16 %v3643
    %v3734 = vunpack.c.h.b16 %v3643
    %v3735 = vunpack.c.l.b16 %v3644
    %v3736 = vunpack.c.h.b16 %v3644
    %v3737 = vunpack.c.l.b16 %v3645
    %v3738 = vunpack.c.h.b16 %v3645
    %v3739 = vunpack.c.l.b16 %v3646
    %v3740 = vunpack.c.h.b16 %v3646
    %v3741 = vunpack.c.l.b16 %v3647
    %v3742 = vunpack.c.h.b16 %v3647
    %v3743 = vunpack.c.l.b16 %v3648
    %v3744 = vunpack.c.h.b16 %v3648
    %v3745 = vpack.c.b16 %v3685, %v3681
    %v3746 = vpack.c.b16 %v3686, %v3682
    %v3747 = vpack.c.b16 %v3687, %v3683
    %v3748 = vpack.c.b16 %v3688, %v3684
    %v3749 = vpack.c.b16 %v3693, %v3689
    %v3750 = vpack.c.b16 %v3694, %v3690
    %v3751 = vpack.c.b16 %v3695, %v3691
    %v3752 = vpack.c.b16 %v3696, %v3692
    %v3753 = vpack.c.b16 %v3701, %v3697
    %v3754 = vpack.c.b16 %v3702, %v3698
    %v3755 = vpack.c.b16 %v3703, %v3699
    %v3756 = vpack.c.b16 %v3704, %v3700
    %v3757 = vpack.c.b16 %v3709, %v3705
    %v3758 = vpack.c.b16 %v3710, %v3706
    %v3759 = vpack.c.b16 %v3711, %v3707
    %v3760 = vpack.c.b16 %v3712, %v3708
    %v3761 = vpack.c.b16 %v3717, %v3713
    %v3762 = vpack.c.b16 %v3718, %v3714
    %v3763 = vpack.c.b16 %v3719, %v3715
    %v3764 = vpack.c.b16 %v3720, %v3716
    %v3765 = vpack.c.b16 %v3725, %v3721
    %v3766 = vpack.c.b16 %v3726, %v3722
    %v3767 = vpack.c.b16 %v3727, %v3723
    %v3768 = vpack.c.b16 %v3728, %v3724
    %v3769 = vpack.c.b16 %v3733, %v3729
    %v3770 = vpack.c.b16 %v3734, %v3730
    %v3771 = vpack.c.b16 %v3735, %v3731
    %v3772 = vpack.c.b16 %v3736, %v3732
    %v3773 = vpack.c.b16 %v3741, %v3737
    %v3774 = vpack.c.b16 %v3742, %v3738
    %v3775 = vpack.c.b16 %v3743, %v3739
    %v3776 = vpack.c.b16 %v3744, %v3740
    %3809 = vmatprep.subr.bf16.mxu0 %v3746
    %3810 = vmatpush1.bf16.msra.mxu0 %v3745
    %3811 = vmatprep.subr.bf16.mxu0 %v3750
    %3812 = vmatpush1.bf16.msra.mxu0 %v3749
    %3813 = vmatprep.subr.bf16.mxu0 %v3754
    %3814 = vmatpush1.bf16.msra.mxu0 %v3753
    %3815 = vmatprep.subr.bf16.mxu0 %v3758
    %3816 = vmatpush1.bf16.msra.mxu0 %v3757
    %3817 = vmatprep.subr.bf16.mxu0 %v3762
    %3818 = vmatpush1.bf16.msra.mxu0 %v3761
    %3819 = vmatprep.subr.bf16.mxu0 %v3766
    %3820 = vmatpush1.bf16.msra.mxu0 %v3765
    %3821 = vmatprep.subr.bf16.mxu0 %v3770
    %3822 = vmatpush1.bf16.msra.mxu0 %v3769
    %3823 = vmatprep.subr.bf16.mxu0 %v3774
    %3824 = vmatpush1.bf16.msra.mxu0 %v3773
    %3825 = vmatprep.subr.bf16.mxu0 0
    %3826 = vmatpush1.bf16.msra.mxu0 0
    %3827 = vmatprep.subr.bf16.mxu0 0
    %3828 = vmatpush1.bf16.msra.mxu0 0
    %3829 = vmatprep.subr.bf16.mxu0 0
    %3830 = vmatpush1.bf16.msra.mxu0 0
    %3831 = vmatprep.subr.bf16.mxu0 0
    %3832 = vmatpush1.bf16.msra.mxu0 0
    %3833 = vmatprep.subr.bf16.mxu0 0
    %3834 = vmatpush1.bf16.msra.mxu0 0
    %3835 = vmatprep.subr.bf16.mxu0 0
    %3836 = vmatpush1.bf16.msra.mxu0 0
    %3837 = vmatprep.subr.bf16.mxu0 0
    %3838 = vmatpush1.bf16.msra.mxu0 0
    %3839 = vmatprep.subr.bf16.mxu0 0
    %3840 = vmatpush1.bf16.msra.mxu0 0
    %3841 = vmatprep.mubr.bf16.mxu0 0
    %3842 = vmatmul.mubr.bf16.gmra.mrb[0].mxu0 %v3524
    %v3843 = vpop.f32.mrb[0].mxu0
    %v3844 = vadd.f32 0.0, %v3843
    %v3845 = vpop.f32.mrb[0].mxu0
    %v3846 = vadd.f32 0.0, %v3845
    %v3847 = vpop.f32.mrb[0].mxu0
    %v3848 = vpop.f32.mrb[0].mxu0
    %3849 = vdwg.mxu0
    %3850 = vmatprep.subr.bf16.mxu0 %v3748
    %3851 = vmatpush1.bf16.msra.mxu0 %v3747
    %3852 = vmatprep.subr.bf16.mxu0 %v3752
    %3853 = vmatpush1.bf16.msra.mxu0 %v3751
    %3854 = vmatprep.subr.bf16.mxu0 %v3756
    %3855 = vmatpush1.bf16.msra.mxu0 %v3755
    %3856 = vmatprep.subr.bf16.mxu0 %v3760
    %3857 = vmatpush1.bf16.msra.mxu0 %v3759
    %3858 = vmatprep.subr.bf16.mxu0 %v3764
    %3859 = vmatpush1.bf16.msra.mxu0 %v3763
    %3860 = vmatprep.subr.bf16.mxu0 %v3768
    %3861 = vmatpush1.bf16.msra.mxu0 %v3767
    %3862 = vmatprep.subr.bf16.mxu0 %v3772
    %3863 = vmatpush1.bf16.msra.mxu0 %v3771
    %3864 = vmatprep.subr.bf16.mxu0 %v3776
    %3865 = vmatpush1.bf16.msra.mxu0 %v3775
    %3866 = vmatprep.subr.bf16.mxu0 0
    %3867 = vmatpush1.bf16.msra.mxu0 0
    %3868 = vmatprep.subr.bf16.mxu0 0
    %3869 = vmatpush1.bf16.msra.mxu0 0
    %3870 = vmatprep.subr.bf16.mxu0 0
    %3871 = vmatpush1.bf16.msra.mxu0 0
    %3872 = vmatprep.subr.bf16.mxu0 0
    %3873 = vmatpush1.bf16.msra.mxu0 0
    %3874 = vmatprep.subr.bf16.mxu0 0
    %3875 = vmatpush1.bf16.msra.mxu0 0
    %3876 = vmatprep.subr.bf16.mxu0 0
    %3877 = vmatpush1.bf16.msra.mxu0 0
    %3878 = vmatprep.subr.bf16.mxu0 0
    %3879 = vmatpush1.bf16.msra.mxu0 0
    %3880 = vmatprep.subr.bf16.mxu0 0
    %3881 = vmatpush1.bf16.msra.mxu0 0
    %3882 = vmatprep.mubr.bf16.mxu0 0
    %3883 = vmatmul.mubr.bf16.gmra.mrb[0].mxu0 %v3524
    %v3884 = vpop.f32.mrb[0].mxu0
    %v3885 = vadd.f32 0.0, %v3884
    %v3886 = vpop.f32.mrb[0].mxu0
    %v3887 = vadd.f32 0.0, %v3886
    %v3888 = vpop.f32.mrb[0].mxu0
    %v3889 = vpop.f32.mrb[0].mxu0
    %3890 = vdwg.mxu0
    %v3895 = vrot.slane %v3844, 2
    %v3896 = vrot.slane %v3846, 2
    %v3897 = vrot.slane %v3885, 2
    %v3898 = vrot.slane %v3887, 2
    %v3903 = vadd.f32 %v567, %v3895
    %v3904 = vadd.f32 %v569, %v3896
    %v3905 = vadd.f32 %v610, %v3897
    %v3906 = vadd.f32 %v612, %v3898
    %v3907 = vsub.f32 0.0, %v3903
    %v3908 = vmul.f32 %v3907, 1.442695
    %v3909 = vpow.pop %v3908
    %v3910 = vadd.f32 %v3909, 1.0
    %v3911 = vrcp.pop %v3910
    %v3912 = vmul.f32 1.0, %v3911
    %v3913 = vsub.f32 0.0, %v3904
    %v3914 = vmul.f32 %v3913, 1.442695
    %v3915 = vpow.pop %v3914
    %v3916 = vadd.f32 %v3915, 1.0
    %v3917 = vrcp.pop %v3916
    %v3918 = vmul.f32 1.0, %v3917
    %v3919 = vtanh.pop %v3905
    %v3920 = vsub.f32 0.0, %v3906
    %v3921 = vmul.f32 %v3920, 1.442695
    %v3922 = vpow.pop %v3921
    %v3923 = vadd.f32 %v3922, 1.0
    %v3924 = vrcp.pop %v3923
    %v3925 = vmul.f32 1.0, %v3924
    %v3927 = vrot.slane %v3498, 6
    %v3929 = vmul.f32 %v3918, %v3927
    %v3930 = vmul.f32 %v3912, %v3919
    %v3931 = vadd.f32 %v3929, %v3930
    %v3932 = vtanh.pop %v3931
    %v3933 = vmul.f32 %v3925, %v3932
    %v3934 = vrot.slane %v3067, 6
    %vm3935 = vcmp.ne.s32.totalorder %v3934, 0
    %vm3936 = vmor %vm3503, %vm3935
    %vm3937 = vmor %vm3936, %vm614
    %v3938 = vsel %vm3937, -inf, 0.0
    %v3939 = vpack.c.bf16 %v3933, %v3933
    %v3940 = vld [vmem:[#allocation5] sm:$0xf]
    %v3941 = vld [vmem:[#allocation5 + $0x4] sm:$0xf]
    %v3942 = vld [vmem:[#allocation5 + $0x8] sm:$0xf]
    %v3943 = vld [vmem:[#allocation5 + $0xc] sm:$0xf]
    %v3944 = vld [vmem:[#allocation5 + $0x10] sm:$0xf]
    %v3945 = vld [vmem:[#allocation5 + $0x14] sm:$0xf]
    %v3946 = vld [vmem:[#allocation5 + $0x18] sm:$0xf]
    %v3947 = vld [vmem:[#allocation5 + $0x1c] sm:$0xf]
    %v3948 = vld [vmem:[#allocation5 + $0x20] sm:$0xf]
    %v3949 = vld [vmem:[#allocation5 + $0x24] sm:$0xf]
    %v3950 = vld [vmem:[#allocation5 + $0x28] sm:$0xf]
    %v3951 = vld [vmem:[#allocation5 + $0x2c] sm:$0xf]
    %v3952 = vld [vmem:[#allocation5 + $0x30] sm:$0xf]
    %v3953 = vld [vmem:[#allocation5 + $0x34] sm:$0xf]
    %v3954 = vld [vmem:[#allocation5 + $0x38] sm:$0xf]
    %v3955 = vld [vmem:[#allocation5 + $0x3c] sm:$0xf]
    %v3957 = vrot.slane %v3939, 3
    %v3975 = vunpack.c.l.b16 %v3940
    %v3976 = vunpack.c.l.b16 %v3941
    %v3977 = vunpack.c.l.b16 %v3942
    %v3978 = vunpack.c.l.b16 %v3943
    %v3979 = vunpack.c.l.b16 %v3944
    %v3980 = vunpack.c.l.b16 %v3945
    %v3981 = vunpack.c.l.b16 %v3946
    %v3982 = vunpack.c.l.b16 %v3947
    %v3983 = vunpack.c.l.b16 %v3948
    %v3984 = vunpack.c.l.b16 %v3949
    %v3985 = vunpack.c.l.b16 %v3950
    %v3986 = vunpack.c.l.b16 %v3951
    %v3987 = vunpack.c.l.b16 %v3952
    %v3988 = vunpack.c.l.b16 %v3953
    %v3989 = vunpack.c.l.b16 %v3954
    %v3990 = vunpack.c.l.b16 %v3955
    %v3991 = vpack.c.b16 %v3976, %v3975
    %v3992 = vpack.c.b16 %v3978, %v3977
    %v3993 = vpack.c.b16 %v3980, %v3979
    %v3994 = vpack.c.b16 %v3982, %v3981
    %v3995 = vpack.c.b16 %v3984, %v3983
    %v3996 = vpack.c.b16 %v3986, %v3985
    %v3997 = vpack.c.b16 %v3988, %v3987
    %v3998 = vpack.c.b16 %v3990, %v3989
    %4007 = vmatprep.subr.bf16.mxu0 0
    %4008 = vmatpush1.bf16.msra.mxu0 %v3991
    %4009 = vmatprep.subr.bf16.mxu0 0
    %4010 = vmatpush1.bf16.msra.mxu0 %v3992
    %4011 = vmatprep.subr.bf16.mxu0 0
    %4012 = vmatpush1.bf16.msra.mxu0 %v3993
    %4013 = vmatprep.subr.bf16.mxu0 0
    %4014 = vmatpush1.bf16.msra.mxu0 %v3994
    %4015 = vmatprep.subr.bf16.mxu0 0
    %4016 = vmatpush1.bf16.msra.mxu0 %v3995
    %4017 = vmatprep.subr.bf16.mxu0 0
    %4018 = vmatpush1.bf16.msra.mxu0 %v3996
    %4019 = vmatprep.subr.bf16.mxu0 0
    %4020 = vmatpush1.bf16.msra.mxu0 %v3997
    %4021 = vmatprep.subr.bf16.mxu0 0
    %4022 = vmatpush1.bf16.msra.mxu0 %v3998
    %4023 = vmatprep.subr.bf16.mxu0 0
    %4024 = vmatpush1.bf16.msra.mxu0 0
    %4025 = vmatprep.subr.bf16.mxu0 0
    %4026 = vmatpush1.bf16.msra.mxu0 0
    %4027 = vmatprep.subr.bf16.mxu0 0
    %4028 = vmatpush1.bf16.msra.mxu0 0
    %4029 = vmatprep.subr.bf16.mxu0 0
    %4030 = vmatpush1.bf16.msra.mxu0 0
    %4031 = vmatprep.subr.bf16.mxu0 0
    %4032 = vmatpush1.bf16.msra.mxu0 0
    %4033 = vmatprep.subr.bf16.mxu0 0
    %4034 = vmatpush1.bf16.msra.mxu0 0
    %4035 = vmatprep.subr.bf16.mxu0 0
    %4036 = vmatpush1.bf16.msra.mxu0 0
    %4037 = vmatprep.subr.bf16.mxu0 0
    %4038 = vmatpush1.bf16.msra.mxu0 0
    %4039 = vmatprep.mubr.bf16.mxu0 0
    %4040 = vmatmul.mubr.bf16.gmra.mrb[0].mxu0 %v3957
    %v4041 = vpop.f32.mrb[0].mxu0
    %v4042 = vadd.f32 %v941, %v4041
    %v4043 = vpop.f32.mrb[0].mxu0
    %v4044 = vpop.f32.mrb[0].mxu0
    %v4045 = vpop.f32.mrb[0].mxu0
    %4046 = vdwg.mxu0
    %v4047 = vadd.f32 %v4042, %v3938
    %4048 = vst [vmem:[#allocation7 + $0x7] sm:$0x1] %v4047
    %4049 = vst [vmem:[#allocation7 + $0xe] sm:$0x2] %v4047
    // Predicated region
    $region58: #{metacas_forward.1} parent=1 // pred_check
      _
    $region59: #{metacas_forward.1} parent=1 // pred_check_branch
      %4051 = sbr.rel (0) target = $region61
    $region60: #{metacas_forward.1} parent=1 // pred_region
      %s4053 = ssub.s32 256, 256
      %4054 = vsyncadd [#allocation4], %s4053
      %s4055 = sshll.u32 [#allocation7], 4
      %s4056 = int_to_ptr.vmem [resolvable:$true] %s4055
      %4061 = dma.vmem_to_hbm [thread:$0]  %s4056, 256, %s12, [#allocation4], 128, 128, 8
    $region61: #{metacas_forward.1} parent=1 // pred_fallthru
      _
    // Predicated region
    $region62: #{metacas_forward.1} parent=1 // pred_check
      _
    $region63: #{metacas_forward.1} parent=1 // pred_check_branch
      %4063 = sbr.rel (0) target = $region65
    $region64: #{metacas_forward.1} parent=1 // pred_region
      %4064 = dma.done [#allocation4], 256
    $region65: #{metacas_forward.1} parent=1 // pred_fallthru
      _
    %4065 = vsyncpa [#allocation3], 1
    %4066 = vsyncpa [#allocation6], 1
    %4067 = vsyncpa [#allocation4], 1

</llo_original>
